<compile_context>
chip_gen: v7x
topology: tpu7x:2x2x1
jax: 0.10.0
libtpu: 0.0.40
codegen_flags: <defaults>
</compile_context>

<pallas_src>
import functools
import jax
import jax.numpy as jnp
from jax import lax
from jax.experimental import pallas as pl
from jax.experimental.pallas import tpu as pltpu

# ---------------- small, shape-consistent config ----------------
VOCAB = 256
HIDDEN = 128
N_LAYERS = 2
N_HEADS = 4
HEAD_DIM = HIDDEN // N_HEADS          # 32
INTER = 256
EPS = 1e-5
BATCH = 2
SEQ = 16

MASK_VALUE = -1e30


# ---------------- in-kernel helpers ----------------
def _rmsnorm(x, w, eps):
    # x: (S, H) f32, w: (1, H) f32
    var = jnp.mean(x * x, axis=-1, keepdims=True)
    return x * lax.rsqrt(var + eps) * w


def fused_model_kernel(x_ref, rn1_ref, wqkv_ref, wqkrot_ref, wo_ref,
                       rn2_ref, wgu_ref, wd_ref, cos_ref, sin_ref, rmsf_ref,
                       out_ref, layers_ref,
                       *, n_heads, head_dim, inter, eps, n_layers):
    """grid = (B,). One grid step = all N_LAYERS blocks + final RMSNorm for one batch row.

    All per-layer weights arrive as full stacked arrays with constant index maps, so
    they are resident in VMEM and fetched exactly once per core.
    """
    S = x_ref.shape[1]
    H = x_ref.shape[2]

    cos = cos_ref[...]                                  # (S, H) f32
    sin = sin_ref[...]
    scale = 1.0 / (head_dim ** 0.5)

    row = lax.broadcasted_iota(jnp.int32, (S, S), 0)
    col = lax.broadcasted_iota(jnp.int32, (S, S), 1)
    causal = (col <= row)[None]                         # (1, S, S)

    x = x_ref[0]                                        # (S, H) f32 residual stream

    for l in range(n_layers):                           # unrolled: N_LAYERS is tiny
        # ---- attention sublayer ----
        y = _rmsnorm(x, rn1_ref[l], eps).astype(jnp.bfloat16)
        qkv = jnp.dot(y, wqkv_ref[l], preferred_element_type=jnp.float32)     # (S, 3H)
        qk_r = jnp.dot(y, wqkrot_ref[l], preferred_element_type=jnp.float32)  # (S, 2H)

        # RoPE with rotate-half folded into the weights: stays lane-dense at width H.
        q = qkv[:, :H] * cos + qk_r[:, :H] * sin
        k = qkv[:, H:2 * H] * cos + qk_r[:, H:2 * H] * sin
        v = qkv[:, 2 * H:]

        # head-major layout for head-batched dot_general
        qhm = jnp.swapaxes(q.reshape(S, n_heads, head_dim), 0, 1).astype(jnp.bfloat16)
        khm = jnp.swapaxes(k.reshape(S, n_heads, head_dim), 0, 1).astype(jnp.bfloat16)
        vhm = jnp.swapaxes(v.reshape(S, n_heads, head_dim), 0, 1).astype(jnp.bfloat16)

        scores = lax.dot_general(qhm, khm, (((2,), (2,)), ((0,), (0,))),
                                 preferred_element_type=jnp.float32) * scale  # (nh,S,S)
        scores = jnp.where(causal, scores, MASK_VALUE)
        scores = scores - jnp.max(scores, axis=-1, keepdims=True)
        p = jnp.exp(scores)
        p = p / jnp.sum(p, axis=-1, keepdims=True)          # exact softmax denominator
        ctx = lax.dot_general(p.astype(jnp.bfloat16), vhm, (((2,), (1,)), ((0,), (0,))),
                              preferred_element_type=jnp.float32)             # (nh,S,hd)
        ctx = jnp.swapaxes(ctx, 0, 1).reshape(S, H)
        x = x + jnp.dot(ctx.astype(jnp.bfloat16), wo_ref[l],
                        preferred_element_type=jnp.float32)

        # ---- MLP sublayer (SwiGLU), fused gate|up ----
        y2 = _rmsnorm(x, rn2_ref[l], eps).astype(jnp.bfloat16)
        gu = jnp.dot(y2, wgu_ref[l], preferred_element_type=jnp.float32)      # (S, 2*I)
        gate = gu[:, :inter]
        up = gu[:, inter:]
        act = gate * jax.nn.sigmoid(gate)                                     # silu
        x = x + jnp.dot((act * up).astype(jnp.bfloat16), wd_ref[l],
                        preferred_element_type=jnp.float32)

        layers_ref[l, 0] = x                              # per-layer hidden state

    out_ref[0] = _rmsnorm(x, rmsf_ref[...], eps)          # final RMSNorm (always written)


# ---------------- single fused pallas_call wrapper ----------------
def run_model(h_embed, fused, cos_full, sin_full):
    B, S, H = h_embed.shape
    L = N_LAYERS

    def const_spec(shape):                 # full array, DMA'd once, resident across grid
        zeros = (0,) * len(shape)
        return pl.BlockSpec(shape, lambda b, _z=zeros: _z)

    in_specs = [
        pl.BlockSpec((1, S, H), lambda b: (b, 0, 0)),   # embedded hidden states
        const_spec((L, 1, H)),                          # rn1 weights (f32)
        const_spec((L, H, 3 * H)),                      # fused Wqkv (bf16)
        const_spec((L, H, 2 * H)),                      # fused rotate-half(Wq,Wk) (bf16)
        const_spec((L, H, H)),                          # Wo (bf16)
        const_spec((L, 1, H)),                          # rn2 weights (f32)
        const_spec((L, H, 2 * INTER)),                  # fused Wgate|Wup (bf16)
        const_spec((L, INTER, H)),                      # Wdown (bf16)
        const_spec((S, H)),                             # cos broadcast to (S, H)
        const_spec((S, H)),                             # sin broadcast to (S, H)
        const_spec((1, H)),                             # final RMSNorm weight
    ]
    out_specs = (
        pl.BlockSpec((1, S, H), lambda b: (b, 0, 0)),       # final output
        pl.BlockSpec((L, 1, S, H), lambda b: (0, b, 0, 0)),  # per-layer hidden states
    )
    out_shapes = (
        jax.ShapeDtypeStruct((B, S, H), jnp.float32),
        jax.ShapeDtypeStruct((L, B, S, H), jnp.float32),
    )

    kern = functools.partial(fused_model_kernel, n_heads=N_HEADS,
                             head_dim=HEAD_DIM, inter=INTER, eps=EPS,
                             n_layers=N_LAYERS)
    out, layer_stack = pl.pallas_call(
        kern,
        out_shape=out_shapes,
        grid_spec=pltpu.PrefetchScalarGridSpec(
            num_scalar_prefetch=0,
            grid=(B,),
            in_specs=in_specs,
            out_specs=out_specs,
        ),
        compiler_params=pltpu.CompilerParams(
            dimension_semantics=("parallel",)),   # batch rows -> both TCs on v7x
    )(h_embed, fused['rn1'], fused['wqkv'], fused['wqk_rot'], fused['wo'],
      fused['rn2'], fused['wgu'], fused['wd'], cos_full, sin_full, fused['rms'])
    return out, layer_stack


# ---------------- parameter setup (deterministic) ----------------
def precompute_cos_sin(seq_len, head_dim):
    inv_freq = 1.0 / (10000.0 ** (
        jnp.arange(0, head_dim, 2, dtype=jnp.float32) / head_dim))
    t = jnp.arange(seq_len, dtype=jnp.float32)
    freqs = jnp.outer(t, inv_freq)
    emb = jnp.concatenate([freqs, freqs], axis=-1)          # (seq, head_dim)
    return jnp.cos(emb), jnp.sin(emb)


def init_params(key):
    std = 0.02
    keys = jax.random.split(key, 1 + N_LAYERS)
    embed = jax.random.normal(keys[0], (VOCAB, HIDDEN), jnp.float32) * std
    layers = []
    for li in range(N_LAYERS):
        ks = jax.random.split(keys[1 + li], 7)

        # PyTorch nn.Linear weight shape (out, in); transpose to (in, out).
        # Matmul weights are stored in bf16 (used identically by kernel and reference).
        def lin(k, out_f, in_f):
            w = jax.random.normal(k, (out_f, in_f), jnp.float32) * std
            return w.T.astype(jnp.bfloat16)

        layers.append(dict(
            rn1=jnp.ones((1, HIDDEN), jnp.float32),
            wq=lin(ks[0], HIDDEN, HIDDEN),
            wk=lin(ks[1], HIDDEN, HIDDEN),
            wv=lin(ks[2], HIDDEN, HIDDEN),
            wo=lin(ks[3], HIDDEN, HIDDEN),
            rn2=jnp.ones((1, HIDDEN), jnp.float32),
            wg=lin(ks[4], INTER, HIDDEN),
            wu=lin(ks[5], INTER, HIDDEN),
            wd=lin(ks[6], HIDDEN, INTER),
        ))
    rms = jnp.ones((1, HIDDEN), jnp.float32)
    return embed, layers, rms


def build_fused_params(layers, rms_w):
    """Stack per-layer weights, fuse QKV / gate|up, fold rotate-half into weight copies."""
    def rot_cols(w):  # w: (H, H) bf16 in (in, out); permute+negate per-head output columns
        w3 = w.reshape(HIDDEN, N_HEADS, HEAD_DIM)
        rot = jnp.concatenate([-w3[..., HEAD_DIM // 2:], w3[..., :HEAD_DIM // 2]], axis=-1)
        return rot.reshape(HIDDEN, HIDDEN)

    return dict(
        rn1=jnp.stack([lp['rn1'] for lp in layers]),                                   # (L,1,H) f32
        wqkv=jnp.stack([jnp.concatenate([lp['wq'], lp['wk'], lp['wv']], axis=1)
                        for lp in layers]),                                            # (L,H,3H) bf16
        wqk_rot=jnp.stack([jnp.concatenate([rot_cols(lp['wq']), rot_cols(lp['wk'])],
                                           axis=1) for lp in layers]),                 # (L,H,2H) bf16
        wo=jnp.stack([lp['wo'] for lp in layers]),                                     # (L,H,H) bf16
        rn2=jnp.stack([lp['rn2'] for lp in layers]),                                   # (L,1,H) f32
        wgu=jnp.stack([jnp.concatenate([lp['wg'], lp['wu']], axis=1)
                       for lp in layers]),                                             # (L,H,2I) bf16
        wd=jnp.stack([lp['wd'] for lp in layers]),                                     # (L,I,H) bf16
        rms=rms_w,                                                                     # (1,H) f32
    )


# ---------------- model forward (glue in plain JAX) ----------------
def model_forward(input_ids, embed, fused, cos, sin):
    # embedding gather stays in XLA (trivial 256x128 table); dropout = identity (eval).
    h = jnp.take(embed, input_ids, axis=0)                  # (B, S, H) f32
    cos_full = jnp.tile(cos, (1, N_HEADS))                  # (S, H)
    sin_full = jnp.tile(sin, (1, N_HEADS))
    out, layer_stack = run_model(h, fused, cos_full, sin_full)
    layers_output = [h] + [layer_stack[i] for i in range(N_LAYERS)]
    return out, layers_output


# ---------------- plain-JAX reference (same mixed-precision policy) ----------------
def ref_forward(input_ids, embed, layers, rms_w, cos, sin):
    def rms(x, w):
        return x * lax.rsqrt(jnp.mean(x * x, -1, keepdims=True) + EPS) * w

    def bdot(a, b):       # bf16 inputs, f32 accumulation (mirrors the kernel's matmuls)
        return jnp.matmul(a.astype(jnp.bfloat16), b.astype(jnp.bfloat16),
                          preferred_element_type=jnp.float32)

    def rope(t):          # t: (B, S, nh, hd) f32
        c = cos[None, :, None, :]
        s = sin[None, :, None, :]
        rot = jnp.concatenate([-t[..., HEAD_DIM // 2:],
                               t[..., :HEAD_DIM // 2]], axis=-1)
        return t * c + rot * s

    h = jnp.take(embed, input_ids, axis=0)
    B, S, H = h.shape
    outs = [h]
    scale = 1.0 / (HEAD_DIM ** 0.5)
    mask = jnp.tril(jnp.ones((S, S), bool))
    for lp in layers:
        y = rms(h, lp['rn1'])
        q = bdot(y, lp['wq']).reshape(B, S, N_HEADS, HEAD_DIM)
        k = bdot(y, lp['wk']).reshape(B, S, N_HEADS, HEAD_DIM)
        v = bdot(y, lp['wv']).reshape(B, S, N_HEADS, HEAD_DIM)
        q, k = rope(q), rope(k)
        sc = jnp.einsum('bqhd,bkhd->bhqk',
                        q.astype(jnp.bfloat16), k.astype(jnp.bfloat16),
                        preferred_element_type=jnp.float32) * scale
        sc = jnp.where(mask[None, None], sc, MASK_VALUE)
        sc = sc - jnp.max(sc, axis=-1, keepdims=True)
        p = jnp.exp(sc)
        p = p / jnp.sum(p, axis=-1, keepdims=True)
        ctx = jnp.einsum('bhqk,bkhd->bqhd',
                         p.astype(jnp.bfloat16), v.astype(jnp.bfloat16),
                         preferred_element_type=jnp.float32).reshape(B, S, H)
        h = h + bdot(ctx, lp['wo'])
        y2 = rms(h, lp['rn2'])
        g = bdot(y2, lp['wg'])
        u = bdot(y2, lp['wu'])
        h = h + bdot(g * jax.nn.sigmoid(g) * u, lp['wd'])
        outs.append(h)
    return rms(h, rms_w), outs


if __name__ == "__main__":
    key = jax.random.PRNGKey(0)
    kp, kx = jax.random.split(key)
    embed, layers, rms_w = init_params(kp)
    fused = build_fused_params(layers, rms_w)
    cos, sin = precompute_cos_sin(SEQ, HEAD_DIM)

    input_ids = jax.random.randint(kx, (BATCH, SEQ), 0, VOCAB, dtype=jnp.int32)

    out, layers_output = model_forward(input_ids, embed, fused, cos, sin)
    out = jax.block_until_ready(out)
    layers_output = [jax.block_until_ready(t) for t in layers_output]

    ref_out, ref_layers = ref_forward(input_ids, embed, layers, rms_w, cos, sin)
    ref_out = jax.block_until_ready(ref_out)

    assert out.shape == (BATCH, SEQ, HIDDEN)
    assert len(layers_output) == N_LAYERS + 1
    # Kernel and reference share the same bf16-weight / f32-accumulate numerics, so the
    # only divergence is accumulation order and transcendental implementation details.
    assert jnp.allclose(out, ref_out, atol=5e-3, rtol=5e-3), \
        float(jnp.max(jnp.abs(out - ref_out)))
    for got, want in zip(layers_output, ref_layers):
        assert jnp.allclose(got, want, atol=5e-3, rtol=5e-3), \
            float(jnp.max(jnp.abs(got - want)))

    print("KERNEL_OK")
</pallas_src>

<mosaic_0001>
module attributes {stable_mosaic.version = 11 : i64} {
  func.func @fused_model_kernel(%arg0: i32, %arg1: memref<1x16x128xf32, #tpu.memory_space<vmem>>, %arg2: memref<2x1x128xf32, #tpu.memory_space<vmem>>, %arg3: memref<2x128x384xbf16, #tpu.memory_space<vmem>>, %arg4: memref<2x128x256xbf16, #tpu.memory_space<vmem>>, %arg5: memref<2x128x128xbf16, #tpu.memory_space<vmem>>, %arg6: memref<2x1x128xf32, #tpu.memory_space<vmem>>, %arg7: memref<2x128x512xbf16, #tpu.memory_space<vmem>>, %arg8: memref<2x256x128xbf16, #tpu.memory_space<vmem>>, %arg9: memref<16x128xf32, #tpu.memory_space<vmem>>, %arg10: memref<16x128xf32, #tpu.memory_space<vmem>>, %arg11: memref<1x128xf32, #tpu.memory_space<vmem>>, %arg12: memref<1x16x128xf32, #tpu.memory_space<vmem>>, %arg13: memref<2x1x16x128xf32, #tpu.memory_space<vmem>>) attributes {dimension_semantics = [#tpu.dimension_semantics<parallel>], iteration_bounds = array<i64: 2>, scalar_prefetch = 0 : i64, scratch_operands = 0 : i64, tpu.core_type = #tpu.core_type<tc>, window_params = [{transform_indices = @transform_0, window_bounds = array<i64: 1, 16, 128>}, {pipeline_mode = #tpu.pipeline_mode<synchronous>, transform_indices = @transform_1, window_bounds = array<i64: 2, 1, 128>}, {pipeline_mode = #tpu.pipeline_mode<synchronous>, transform_indices = @transform_2, window_bounds = array<i64: 2, 128, 384>}, {pipeline_mode = #tpu.pipeline_mode<synchronous>, transform_indices = @transform_3, window_bounds = array<i64: 2, 128, 256>}, {pipeline_mode = #tpu.pipeline_mode<synchronous>, transform_indices = @transform_4, window_bounds = array<i64: 2, 128, 128>}, {pipeline_mode = #tpu.pipeline_mode<synchronous>, transform_indices = @transform_5, window_bounds = array<i64: 2, 1, 128>}, {pipeline_mode = #tpu.pipeline_mode<synchronous>, transform_indices = @transform_6, window_bounds = array<i64: 2, 128, 512>}, {pipeline_mode = #tpu.pipeline_mode<synchronous>, transform_indices = @transform_7, window_bounds = array<i64: 2, 256, 128>}, {pipeline_mode = #tpu.pipeline_mode<synchronous>, transform_indices = @transform_8, window_bounds = array<i64: 16, 128>}, {pipeline_mode = #tpu.pipeline_mode<synchronous>, transform_indices = @transform_9, window_bounds = array<i64: 16, 128>}, {pipeline_mode = #tpu.pipeline_mode<synchronous>, transform_indices = @transform_10, window_bounds = array<i64: 1, 128>}, {transform_indices = @transform_11, window_bounds = array<i64: 1, 16, 128>}, {transform_indices = @transform_12, window_bounds = array<i64: 2, 1, 16, 128>}]} {
    %c0 = arith.constant 0 : index
    %c0_0 = arith.constant 0 : index
    %0 = vector.load %arg9[%c0, %c0_0] : memref<16x128xf32, #tpu.memory_space<vmem>>, vector<16x128xf32>
    %c0_1 = arith.constant 0 : index
    %c0_2 = arith.constant 0 : index
    %1 = vector.load %arg10[%c0_1, %c0_2] : memref<16x128xf32, #tpu.memory_space<vmem>>, vector<16x128xf32>
    %2 = tpu.iota {dimensions = array<i32: 0>} : vector<16x16xi32>
    %3 = tpu.iota {dimensions = array<i32: 1>} : vector<16x16xi32>
    %4 = arith.cmpi sle, %3, %2 : vector<16x16xi32>
    %5 = vector.shape_cast %4 : vector<16x16xi1> to vector<1x16x16xi1>
    %c0_3 = arith.constant 0 : index
    %c0_4 = arith.constant 0 : index
    %c0_5 = arith.constant 0 : index
    %6 = vector.load %arg1[%c0_3, %c0_4, %c0_5] : memref<1x16x128xf32, #tpu.memory_space<vmem>>, vector<1x16x128xf32>
    %7 = vector.shape_cast %6 : vector<1x16x128xf32> to vector<16x128xf32>
    %c0_6 = arith.constant 0 : index
    %c0_7 = arith.constant 0 : index
    %c0_8 = arith.constant 0 : index
    %8 = vector.load %arg2[%c0_6, %c0_7, %c0_8] : memref<2x1x128xf32, #tpu.memory_space<vmem>>, vector<1x1x128xf32>
    %9 = vector.shape_cast %8 : vector<1x1x128xf32> to vector<1x128xf32>
    %10 = arith.mulf %7, %7 : vector<16x128xf32>
    %cst = arith.constant dense<0.000000e+00> : vector<16xf32>
    %11 = vector.multi_reduction <add>, %10, %cst [1] : vector<16x128xf32> to vector<16xf32>
    %12 = vector.shape_cast %11 : vector<16xf32> to vector<16x1xf32>
    %cst_9 = arith.constant 1.280000e+02 : f32
    %13 = vector.broadcast %cst_9 : f32 to vector<16x1xf32>
    %14 = arith.divf %12, %13 : vector<16x1xf32>
    %cst_10 = arith.constant 9.99999974E-6 : f32
    %15 = vector.broadcast %cst_10 : f32 to vector<16x1xf32>
    %16 = arith.addf %14, %15 : vector<16x1xf32>
    %17 = math.rsqrt %16 : vector<16x1xf32>
    %18 = vector.broadcast %17 : vector<16x1xf32> to vector<16x128xf32>
    %19 = arith.mulf %7, %18 : vector<16x128xf32>
    %20 = vector.broadcast %9 : vector<1x128xf32> to vector<16x128xf32>
    %21 = arith.mulf %19, %20 : vector<16x128xf32>
    %22 = arith.truncf %21 : vector<16x128xf32> to vector<16x128xbf16>
    %c0_11 = arith.constant 0 : index
    %c0_12 = arith.constant 0 : index
    %c0_13 = arith.constant 0 : index
    %23 = vector.load %arg3[%c0_11, %c0_12, %c0_13] : memref<2x128x384xbf16, #tpu.memory_space<vmem>>, vector<1x128x384xbf16>
    %24 = vector.shape_cast %23 : vector<1x128x384xbf16> to vector<128x384xbf16>
    %cst_14 = arith.constant dense<0.000000e+00> : vector<16x384xf32>
    %25 = tpu.matmul %22, %24, %cst_14 {dimension_numbers = #tpu.dot_dimension_numbers<[1], [0], [0], [1], [0, 0, 1, 1], [], []>} : vector<16x128xbf16>, vector<128x384xbf16>, vector<16x384xf32> -> vector<16x384xf32>
    %c0_15 = arith.constant 0 : index
    %c0_16 = arith.constant 0 : index
    %c0_17 = arith.constant 0 : index
    %26 = vector.load %arg4[%c0_15, %c0_16, %c0_17] : memref<2x128x256xbf16, #tpu.memory_space<vmem>>, vector<1x128x256xbf16>
    %27 = vector.shape_cast %26 : vector<1x128x256xbf16> to vector<128x256xbf16>
    %cst_18 = arith.constant dense<0.000000e+00> : vector<16x256xf32>
    %28 = tpu.matmul %22, %27, %cst_18 {dimension_numbers = #tpu.dot_dimension_numbers<[1], [0], [0], [1], [0, 0, 1, 1], [], []>} : vector<16x128xbf16>, vector<128x256xbf16>, vector<16x256xf32> -> vector<16x256xf32>
    %29 = vector.extract_strided_slice %25 {offsets = [0, 0], sizes = [16, 128], strides = [1, 1]} : vector<16x384xf32> to vector<16x128xf32>
    %30 = arith.mulf %29, %0 : vector<16x128xf32>
    %31 = vector.extract_strided_slice %28 {offsets = [0, 0], sizes = [16, 128], strides = [1, 1]} : vector<16x256xf32> to vector<16x128xf32>
    %32 = arith.mulf %31, %1 : vector<16x128xf32>
    %33 = arith.addf %30, %32 : vector<16x128xf32>
    %34 = vector.extract_strided_slice %25 {offsets = [0, 128], sizes = [16, 128], strides = [1, 1]} : vector<16x384xf32> to vector<16x128xf32>
    %35 = arith.mulf %34, %0 : vector<16x128xf32>
    %36 = vector.extract_strided_slice %28 {offsets = [0, 128], sizes = [16, 128], strides = [1, 1]} : vector<16x256xf32> to vector<16x128xf32>
    %37 = arith.mulf %36, %1 : vector<16x128xf32>
    %38 = arith.addf %35, %37 : vector<16x128xf32>
    %39 = vector.extract_strided_slice %25 {offsets = [0, 256], sizes = [16, 128], strides = [1, 1]} : vector<16x384xf32> to vector<16x128xf32>
    %40 = vector.shape_cast %33 : vector<16x128xf32> to vector<16x4x32xf32>
    %41 = tpu.transpose %40, [1, 0, 2] : vector<16x4x32xf32> -> vector<4x16x32xf32>
    %42 = arith.truncf %41 : vector<4x16x32xf32> to vector<4x16x32xbf16>
    %43 = vector.shape_cast %38 : vector<16x128xf32> to vector<16x4x32xf32>
    %44 = tpu.transpose %43, [1, 0, 2] : vector<16x4x32xf32> -> vector<4x16x32xf32>
    %45 = arith.truncf %44 : vector<4x16x32xf32> to vector<4x16x32xbf16>
    %46 = vector.shape_cast %39 : vector<16x128xf32> to vector<16x4x32xf32>
    %47 = tpu.transpose %46, [1, 0, 2] : vector<16x4x32xf32> -> vector<4x16x32xf32>
    %48 = arith.truncf %47 : vector<4x16x32xf32> to vector<4x16x32xbf16>
    %cst_19 = arith.constant dense<0.000000e+00> : vector<4x16x16xf32>
    %49 = tpu.matmul %42, %45, %cst_19 {dimension_numbers = #tpu.dot_dimension_numbers<[2], [2], [1], [1], [0, 0, 0, 1, 1, 1], [0], [0]>} : vector<4x16x32xbf16>, vector<4x16x32xbf16>, vector<4x16x16xf32> -> vector<4x16x16xf32>
    %cst_20 = arith.constant 0.176776692 : f32
    %50 = vector.broadcast %cst_20 : f32 to vector<4x16x16xf32>
    %51 = arith.mulf %49, %50 : vector<4x16x16xf32>
    %cst_21 = arith.constant -1.000000e+30 : f32
    %52 = vector.shape_cast %5 : vector<1x16x16xi1> to vector<1x16x16xi1>
    %53 = vector.broadcast %52 : vector<1x16x16xi1> to vector<4x16x16xi1>
    %54 = vector.broadcast %cst_21 : f32 to vector<4x16x16xf32>
    %55 = arith.select %53, %51, %54 : vector<4x16x16xi1>, vector<4x16x16xf32>
    %cst_22 = arith.constant dense<0xFF800000> : vector<4x16xf32>
    %56 = vector.multi_reduction <maximumf>, %55, %cst_22 [2] : vector<4x16x16xf32> to vector<4x16xf32>
    %57 = vector.shape_cast %56 : vector<4x16xf32> to vector<4x16x1xf32>
    %58 = vector.broadcast %57 : vector<4x16x1xf32> to vector<4x16x16xf32>
    %59 = arith.subf %55, %58 : vector<4x16x16xf32>
    %60 = math.exp %59 : vector<4x16x16xf32>
    %cst_23 = arith.constant dense<0.000000e+00> : vector<4x16xf32>
    %61 = vector.multi_reduction <add>, %60, %cst_23 [2] : vector<4x16x16xf32> to vector<4x16xf32>
    %62 = vector.shape_cast %61 : vector<4x16xf32> to vector<4x16x1xf32>
    %63 = vector.broadcast %62 : vector<4x16x1xf32> to vector<4x16x16xf32>
    %64 = arith.divf %60, %63 : vector<4x16x16xf32>
    %65 = arith.truncf %64 : vector<4x16x16xf32> to vector<4x16x16xbf16>
    %cst_24 = arith.constant dense<0.000000e+00> : vector<4x16x32xf32>
    %66 = tpu.matmul %65, %48, %cst_24 {dimension_numbers = #tpu.dot_dimension_numbers<[2], [1], [1], [2], [0, 0, 0, 1, 1, 2], [0], [0]>} : vector<4x16x16xbf16>, vector<4x16x32xbf16>, vector<4x16x32xf32> -> vector<4x16x32xf32>
    %67 = tpu.transpose %66, [1, 0, 2] : vector<4x16x32xf32> -> vector<16x4x32xf32>
    %68 = vector.shape_cast %67 : vector<16x4x32xf32> to vector<16x128xf32>
    %69 = arith.truncf %68 : vector<16x128xf32> to vector<16x128xbf16>
    %c0_25 = arith.constant 0 : index
    %c0_26 = arith.constant 0 : index
    %c0_27 = arith.constant 0 : index
    %70 = vector.load %arg5[%c0_25, %c0_26, %c0_27] : memref<2x128x128xbf16, #tpu.memory_space<vmem>>, vector<1x128x128xbf16>
    %71 = vector.shape_cast %70 : vector<1x128x128xbf16> to vector<128x128xbf16>
    %cst_28 = arith.constant dense<0.000000e+00> : vector<16x128xf32>
    %72 = tpu.matmul %69, %71, %cst_28 {dimension_numbers = #tpu.dot_dimension_numbers<[1], [0], [0], [1], [0, 0, 1, 1], [], []>} : vector<16x128xbf16>, vector<128x128xbf16>, vector<16x128xf32> -> vector<16x128xf32>
    %73 = arith.addf %7, %72 : vector<16x128xf32>
    %c0_29 = arith.constant 0 : index
    %c0_30 = arith.constant 0 : index
    %c0_31 = arith.constant 0 : index
    %74 = vector.load %arg6[%c0_29, %c0_30, %c0_31] : memref<2x1x128xf32, #tpu.memory_space<vmem>>, vector<1x1x128xf32>
    %75 = vector.shape_cast %74 : vector<1x1x128xf32> to vector<1x128xf32>
    %76 = arith.mulf %73, %73 : vector<16x128xf32>
    %cst_32 = arith.constant dense<0.000000e+00> : vector<16xf32>
    %77 = vector.multi_reduction <add>, %76, %cst_32 [1] : vector<16x128xf32> to vector<16xf32>
    %78 = vector.shape_cast %77 : vector<16xf32> to vector<16x1xf32>
    %cst_33 = arith.constant 1.280000e+02 : f32
    %79 = vector.broadcast %cst_33 : f32 to vector<16x1xf32>
    %80 = arith.divf %78, %79 : vector<16x1xf32>
    %cst_34 = arith.constant 9.99999974E-6 : f32
    %81 = vector.broadcast %cst_34 : f32 to vector<16x1xf32>
    %82 = arith.addf %80, %81 : vector<16x1xf32>
    %83 = math.rsqrt %82 : vector<16x1xf32>
    %84 = vector.broadcast %83 : vector<16x1xf32> to vector<16x128xf32>
    %85 = arith.mulf %73, %84 : vector<16x128xf32>
    %86 = vector.broadcast %75 : vector<1x128xf32> to vector<16x128xf32>
    %87 = arith.mulf %85, %86 : vector<16x128xf32>
    %88 = arith.truncf %87 : vector<16x128xf32> to vector<16x128xbf16>
    %c0_35 = arith.constant 0 : index
    %c0_36 = arith.constant 0 : index
    %c0_37 = arith.constant 0 : index
    %89 = vector.load %arg7[%c0_35, %c0_36, %c0_37] : memref<2x128x512xbf16, #tpu.memory_space<vmem>>, vector<1x128x512xbf16>
    %90 = vector.shape_cast %89 : vector<1x128x512xbf16> to vector<128x512xbf16>
    %cst_38 = arith.constant dense<0.000000e+00> : vector<16x512xf32>
    %91 = tpu.matmul %88, %90, %cst_38 {dimension_numbers = #tpu.dot_dimension_numbers<[1], [0], [0], [1], [0, 0, 1, 1], [], []>} : vector<16x128xbf16>, vector<128x512xbf16>, vector<16x512xf32> -> vector<16x512xf32>
    %92 = vector.extract_strided_slice %91 {offsets = [0, 0], sizes = [16, 256], strides = [1, 1]} : vector<16x512xf32> to vector<16x256xf32>
    %93 = vector.extract_strided_slice %91 {offsets = [0, 256], sizes = [16, 256], strides = [1, 1]} : vector<16x512xf32> to vector<16x256xf32>
    %94 = arith.negf %92 : vector<16x256xf32>
    %95 = math.exp %94 : vector<16x256xf32>
    %cst_39 = arith.constant 1.000000e+00 : f32
    %96 = vector.broadcast %cst_39 : f32 to vector<16x256xf32>
    %97 = arith.addf %96, %95 : vector<16x256xf32>
    %98 = arith.divf %96, %97 : vector<16x256xf32>
    %99 = arith.mulf %92, %98 : vector<16x256xf32>
    %100 = arith.mulf %99, %93 : vector<16x256xf32>
    %101 = arith.truncf %100 : vector<16x256xf32> to vector<16x256xbf16>
    %c0_40 = arith.constant 0 : index
    %c0_41 = arith.constant 0 : index
    %c0_42 = arith.constant 0 : index
    %102 = vector.load %arg8[%c0_40, %c0_41, %c0_42] : memref<2x256x128xbf16, #tpu.memory_space<vmem>>, vector<1x256x128xbf16>
    %103 = vector.shape_cast %102 : vector<1x256x128xbf16> to vector<256x128xbf16>
    %cst_43 = arith.constant dense<0.000000e+00> : vector<16x128xf32>
    %104 = tpu.matmul %101, %103, %cst_43 {dimension_numbers = #tpu.dot_dimension_numbers<[1], [0], [0], [1], [0, 0, 1, 1], [], []>} : vector<16x256xbf16>, vector<256x128xbf16>, vector<16x128xf32> -> vector<16x128xf32>
    %105 = arith.addf %73, %104 : vector<16x128xf32>
    %c0_44 = arith.constant 0 : index
    %c0_45 = arith.constant 0 : index
    %c0_46 = arith.constant 0 : index
    %c0_47 = arith.constant 0 : index
    %106 = vector.load %arg13[%c0_44, %c0_45, %c0_46, %c0_47] : memref<2x1x16x128xf32, #tpu.memory_space<vmem>>, vector<1x1x16x128xf32>
    %107 = vector.shape_cast %106 : vector<1x1x16x128xf32> to vector<16x128xf32>
    %108 = vector.shape_cast %105 : vector<16x128xf32> to vector<1x1x16x128xf32>
    tpu.vector_store %arg13[%c0_44, %c0_45, %c0_46, %c0_47], %108 {strides = array<i32>} : memref<2x1x16x128xf32, #tpu.memory_space<vmem>>, vector<1x1x16x128xf32>,
    %c1 = arith.constant 1 : index
    %c0_48 = arith.constant 0 : index
    %c0_49 = arith.constant 0 : index
    %109 = vector.load %arg2[%c1, %c0_48, %c0_49] : memref<2x1x128xf32, #tpu.memory_space<vmem>>, vector<1x1x128xf32>
    %110 = vector.shape_cast %109 : vector<1x1x128xf32> to vector<1x128xf32>
    %111 = arith.mulf %105, %105 : vector<16x128xf32>
    %cst_50 = arith.constant dense<0.000000e+00> : vector<16xf32>
    %112 = vector.multi_reduction <add>, %111, %cst_50 [1] : vector<16x128xf32> to vector<16xf32>
    %113 = vector.shape_cast %112 : vector<16xf32> to vector<16x1xf32>
    %cst_51 = arith.constant 1.280000e+02 : f32
    %114 = vector.broadcast %cst_51 : f32 to vector<16x1xf32>
    %115 = arith.divf %113, %114 : vector<16x1xf32>
    %cst_52 = arith.constant 9.99999974E-6 : f32
    %116 = vector.broadcast %cst_52 : f32 to vector<16x1xf32>
    %117 = arith.addf %115, %116 : vector<16x1xf32>
    %118 = math.rsqrt %117 : vector<16x1xf32>
    %119 = vector.broadcast %118 : vector<16x1xf32> to vector<16x128xf32>
    %120 = arith.mulf %105, %119 : vector<16x128xf32>
    %121 = vector.broadcast %110 : vector<1x128xf32> to vector<16x128xf32>
    %122 = arith.mulf %120, %121 : vector<16x128xf32>
    %123 = arith.truncf %122 : vector<16x128xf32> to vector<16x128xbf16>
    %c1_53 = arith.constant 1 : index
    %c0_54 = arith.constant 0 : index
    %c0_55 = arith.constant 0 : index
    %124 = vector.load %arg3[%c1_53, %c0_54, %c0_55] : memref<2x128x384xbf16, #tpu.memory_space<vmem>>, vector<1x128x384xbf16>
    %125 = vector.shape_cast %124 : vector<1x128x384xbf16> to vector<128x384xbf16>
    %cst_56 = arith.constant dense<0.000000e+00> : vector<16x384xf32>
    %126 = tpu.matmul %123, %125, %cst_56 {dimension_numbers = #tpu.dot_dimension_numbers<[1], [0], [0], [1], [0, 0, 1, 1], [], []>} : vector<16x128xbf16>, vector<128x384xbf16>, vector<16x384xf32> -> vector<16x384xf32>
    %c1_57 = arith.constant 1 : index
    %c0_58 = arith.constant 0 : index
    %c0_59 = arith.constant 0 : index
    %127 = vector.load %arg4[%c1_57, %c0_58, %c0_59] : memref<2x128x256xbf16, #tpu.memory_space<vmem>>, vector<1x128x256xbf16>
    %128 = vector.shape_cast %127 : vector<1x128x256xbf16> to vector<128x256xbf16>
    %cst_60 = arith.constant dense<0.000000e+00> : vector<16x256xf32>
    %129 = tpu.matmul %123, %128, %cst_60 {dimension_numbers = #tpu.dot_dimension_numbers<[1], [0], [0], [1], [0, 0, 1, 1], [], []>} : vector<16x128xbf16>, vector<128x256xbf16>, vector<16x256xf32> -> vector<16x256xf32>
    %130 = vector.extract_strided_slice %126 {offsets = [0, 0], sizes = [16, 128], strides = [1, 1]} : vector<16x384xf32> to vector<16x128xf32>
    %131 = arith.mulf %130, %0 : vector<16x128xf32>
    %132 = vector.extract_strided_slice %129 {offsets = [0, 0], sizes = [16, 128], strides = [1, 1]} : vector<16x256xf32> to vector<16x128xf32>
    %133 = arith.mulf %132, %1 : vector<16x128xf32>
    %134 = arith.addf %131, %133 : vector<16x128xf32>
    %135 = vector.extract_strided_slice %126 {offsets = [0, 128], sizes = [16, 128], strides = [1, 1]} : vector<16x384xf32> to vector<16x128xf32>
    %136 = arith.mulf %135, %0 : vector<16x128xf32>
    %137 = vector.extract_strided_slice %129 {offsets = [0, 128], sizes = [16, 128], strides = [1, 1]} : vector<16x256xf32> to vector<16x128xf32>
    %138 = arith.mulf %137, %1 : vector<16x128xf32>
    %139 = arith.addf %136, %138 : vector<16x128xf32>
    %140 = vector.extract_strided_slice %126 {offsets = [0, 256], sizes = [16, 128], strides = [1, 1]} : vector<16x384xf32> to vector<16x128xf32>
    %141 = vector.shape_cast %134 : vector<16x128xf32> to vector<16x4x32xf32>
    %142 = tpu.transpose %141, [1, 0, 2] : vector<16x4x32xf32> -> vector<4x16x32xf32>
    %143 = arith.truncf %142 : vector<4x16x32xf32> to vector<4x16x32xbf16>
    %144 = vector.shape_cast %139 : vector<16x128xf32> to vector<16x4x32xf32>
    %145 = tpu.transpose %144, [1, 0, 2] : vector<16x4x32xf32> -> vector<4x16x32xf32>
    %146 = arith.truncf %145 : vector<4x16x32xf32> to vector<4x16x32xbf16>
    %147 = vector.shape_cast %140 : vector<16x128xf32> to vector<16x4x32xf32>
    %148 = tpu.transpose %147, [1, 0, 2] : vector<16x4x32xf32> -> vector<4x16x32xf32>
    %149 = arith.truncf %148 : vector<4x16x32xf32> to vector<4x16x32xbf16>
    %cst_61 = arith.constant dense<0.000000e+00> : vector<4x16x16xf32>
    %150 = tpu.matmul %143, %146, %cst_61 {dimension_numbers = #tpu.dot_dimension_numbers<[2], [2], [1], [1], [0, 0, 0, 1, 1, 1], [0], [0]>} : vector<4x16x32xbf16>, vector<4x16x32xbf16>, vector<4x16x16xf32> -> vector<4x16x16xf32>
    %cst_62 = arith.constant 0.176776692 : f32
    %151 = vector.broadcast %cst_62 : f32 to vector<4x16x16xf32>
    %152 = arith.mulf %150, %151 : vector<4x16x16xf32>
    %cst_63 = arith.constant -1.000000e+30 : f32
    %153 = vector.shape_cast %5 : vector<1x16x16xi1> to vector<1x16x16xi1>
    %154 = vector.broadcast %153 : vector<1x16x16xi1> to vector<4x16x16xi1>
    %155 = vector.broadcast %cst_63 : f32 to vector<4x16x16xf32>
    %156 = arith.select %154, %152, %155 : vector<4x16x16xi1>, vector<4x16x16xf32>
    %cst_64 = arith.constant dense<0xFF800000> : vector<4x16xf32>
    %157 = vector.multi_reduction <maximumf>, %156, %cst_64 [2] : vector<4x16x16xf32> to vector<4x16xf32>
    %158 = vector.shape_cast %157 : vector<4x16xf32> to vector<4x16x1xf32>
    %159 = vector.broadcast %158 : vector<4x16x1xf32> to vector<4x16x16xf32>
    %160 = arith.subf %156, %159 : vector<4x16x16xf32>
    %161 = math.exp %160 : vector<4x16x16xf32>
    %cst_65 = arith.constant dense<0.000000e+00> : vector<4x16xf32>
    %162 = vector.multi_reduction <add>, %161, %cst_65 [2] : vector<4x16x16xf32> to vector<4x16xf32>
    %163 = vector.shape_cast %162 : vector<4x16xf32> to vector<4x16x1xf32>
    %164 = vector.broadcast %163 : vector<4x16x1xf32> to vector<4x16x16xf32>
    %165 = arith.divf %161, %164 : vector<4x16x16xf32>
    %166 = arith.truncf %165 : vector<4x16x16xf32> to vector<4x16x16xbf16>
    %cst_66 = arith.constant dense<0.000000e+00> : vector<4x16x32xf32>
    %167 = tpu.matmul %166, %149, %cst_66 {dimension_numbers = #tpu.dot_dimension_numbers<[2], [1], [1], [2], [0, 0, 0, 1, 1, 2], [0], [0]>} : vector<4x16x16xbf16>, vector<4x16x32xbf16>, vector<4x16x32xf32> -> vector<4x16x32xf32>
    %168 = tpu.transpose %167, [1, 0, 2] : vector<4x16x32xf32> -> vector<16x4x32xf32>
    %169 = vector.shape_cast %168 : vector<16x4x32xf32> to vector<16x128xf32>
    %170 = arith.truncf %169 : vector<16x128xf32> to vector<16x128xbf16>
    %c1_67 = arith.constant 1 : index
    %c0_68 = arith.constant 0 : index
    %c0_69 = arith.constant 0 : index
    %171 = vector.load %arg5[%c1_67, %c0_68, %c0_69] : memref<2x128x128xbf16, #tpu.memory_space<vmem>>, vector<1x128x128xbf16>
    %172 = vector.shape_cast %171 : vector<1x128x128xbf16> to vector<128x128xbf16>
    %cst_70 = arith.constant dense<0.000000e+00> : vector<16x128xf32>
    %173 = tpu.matmul %170, %172, %cst_70 {dimension_numbers = #tpu.dot_dimension_numbers<[1], [0], [0], [1], [0, 0, 1, 1], [], []>} : vector<16x128xbf16>, vector<128x128xbf16>, vector<16x128xf32> -> vector<16x128xf32>
    %174 = arith.addf %105, %173 : vector<16x128xf32>
    %c1_71 = arith.constant 1 : index
    %c0_72 = arith.constant 0 : index
    %c0_73 = arith.constant 0 : index
    %175 = vector.load %arg6[%c1_71, %c0_72, %c0_73] : memref<2x1x128xf32, #tpu.memory_space<vmem>>, vector<1x1x128xf32>
    %176 = vector.shape_cast %175 : vector<1x1x128xf32> to vector<1x128xf32>
    %177 = arith.mulf %174, %174 : vector<16x128xf32>
    %cst_74 = arith.constant dense<0.000000e+00> : vector<16xf32>
    %178 = vector.multi_reduction <add>, %177, %cst_74 [1] : vector<16x128xf32> to vector<16xf32>
    %179 = vector.shape_cast %178 : vector<16xf32> to vector<16x1xf32>
    %cst_75 = arith.constant 1.280000e+02 : f32
    %180 = vector.broadcast %cst_75 : f32 to vector<16x1xf32>
    %181 = arith.divf %179, %180 : vector<16x1xf32>
    %cst_76 = arith.constant 9.99999974E-6 : f32
    %182 = vector.broadcast %cst_76 : f32 to vector<16x1xf32>
    %183 = arith.addf %181, %182 : vector<16x1xf32>
    %184 = math.rsqrt %183 : vector<16x1xf32>
    %185 = vector.broadcast %184 : vector<16x1xf32> to vector<16x128xf32>
    %186 = arith.mulf %174, %185 : vector<16x128xf32>
    %187 = vector.broadcast %176 : vector<1x128xf32> to vector<16x128xf32>
    %188 = arith.mulf %186, %187 : vector<16x128xf32>
    %189 = arith.truncf %188 : vector<16x128xf32> to vector<16x128xbf16>
    %c1_77 = arith.constant 1 : index
    %c0_78 = arith.constant 0 : index
    %c0_79 = arith.constant 0 : index
    %190 = vector.load %arg7[%c1_77, %c0_78, %c0_79] : memref<2x128x512xbf16, #tpu.memory_space<vmem>>, vector<1x128x512xbf16>
    %191 = vector.shape_cast %190 : vector<1x128x512xbf16> to vector<128x512xbf16>
    %cst_80 = arith.constant dense<0.000000e+00> : vector<16x512xf32>
    %192 = tpu.matmul %189, %191, %cst_80 {dimension_numbers = #tpu.dot_dimension_numbers<[1], [0], [0], [1], [0, 0, 1, 1], [], []>} : vector<16x128xbf16>, vector<128x512xbf16>, vector<16x512xf32> -> vector<16x512xf32>
    %193 = vector.extract_strided_slice %192 {offsets = [0, 0], sizes = [16, 256], strides = [1, 1]} : vector<16x512xf32> to vector<16x256xf32>
    %194 = vector.extract_strided_slice %192 {offsets = [0, 256], sizes = [16, 256], strides = [1, 1]} : vector<16x512xf32> to vector<16x256xf32>
    %195 = arith.negf %193 : vector<16x256xf32>
    %196 = math.exp %195 : vector<16x256xf32>
    %cst_81 = arith.constant 1.000000e+00 : f32
    %197 = vector.broadcast %cst_81 : f32 to vector<16x256xf32>
    %198 = arith.addf %197, %196 : vector<16x256xf32>
    %199 = arith.divf %197, %198 : vector<16x256xf32>
    %200 = arith.mulf %193, %199 : vector<16x256xf32>
    %201 = arith.mulf %200, %194 : vector<16x256xf32>
    %202 = arith.truncf %201 : vector<16x256xf32> to vector<16x256xbf16>
    %c1_82 = arith.constant 1 : index
    %c0_83 = arith.constant 0 : index
    %c0_84 = arith.constant 0 : index
    %203 = vector.load %arg8[%c1_82, %c0_83, %c0_84] : memref<2x256x128xbf16, #tpu.memory_space<vmem>>, vector<1x256x128xbf16>
    %204 = vector.shape_cast %203 : vector<1x256x128xbf16> to vector<256x128xbf16>
    %cst_85 = arith.constant dense<0.000000e+00> : vector<16x128xf32>
    %205 = tpu.matmul %202, %204, %cst_85 {dimension_numbers = #tpu.dot_dimension_numbers<[1], [0], [0], [1], [0, 0, 1, 1], [], []>} : vector<16x256xbf16>, vector<256x128xbf16>, vector<16x128xf32> -> vector<16x128xf32>
    %206 = arith.addf %174, %205 : vector<16x128xf32>
    %c1_86 = arith.constant 1 : index
    %c0_87 = arith.constant 0 : index
    %c0_88 = arith.constant 0 : index
    %c0_89 = arith.constant 0 : index
    %207 = vector.load %arg13[%c1_86, %c0_87, %c0_88, %c0_89] : memref<2x1x16x128xf32, #tpu.memory_space<vmem>>, vector<1x1x16x128xf32>
    %208 = vector.shape_cast %207 : vector<1x1x16x128xf32> to vector<16x128xf32>
    %209 = vector.shape_cast %206 : vector<16x128xf32> to vector<1x1x16x128xf32>
    tpu.vector_store %arg13[%c1_86, %c0_87, %c0_88, %c0_89], %209 {strides = array<i32>} : memref<2x1x16x128xf32, #tpu.memory_space<vmem>>, vector<1x1x16x128xf32>,
    %c0_90 = arith.constant 0 : index
    %c0_91 = arith.constant 0 : index
    %210 = vector.load %arg11[%c0_90, %c0_91] : memref<1x128xf32, #tpu.memory_space<vmem>>, vector<1x128xf32>
    %211 = arith.mulf %206, %206 : vector<16x128xf32>
    %cst_92 = arith.constant dense<0.000000e+00> : vector<16xf32>
    %212 = vector.multi_reduction <add>, %211, %cst_92 [1] : vector<16x128xf32> to vector<16xf32>
    %213 = vector.shape_cast %212 : vector<16xf32> to vector<16x1xf32>
    %cst_93 = arith.constant 1.280000e+02 : f32
    %214 = vector.broadcast %cst_93 : f32 to vector<16x1xf32>
    %215 = arith.divf %213, %214 : vector<16x1xf32>
    %cst_94 = arith.constant 9.99999974E-6 : f32
    %216 = vector.broadcast %cst_94 : f32 to vector<16x1xf32>
    %217 = arith.addf %215, %216 : vector<16x1xf32>
    %218 = math.rsqrt %217 : vector<16x1xf32>
    %219 = vector.broadcast %218 : vector<16x1xf32> to vector<16x128xf32>
    %220 = arith.mulf %206, %219 : vector<16x128xf32>
    %221 = vector.broadcast %210 : vector<1x128xf32> to vector<16x128xf32>
    %222 = arith.mulf %220, %221 : vector<16x128xf32>
    %c0_95 = arith.constant 0 : index
    %c0_96 = arith.constant 0 : index
    %c0_97 = arith.constant 0 : index
    %223 = vector.load %arg12[%c0_95, %c0_96, %c0_97] : memref<1x16x128xf32, #tpu.memory_space<vmem>>, vector<1x16x128xf32>
    %224 = vector.shape_cast %223 : vector<1x16x128xf32> to vector<16x128xf32>
    %225 = vector.shape_cast %222 : vector<16x128xf32> to vector<1x16x128xf32>
    tpu.vector_store %arg12[%c0_95, %c0_96, %c0_97], %225 {strides = array<i32>} : memref<1x16x128xf32, #tpu.memory_space<vmem>>, vector<1x16x128xf32>,
    return
  }
  func.func @transform_0(%arg0: i32) -> (i32, i32, i32) {
    %c0_i32 = arith.constant 0 : i32
    %c0_i32_0 = arith.constant 0 : i32
    %c0_i32_1 = arith.constant 0 : i32
    return %arg0, %c0_i32, %c0_i32_0 : i32, i32, i32
  }
  func.func @transform_1(%arg0: i32) -> (i32, i32, i32) {
    %c0_i32 = arith.constant 0 : i32
    %c0_i32_0 = arith.constant 0 : i32
    %c0_i32_1 = arith.constant 0 : i32
    %c0_i32_2 = arith.constant 0 : i32
    return %c0_i32, %c0_i32_0, %c0_i32_1 : i32, i32, i32
  }
  func.func @transform_2(%arg0: i32) -> (i32, i32, i32) {
    %c0_i32 = arith.constant 0 : i32
    %c0_i32_0 = arith.constant 0 : i32
    %c0_i32_1 = arith.constant 0 : i32
    %c0_i32_2 = arith.constant 0 : i32
    return %c0_i32, %c0_i32_0, %c0_i32_1 : i32, i32, i32
  }
  func.func @transform_3(%arg0: i32) -> (i32, i32, i32) {
    %c0_i32 = arith.constant 0 : i32
    %c0_i32_0 = arith.constant 0 : i32
    %c0_i32_1 = arith.constant 0 : i32
    %c0_i32_2 = arith.constant 0 : i32
    return %c0_i32, %c0_i32_0, %c0_i32_1 : i32, i32, i32
  }
  func.func @transform_4(%arg0: i32) -> (i32, i32, i32) {
    %c0_i32 = arith.constant 0 : i32
    %c0_i32_0 = arith.constant 0 : i32
    %c0_i32_1 = arith.constant 0 : i32
    %c0_i32_2 = arith.constant 0 : i32
    return %c0_i32, %c0_i32_0, %c0_i32_1 : i32, i32, i32
  }
  func.func @transform_5(%arg0: i32) -> (i32, i32, i32) {
    %c0_i32 = arith.constant 0 : i32
    %c0_i32_0 = arith.constant 0 : i32
    %c0_i32_1 = arith.constant 0 : i32
    %c0_i32_2 = arith.constant 0 : i32
    return %c0_i32, %c0_i32_0, %c0_i32_1 : i32, i32, i32
  }
  func.func @transform_6(%arg0: i32) -> (i32, i32, i32) {
    %c0_i32 = arith.constant 0 : i32
    %c0_i32_0 = arith.constant 0 : i32
    %c0_i32_1 = arith.constant 0 : i32
    %c0_i32_2 = arith.constant 0 : i32
    return %c0_i32, %c0_i32_0, %c0_i32_1 : i32, i32, i32
  }
  func.func @transform_7(%arg0: i32) -> (i32, i32, i32) {
    %c0_i32 = arith.constant 0 : i32
    %c0_i32_0 = arith.constant 0 : i32
    %c0_i32_1 = arith.constant 0 : i32
    %c0_i32_2 = arith.constant 0 : i32
    return %c0_i32, %c0_i32_0, %c0_i32_1 : i32, i32, i32
  }
  func.func @transform_8(%arg0: i32) -> (i32, i32) {
    %c0_i32 = arith.constant 0 : i32
    %c0_i32_0 = arith.constant 0 : i32
    %c0_i32_1 = arith.constant 0 : i32
    return %c0_i32, %c0_i32_0 : i32, i32
  }
  func.func @transform_9(%arg0: i32) -> (i32, i32) {
    %c0_i32 = arith.constant 0 : i32
    %c0_i32_0 = arith.constant 0 : i32
    %c0_i32_1 = arith.constant 0 : i32
    return %c0_i32, %c0_i32_0 : i32, i32
  }
  func.func @transform_10(%arg0: i32) -> (i32, i32) {
    %c0_i32 = arith.constant 0 : i32
    %c0_i32_0 = arith.constant 0 : i32
    %c0_i32_1 = arith.constant 0 : i32
    return %c0_i32, %c0_i32_0 : i32, i32
  }
  func.func @transform_11(%arg0: i32) -> (i32, i32, i32) {
    %c0_i32 = arith.constant 0 : i32
    %c0_i32_0 = arith.constant 0 : i32
    %c0_i32_1 = arith.constant 0 : i32
    return %arg0, %c0_i32, %c0_i32_0 : i32, i32, i32
  }
  func.func @transform_12(%arg0: i32) -> (i32, i32, i32, i32) {
    %c0_i32 = arith.constant 0 : i32
    %c0_i32_0 = arith.constant 0 : i32
    %c0_i32_1 = arith.constant 0 : i32
    %c0_i32_2 = arith.constant 0 : i32
    return %c0_i32, %arg0, %c0_i32_0, %c0_i32_1 : i32, i32, i32, i32
  }
}

</mosaic_0001>

<llo_original>
// kernel: tpu_custom_call.1
$region0: #{tpu_custom_call.1}
  #allocation0 [shape = 'u32[]', space=smem, size = 0x4, offset = 0x4, fixed_abs, tag = 'smem constant byte address 0x4 - core index']
  #allocation1 [shape = 'u32[144,128]{1,0:T(1,128)}', space=vmem, size = 0x12000, scoped, tag = 'internal scratch']
  #allocation17 [shape = 's32[]', space=sflag, size = 0x4, offset = 0, fixed_abs, tag = 'sflag constant byte address 0x0 - dummy sync flag']
  %s0 = inlined_call_operand.hbm [shape: f32[2,16,128], index: 0, kind: input, shape index: {}]
  %s1 = inlined_call_operand.vmem [shape: f32[2,1,128], index: 1, kind: input, shape index: {}]
  %s2 = inlined_call_operand.hbm [shape: bf16[2,128,384], index: 2, kind: input, shape index: {}]
  %s3 = inlined_call_operand.hbm [shape: bf16[2,128,256], index: 3, kind: input, shape index: {}]
  %s4 = inlined_call_operand.hbm [shape: bf16[2,128,128], index: 4, kind: input, shape index: {}]
  %s5 = inlined_call_operand.hbm [shape: f32[2,1,128], index: 5, kind: input, shape index: {}]
  %s6 = inlined_call_operand.hbm [shape: bf16[2,128,512], index: 6, kind: input, shape index: {}]
  %s7 = inlined_call_operand.hbm [shape: bf16[2,256,128], index: 7, kind: input, shape index: {}]
  %s8 = inlined_call_operand.vmem [shape: f32[16,128], index: 8, kind: input, shape index: {}]
  %s9 = inlined_call_operand.vmem [shape: f32[16,128], index: 9, kind: input, shape index: {}]
  %s10 = inlined_call_operand.vmem [shape: f32[1,128], index: 10, kind: input, shape index: {}]
  %s11 = inlined_call_operand.hbm [shape: f32[2,16,128], index: 11, kind: output, shape index: {0}]
  %s12 = inlined_call_operand.hbm [shape: f32[2,2,16,128], index: 12, kind: output, shape index: {1}]
  %13 = xla_tuple %s11, %s12
  %s14 = sld [smem:[#allocation0]]
  $region113: #{tpu_custom_call.1} parent=0
    _
  %s16 = ssub.s32 1, %s14
  %s17 = scalar_select 0, %s16, %s14
  $region1: #{tpu_custom_call.1} parent=0
    #allocation2 [shape = 'u8[16384]{0}', space=vmem, size = 0x4000, scoped, tag = 'input window, operand 0']
    #allocation3 [shape = 's32[2]{0}', space=sflag, size = 0x8, scoped, tag = 'scoped memory for tpu_custom_call.1']
    #allocation4 [shape = 's32[2]{0}', space=sflag, size = 0x8, scoped, tag = 'scoped memory for tpu_custom_call.1']
    #allocation5 [shape = 'u8[196608]{0}', space=vmem, size = 0x30000, scoped, tag = 'input window, operand 2, single buffered']
    #allocation6 [shape = 's32[1]{0}', space=sflag, size = 0x4, scoped, tag = 'scoped memory for tpu_custom_call.1']
    #allocation7 [shape = 'u8[131072]{0}', space=vmem, size = 0x20000, scoped, tag = 'input window, operand 3, single buffered']
    #allocation8 [shape = 'u8[65536]{0}', space=vmem, size = 0x10000, scoped, tag = 'input window, operand 4, single buffered']
    #allocation9 [shape = 's32[1]{0}', space=sflag, size = 0x4, scoped, tag = 'scoped memory for tpu_custom_call.1']
    #allocation10 [shape = 'u8[1024]{0}', space=vmem, size = 0x400, scoped, tag = 'input window, operand 5, single buffered']
    #allocation11 [shape = 'u8[262144]{0}', space=vmem, size = 0x40000, scoped, tag = 'input window, operand 6, single buffered']
    #allocation12 [shape = 's32[1]{0}', space=sflag, size = 0x4, scoped, tag = 'scoped memory for tpu_custom_call.1']
    #allocation13 [shape = 'u8[131072]{0}', space=vmem, size = 0x20000, scoped, tag = 'input window, operand 7, single buffered']
    #allocation14 [shape = 'u8[16384]{0}', space=vmem, size = 0x4000, scoped, tag = 'output window, operand 0']
    #allocation15 [shape = 'u8[32768]{0}', space=vmem, size = 0x8000, scoped, tag = 'output window, operand 1']
    #allocation16 [shape = 's32[2]{0}', space=sflag, size = 0x8, scoped, tag = 'scoped memory for tpu_custom_call.1']
    %18 = vsyncpa [#allocation3], 0
    %s19 = scalar_lea.sflag [#allocation3], 1
    %20 = vsyncpa %s19, 0
    %21 = vsyncpa [#allocation6], 0
    %22 = vsyncpa [#allocation9], 0
    %23 = vsyncpa [#allocation12], 0
    %24 = vsyncpa [#allocation4], 0
    %s25 = scalar_lea.sflag [#allocation4], 1
    %26 = vsyncpa %s25, 0
    %27 = vsyncpa [#allocation16], 0
    %s28 = scalar_lea.sflag [#allocation16], 1
    %29 = vsyncpa %s28, 0
    loop: start=0, step=1, limit=4
    $region2: #{tpu_custom_call.1} parent=1 // loop_pre_header
      _
    $region3: #{tpu_custom_call.1} parent=1 // loop_header
      %s31 = sphi 0, %s35
      %p32 = scmp.ge.s32.totalorder %s31, 4
      %s41 = sphi 0, %s43
      %s44 = sphi 0, %s41
      %s45 = sphi 0, %s44
      %s61 = sphi 0, %s45
      %s65 = sphi 0, %s65
      %s67 = sphi 0, %s65
      %s68 = sphi 0, %s67
      %s82 = sphi 0, %s68
      %s86 = sphi 0, %s86
      %s88 = sphi 0, %s86
      %s89 = sphi 0, %s88
      %s103 = sphi 0, %s89
      %s107 = sphi 0, %s107
      %s109 = sphi 0, %s107
      %s110 = sphi 0, %s109
      %s124 = sphi 0, %s110
      %s128 = sphi 0, %s128
      %s130 = sphi 0, %s128
      %s131 = sphi 0, %s130
      %s145 = sphi 0, %s131
      %s149 = sphi 0, %s149
      %s151 = sphi 0, %s149
      %s152 = sphi 0, %s151
      %s166 = sphi 0, %s152
      %s170 = sphi 0, %s170
      %s172 = sphi 0, %s170
      %s173 = sphi 0, %s172
      %s187 = sphi 0, %s173
      %s191 = sphi 0, %s191
      %s193 = sphi 0, %s191
      %s194 = sphi 0, %s193
      %s208 = sphi 0, %s194
      %s212 = sphi 0, %s212
      %s214 = sphi 0, %s212
      %s215 = sphi 0, %s214
      %s229 = sphi 0, %s215
      %s233 = sphi 0, %s233
      %s235 = sphi 0, %s233
      %s236 = sphi 0, %s235
      %s250 = sphi 0, %s236
      %s254 = sphi 0, %s254
      %s256 = sphi 0, %s254
      %s257 = sphi 0, %s256
      %s271 = sphi 0, %s257
      %s277 = sphi 0, %s279
      %s280 = sphi 0, %s277
      %s281 = sphi 0, %s280
      %s297 = sphi 0, %s281
      %s303 = sphi 0, %s305
      %s306 = sphi 0, %s303
      %s307 = sphi 0, %s306
      %s323 = sphi 0, %s307
    $region4: #{tpu_custom_call.1} parent=1 // loop_header_branch
      %34 = sbr.rel (%p32) target = $region8
    $region5: #{tpu_custom_call.1} parent=1 // loop_body
      %s36 = ssub.s32 %s31, 1
      %s37 = ssub.s32 %s31, 2
      %s38 = sadd.s32 %s31, 1
      %s39 = ssub.s32 %s31, %s38
      %p40 = scmp.eq.s32.totalorder %s39, 0
      %s42 = sadd.s32 %s41, 1
      %s43 = scalar_select %p40, %s41, %s42
      %p46 = pneg %p40
      %p47 = scmp.eq.s32.totalorder %s31, 1
      %p48 = por %p46, %p47
      %p49 = scmp.ne.s32.totalorder %s41, %s44
      %p50 = scmp.eq.s32.totalorder %s31, 0
      %p51 = por %p49, %p50
      %p52 = scmp.ne.s32.totalorder %s41, %s44
      %p53 = scmp.eq.s32.totalorder %s36, 1
      %p54 = por %p52, %p53
      %p55 = scmp.ne.s32.totalorder %s44, %s45
      %p56 = scmp.eq.s32.totalorder %s36, 0
      %p57 = por %p55, %p56
      %p58 = scmp.ne.s32.totalorder %s44, %s45
      %p59 = scmp.eq.s32.totalorder %s37, 1
      %p60 = por %p58, %p59
      %p62 = scmp.ne.s32.totalorder %s45, %s61
      %p63 = scmp.eq.s32.totalorder %s37, 0
      %p64 = por %p62, %p63
      %s66 = sadd.s32 %s65, 1
      %p69 = scmp.eq.s32.totalorder %s31, 1
      %p70 = scmp.ne.s32.totalorder %s65, %s67
      %p71 = scmp.eq.s32.totalorder %s31, 0
      %p72 = por %p70, %p71
      %p73 = scmp.ne.s32.totalorder %s65, %s67
      %p74 = scmp.eq.s32.totalorder %s36, 1
      %p75 = por %p73, %p74
      %p76 = scmp.ne.s32.totalorder %s67, %s68
      %p77 = scmp.eq.s32.totalorder %s36, 0
      %p78 = por %p76, %p77
      %p79 = scmp.ne.s32.totalorder %s67, %s68
      %p80 = scmp.eq.s32.totalorder %s37, 1
      %p81 = por %p79, %p80
      %p83 = scmp.ne.s32.totalorder %s68, %s82
      %p84 = scmp.eq.s32.totalorder %s37, 0
      %p85 = por %p83, %p84
      %s87 = sadd.s32 %s86, 1
      %p90 = scmp.eq.s32.totalorder %s31, 1
      %p91 = scmp.ne.s32.totalorder %s86, %s88
      %p92 = scmp.eq.s32.totalorder %s31, 0
      %p93 = por %p91, %p92
      %p94 = scmp.ne.s32.totalorder %s86, %s88
      %p95 = scmp.eq.s32.totalorder %s36, 1
      %p96 = por %p94, %p95
      %p97 = scmp.ne.s32.totalorder %s88, %s89
      %p98 = scmp.eq.s32.totalorder %s36, 0
      %p99 = por %p97, %p98
      %p100 = scmp.ne.s32.totalorder %s88, %s89
      %p101 = scmp.eq.s32.totalorder %s37, 1
      %p102 = por %p100, %p101
      %p104 = scmp.ne.s32.totalorder %s89, %s103
      %p105 = scmp.eq.s32.totalorder %s37, 0
      %p106 = por %p104, %p105
      %s108 = sadd.s32 %s107, 1
      %p111 = scmp.eq.s32.totalorder %s31, 1
      %p112 = scmp.ne.s32.totalorder %s107, %s109
      %p113 = scmp.eq.s32.totalorder %s31, 0
      %p114 = por %p112, %p113
      %p115 = scmp.ne.s32.totalorder %s107, %s109
      %p116 = scmp.eq.s32.totalorder %s36, 1
      %p117 = por %p115, %p116
      %p118 = scmp.ne.s32.totalorder %s109, %s110
      %p119 = scmp.eq.s32.totalorder %s36, 0
      %p120 = por %p118, %p119
      %p121 = scmp.ne.s32.totalorder %s109, %s110
      %p122 = scmp.eq.s32.totalorder %s37, 1
      %p123 = por %p121, %p122
      %p125 = scmp.ne.s32.totalorder %s110, %s124
      %p126 = scmp.eq.s32.totalorder %s37, 0
      %p127 = por %p125, %p126
      %s129 = sadd.s32 %s128, 1
      %p132 = scmp.eq.s32.totalorder %s31, 1
      %p133 = scmp.ne.s32.totalorder %s128, %s130
      %p134 = scmp.eq.s32.totalorder %s31, 0
      %p135 = por %p133, %p134
      %p136 = scmp.ne.s32.totalorder %s128, %s130
      %p137 = scmp.eq.s32.totalorder %s36, 1
      %p138 = por %p136, %p137
      %p139 = scmp.ne.s32.totalorder %s130, %s131
      %p140 = scmp.eq.s32.totalorder %s36, 0
      %p141 = por %p139, %p140
      %p142 = scmp.ne.s32.totalorder %s130, %s131
      %p143 = scmp.eq.s32.totalorder %s37, 1
      %p144 = por %p142, %p143
      %p146 = scmp.ne.s32.totalorder %s131, %s145
      %p147 = scmp.eq.s32.totalorder %s37, 0
      %p148 = por %p146, %p147
      %s150 = sadd.s32 %s149, 1
      %p153 = scmp.eq.s32.totalorder %s31, 1
      %p154 = scmp.ne.s32.totalorder %s149, %s151
      %p155 = scmp.eq.s32.totalorder %s31, 0
      %p156 = por %p154, %p155
      %p157 = scmp.ne.s32.totalorder %s149, %s151
      %p158 = scmp.eq.s32.totalorder %s36, 1
      %p159 = por %p157, %p158
      %p160 = scmp.ne.s32.totalorder %s151, %s152
      %p161 = scmp.eq.s32.totalorder %s36, 0
      %p162 = por %p160, %p161
      %p163 = scmp.ne.s32.totalorder %s151, %s152
      %p164 = scmp.eq.s32.totalorder %s37, 1
      %p165 = por %p163, %p164
      %p167 = scmp.ne.s32.totalorder %s152, %s166
      %p168 = scmp.eq.s32.totalorder %s37, 0
      %p169 = por %p167, %p168
      %s171 = sadd.s32 %s170, 1
      %p174 = scmp.eq.s32.totalorder %s31, 1
      %p175 = scmp.ne.s32.totalorder %s170, %s172
      %p176 = scmp.eq.s32.totalorder %s31, 0
      %p177 = por %p175, %p176
      %p178 = scmp.ne.s32.totalorder %s170, %s172
      %p179 = scmp.eq.s32.totalorder %s36, 1
      %p180 = por %p178, %p179
      %p181 = scmp.ne.s32.totalorder %s172, %s173
      %p182 = scmp.eq.s32.totalorder %s36, 0
      %p183 = por %p181, %p182
      %p184 = scmp.ne.s32.totalorder %s172, %s173
      %p185 = scmp.eq.s32.totalorder %s37, 1
      %p186 = por %p184, %p185
      %p188 = scmp.ne.s32.totalorder %s173, %s187
      %p189 = scmp.eq.s32.totalorder %s37, 0
      %p190 = por %p188, %p189
      %s192 = sadd.s32 %s191, 1
      %p195 = scmp.eq.s32.totalorder %s31, 1
      %p196 = scmp.ne.s32.totalorder %s191, %s193
      %p197 = scmp.eq.s32.totalorder %s31, 0
      %p198 = por %p196, %p197
      %p199 = scmp.ne.s32.totalorder %s191, %s193
      %p200 = scmp.eq.s32.totalorder %s36, 1
      %p201 = por %p199, %p200
      %p202 = scmp.ne.s32.totalorder %s193, %s194
      %p203 = scmp.eq.s32.totalorder %s36, 0
      %p204 = por %p202, %p203
      %p205 = scmp.ne.s32.totalorder %s193, %s194
      %p206 = scmp.eq.s32.totalorder %s37, 1
      %p207 = por %p205, %p206
      %p209 = scmp.ne.s32.totalorder %s194, %s208
      %p210 = scmp.eq.s32.totalorder %s37, 0
      %p211 = por %p209, %p210
      %s213 = sadd.s32 %s212, 1
      %p216 = scmp.eq.s32.totalorder %s31, 1
      %p217 = scmp.ne.s32.totalorder %s212, %s214
      %p218 = scmp.eq.s32.totalorder %s31, 0
      %p219 = por %p217, %p218
      %p220 = scmp.ne.s32.totalorder %s212, %s214
      %p221 = scmp.eq.s32.totalorder %s36, 1
      %p222 = por %p220, %p221
      %p223 = scmp.ne.s32.totalorder %s214, %s215
      %p224 = scmp.eq.s32.totalorder %s36, 0
      %p225 = por %p223, %p224
      %p226 = scmp.ne.s32.totalorder %s214, %s215
      %p227 = scmp.eq.s32.totalorder %s37, 1
      %p228 = por %p226, %p227
      %p230 = scmp.ne.s32.totalorder %s215, %s229
      %p231 = scmp.eq.s32.totalorder %s37, 0
      %p232 = por %p230, %p231
      %s234 = sadd.s32 %s233, 1
      %p237 = scmp.eq.s32.totalorder %s31, 1
      %p238 = scmp.ne.s32.totalorder %s233, %s235
      %p239 = scmp.eq.s32.totalorder %s31, 0
      %p240 = por %p238, %p239
      %p241 = scmp.ne.s32.totalorder %s233, %s235
      %p242 = scmp.eq.s32.totalorder %s36, 1
      %p243 = por %p241, %p242
      %p244 = scmp.ne.s32.totalorder %s235, %s236
      %p245 = scmp.eq.s32.totalorder %s36, 0
      %p246 = por %p244, %p245
      %p247 = scmp.ne.s32.totalorder %s235, %s236
      %p248 = scmp.eq.s32.totalorder %s37, 1
      %p249 = por %p247, %p248
      %p251 = scmp.ne.s32.totalorder %s236, %s250
      %p252 = scmp.eq.s32.totalorder %s37, 0
      %p253 = por %p251, %p252
      %s255 = sadd.s32 %s254, 1
      %p258 = scmp.eq.s32.totalorder %s31, 1
      %p259 = scmp.ne.s32.totalorder %s254, %s256
      %p260 = scmp.eq.s32.totalorder %s31, 0
      %p261 = por %p259, %p260
      %p262 = scmp.ne.s32.totalorder %s254, %s256
      %p263 = scmp.eq.s32.totalorder %s36, 1
      %p264 = por %p262, %p263
      %p265 = scmp.ne.s32.totalorder %s256, %s257
      %p266 = scmp.eq.s32.totalorder %s36, 0
      %p267 = por %p265, %p266
      %p268 = scmp.ne.s32.totalorder %s256, %s257
      %p269 = scmp.eq.s32.totalorder %s37, 1
      %p270 = por %p268, %p269
      %p272 = scmp.ne.s32.totalorder %s257, %s271
      %p273 = scmp.eq.s32.totalorder %s37, 0
      %p274 = por %p272, %p273
      %s275 = ssub.s32 %s31, %s38
      %p276 = scmp.eq.s32.totalorder %s275, 0
      %s278 = sadd.s32 %s277, 1
      %s279 = scalar_select %p276, %s277, %s278
      %p282 = pneg %p276
      %p283 = scmp.eq.s32.totalorder %s31, 1
      %p284 = por %p282, %p283
      %p285 = scmp.ne.s32.totalorder %s277, %s280
      %p286 = scmp.eq.s32.totalorder %s31, 0
      %p287 = por %p285, %p286
      %p288 = scmp.ne.s32.totalorder %s277, %s280
      %p289 = scmp.eq.s32.totalorder %s36, 1
      %p290 = por %p288, %p289
      %p291 = scmp.ne.s32.totalorder %s280, %s281
      %p292 = scmp.eq.s32.totalorder %s36, 0
      %p293 = por %p291, %p292
      %p294 = scmp.ne.s32.totalorder %s280, %s281
      %p295 = scmp.eq.s32.totalorder %s37, 1
      %p296 = por %p294, %p295
      %p298 = scmp.ne.s32.totalorder %s281, %s297
      %p299 = scmp.eq.s32.totalorder %s37, 0
      %p300 = por %p298, %p299
      %s301 = ssub.s32 %s31, %s38
      %p302 = scmp.eq.s32.totalorder %s301, 0
      %s304 = sadd.s32 %s303, 1
      %s305 = scalar_select %p302, %s303, %s304
      %p308 = pneg %p302
      %p309 = scmp.eq.s32.totalorder %s31, 1
      %p310 = por %p308, %p309
      %p311 = scmp.ne.s32.totalorder %s303, %s306
      %p312 = scmp.eq.s32.totalorder %s31, 0
      %p313 = por %p311, %p312
      %p314 = scmp.ne.s32.totalorder %s303, %s306
      %p315 = scmp.eq.s32.totalorder %s36, 1
      %p316 = por %p314, %p315
      %p317 = scmp.ne.s32.totalorder %s306, %s307
      %p318 = scmp.eq.s32.totalorder %s36, 0
      %p319 = por %p317, %p318
      %p320 = scmp.ne.s32.totalorder %s306, %s307
      %p321 = scmp.eq.s32.totalorder %s37, 1
      %p322 = por %p320, %p321
      %p324 = scmp.ne.s32.totalorder %s307, %s323
      %p325 = scmp.eq.s32.totalorder %s37, 0
      %p326 = por %p324, %p325
      %p327 = scmp.le.s32.totalorder 1, %s31
      %p328 = scmp.lt.s32.totalorder %s31, 3
      %p329 = pnand %p327, %p328
      %p330 = pneg %p329
      // Predicated region
      $region9: #{tpu_custom_call.1} parent=5 // pred_check
        _
      $region10: #{tpu_custom_call.1} parent=5 // pred_check_branch
        %332 = sbr.rel (%p329) target = $region12
      $region11: #{tpu_custom_call.1} parent=5 // pred_region
        %s333 = ssub.s32 %s31, 1
        // Predicated region
        $region13: #{tpu_custom_call.1} parent=11 // pred_check
          %p334 = pneg %p78
        $region14: #{tpu_custom_call.1} parent=11 // pred_check_branch
          %336 = sbr.rel (%p334) target = $region16
        $region15: #{tpu_custom_call.1} parent=11 // pred_region
          _
        $region16: #{tpu_custom_call.1} parent=11 // pred_fallthru
          _
        // Predicated region
        $region17: #{tpu_custom_call.1} parent=11 // pred_check
          %p337 = pneg %p99
        $region18: #{tpu_custom_call.1} parent=11 // pred_check_branch
          %339 = sbr.rel (%p337) target = $region20
        $region19: #{tpu_custom_call.1} parent=11 // pred_region
          %s341 = ssub.s32 6144, 6144
          %342 = vsyncadd [#allocation6], %s341
          %s343 = sshll.u32 [#allocation5], 4
          %s344 = int_to_ptr.vmem [resolvable:$true] %s343
          %349 = dma.hbm_to_vmem [thread:$0]  %s2, 6144, %s344, [#allocation6], 192, 192, 12
        $region20: #{tpu_custom_call.1} parent=11 // pred_fallthru
          _
        // Predicated region
        $region21: #{tpu_custom_call.1} parent=11 // pred_check
          %p350 = pneg %p120
        $region22: #{tpu_custom_call.1} parent=11 // pred_check_branch
          %352 = sbr.rel (%p350) target = $region24
        $region23: #{tpu_custom_call.1} parent=11 // pred_region
          %s354 = ssub.s32 4096, 4096
          %355 = vsyncadd [#allocation6], %s354
          %s356 = sshll.u32 [#allocation7], 4
          %s357 = int_to_ptr.vmem [resolvable:$true] %s356
          %362 = dma.hbm_to_vmem [thread:$0]  %s3, 4096, %s357, [#allocation6], 128, 128, 8
        $region24: #{tpu_custom_call.1} parent=11 // pred_fallthru
          _
        // Predicated region
        $region25: #{tpu_custom_call.1} parent=11 // pred_check
          %p363 = pneg %p141
        $region26: #{tpu_custom_call.1} parent=11 // pred_check_branch
          %365 = sbr.rel (%p363) target = $region28
        $region27: #{tpu_custom_call.1} parent=11 // pred_region
          %s367 = ssub.s32 2048, 2048
          %368 = vsyncadd [#allocation9], %s367
          %s369 = sshll.u32 [#allocation8], 4
          %s370 = int_to_ptr.vmem [resolvable:$true] %s369
          %375 = dma.hbm_to_vmem [thread:$0]  %s4, 2048, %s370, [#allocation9], 64, 64, 4
        $region28: #{tpu_custom_call.1} parent=11 // pred_fallthru
          _
        // Predicated region
        $region29: #{tpu_custom_call.1} parent=11 // pred_check
          %p376 = pneg %p162
        $region30: #{tpu_custom_call.1} parent=11 // pred_check_branch
          %378 = sbr.rel (%p376) target = $region32
        $region31: #{tpu_custom_call.1} parent=11 // pred_region
          %s380 = ssub.s32 32, 32
          %381 = vsyncadd [#allocation9], %s380
          %s382 = sshll.u32 [#allocation10], 4
          %s383 = int_to_ptr.vmem [resolvable:$true] %s382
          %388 = dma.hbm_to_vmem [thread:$0]  %s5, 32, %s383, [#allocation9], 16, 16, 1
        $region32: #{tpu_custom_call.1} parent=11 // pred_fallthru
          _
        // Predicated region
        $region33: #{tpu_custom_call.1} parent=11 // pred_check
          %p389 = pneg %p183
        $region34: #{tpu_custom_call.1} parent=11 // pred_check_branch
          %391 = sbr.rel (%p389) target = $region36
        $region35: #{tpu_custom_call.1} parent=11 // pred_region
          %s393 = ssub.s32 8192, 8192
          %394 = vsyncadd [#allocation12], %s393
          %s395 = sshll.u32 [#allocation11], 4
          %s396 = int_to_ptr.vmem [resolvable:$true] %s395
          %401 = dma.hbm_to_vmem [thread:$0]  %s6, 8192, %s396, [#allocation12], 256, 256, 16
        $region36: #{tpu_custom_call.1} parent=11 // pred_fallthru
          _
        // Predicated region
        $region37: #{tpu_custom_call.1} parent=11 // pred_check
          %p402 = pneg %p204
        $region38: #{tpu_custom_call.1} parent=11 // pred_check_branch
          %404 = sbr.rel (%p402) target = $region40
        $region39: #{tpu_custom_call.1} parent=11 // pred_region
          %s406 = ssub.s32 4096, 4096
          %407 = vsyncadd [#allocation12], %s406
          %s408 = sshll.u32 [#allocation13], 4
          %s409 = int_to_ptr.vmem [resolvable:$true] %s408
          %414 = dma.hbm_to_vmem [thread:$0]  %s7, 4096, %s409, [#allocation12], 64, 64, 4
        $region40: #{tpu_custom_call.1} parent=11 // pred_fallthru
          _
        // Predicated region
        $region41: #{tpu_custom_call.1} parent=11 // pred_check
          %p415 = pneg %p225
        $region42: #{tpu_custom_call.1} parent=11 // pred_check_branch
          %417 = sbr.rel (%p415) target = $region44
        $region43: #{tpu_custom_call.1} parent=11 // pred_region
          _
        $region44: #{tpu_custom_call.1} parent=11 // pred_fallthru
          _
        // Predicated region
        $region45: #{tpu_custom_call.1} parent=11 // pred_check
          %p418 = pneg %p246
        $region46: #{tpu_custom_call.1} parent=11 // pred_check_branch
          %420 = sbr.rel (%p418) target = $region48
        $region47: #{tpu_custom_call.1} parent=11 // pred_region
          _
        $region48: #{tpu_custom_call.1} parent=11 // pred_fallthru
          _
        // Predicated region
        $region49: #{tpu_custom_call.1} parent=11 // pred_check
          %p421 = pneg %p267
        $region50: #{tpu_custom_call.1} parent=11 // pred_check_branch
          %423 = sbr.rel (%p421) target = $region52
        $region51: #{tpu_custom_call.1} parent=11 // pred_region
          _
        $region52: #{tpu_custom_call.1} parent=11 // pred_fallthru
          _
      $region12: #{tpu_custom_call.1} parent=5 // pred_fallthru
        _
      %p424 = scmp.lt.s32.totalorder %s31, 2
      // Predicated region
      $region53: #{tpu_custom_call.1} parent=5 // pred_check
        %p425 = pneg %p424
      $region54: #{tpu_custom_call.1} parent=5 // pred_check_branch
        %427 = sbr.rel (%p425) target = $region56
      $region55: #{tpu_custom_call.1} parent=5 // pred_region
        // Predicated region
        $region57: #{tpu_custom_call.1} parent=55 // pred_check
          %p428 = pneg %p51
        $region58: #{tpu_custom_call.1} parent=55 // pred_check_branch
          %430 = sbr.rel (%p428) target = $region60
        $region59: #{tpu_custom_call.1} parent=55 // pred_region
          %s431 = sand.u32 %s41, 1
          %s432 = scalar_lea.sflag [#allocation3], %s431
          %s433 = sand.u32 %s41, 1
          %s434 = smul.addr %s433, 16
          %s435 = scalar_lea.vmem [#allocation2], %s434
          %s437 = ssub.s32 256, 256
          %438 = vsyncadd %s432, %s437
          %s439 = smul.addr %s31, 2
          %s440 = smul.addr %s439, 128
          %s441 = scalar_lea.hbm %s0, %s440
          %s442 = sshll.u32 %s435, 4
          %s443 = int_to_ptr.vmem [resolvable:$true] %s442
          %448 = dma.hbm_to_vmem [thread:$0]  %s441, 256, %s443, %s432, 128, 128, 8
        $region60: #{tpu_custom_call.1} parent=55 // pred_fallthru
          _
      $region56: #{tpu_custom_call.1} parent=5 // pred_fallthru
        _
      %p449 = scmp.le.s32.totalorder 1, %s31
      %p450 = scmp.lt.s32.totalorder %s31, 3
      %p451 = pnand %p449, %p450
      %p452 = pneg %p451
      // Predicated region
      $region61: #{tpu_custom_call.1} parent=5 // pred_check
        _
      $region62: #{tpu_custom_call.1} parent=5 // pred_check_branch
        %454 = sbr.rel (%p451) target = $region64
      $region63: #{tpu_custom_call.1} parent=5 // pred_region
        %s455 = ssub.s32 %s31, 1
        %s456 = sand.u32 %s44, 1
        %s457 = scalar_lea.sflag [#allocation3], %s456
        %s458 = sand.u32 %s44, 1
        %s459 = smul.addr %s458, 16
        %s460 = scalar_lea.vmem [#allocation2], %s459
        // Predicated region
        $region65: #{tpu_custom_call.1} parent=63 // pred_check
          %p461 = pneg %p57
        $region66: #{tpu_custom_call.1} parent=63 // pred_check_branch
          %463 = sbr.rel (%p461) target = $region68
        $region67: #{tpu_custom_call.1} parent=63 // pred_region
          %464 = dma.done %s457, 256
        $region68: #{tpu_custom_call.1} parent=63 // pred_fallthru
          _
        // Predicated region
        $region69: #{tpu_custom_call.1} parent=63 // pred_check
          %p465 = pneg %p99
        $region70: #{tpu_custom_call.1} parent=63 // pred_check_branch
          %467 = sbr.rel (%p465) target = $region72
        $region71: #{tpu_custom_call.1} parent=63 // pred_region
          %468 = dma.done [#allocation6], 6144
        $region72: #{tpu_custom_call.1} parent=63 // pred_fallthru
          _
        // Predicated region
        $region73: #{tpu_custom_call.1} parent=63 // pred_check
          %p469 = pneg %p120
        $region74: #{tpu_custom_call.1} parent=63 // pred_check_branch
          %471 = sbr.rel (%p469) target = $region76
        $region75: #{tpu_custom_call.1} parent=63 // pred_region
          %472 = dma.done [#allocation6], 4096
        $region76: #{tpu_custom_call.1} parent=63 // pred_fallthru
          _
        // Predicated region
        $region77: #{tpu_custom_call.1} parent=63 // pred_check
          %p473 = pneg %p141
        $region78: #{tpu_custom_call.1} parent=63 // pred_check_branch
          %475 = sbr.rel (%p473) target = $region80
        $region79: #{tpu_custom_call.1} parent=63 // pred_region
          %476 = dma.done [#allocation9], 2048
        $region80: #{tpu_custom_call.1} parent=63 // pred_fallthru
          _
        // Predicated region
        $region81: #{tpu_custom_call.1} parent=63 // pred_check
          %p477 = pneg %p162
        $region82: #{tpu_custom_call.1} parent=63 // pred_check_branch
          %479 = sbr.rel (%p477) target = $region84
        $region83: #{tpu_custom_call.1} parent=63 // pred_region
          %480 = dma.done [#allocation9], 32
        $region84: #{tpu_custom_call.1} parent=63 // pred_fallthru
          _
        // Predicated region
        $region85: #{tpu_custom_call.1} parent=63 // pred_check
          %p481 = pneg %p183
        $region86: #{tpu_custom_call.1} parent=63 // pred_check_branch
          %483 = sbr.rel (%p481) target = $region88
        $region87: #{tpu_custom_call.1} parent=63 // pred_region
          %484 = dma.done [#allocation12], 8192
        $region88: #{tpu_custom_call.1} parent=63 // pred_fallthru
          _
        // Predicated region
        $region89: #{tpu_custom_call.1} parent=63 // pred_check
          %p485 = pneg %p204
        $region90: #{tpu_custom_call.1} parent=63 // pred_check_branch
          %487 = sbr.rel (%p485) target = $region92
        $region91: #{tpu_custom_call.1} parent=63 // pred_region
          %488 = dma.done [#allocation12], 4096
        $region92: #{tpu_custom_call.1} parent=63 // pred_fallthru
          _
        %s489 = sand.u32 %s44, 1
        %s490 = scalar_lea.sflag [#allocation3], %s489
        %s491 = sand.u32 %s44, 1
        %s492 = smul.addr %s491, 16
        %s493 = scalar_lea.vmem [#allocation2], %s492
        %p494 = pneg %p57
        %p495 = pneg %p54
        %p496 = pneg %p78
        %p497 = pneg %p75
        %p498 = pneg %p99
        %p499 = pneg %p96
        %p500 = pneg %p120
        %p501 = pneg %p117
        %p502 = pneg %p141
        %p503 = pneg %p138
        %p504 = pneg %p162
        %p505 = pneg %p159
        %p506 = pneg %p183
        %p507 = pneg %p180
        %p508 = pneg %p204
        %p509 = pneg %p201
        %p510 = pneg %p225
        %p511 = pneg %p222
        %p512 = pneg %p246
        %p513 = pneg %p243
        %p514 = pneg %p267
        %p515 = pneg %p264
        %p516 = pneg %p293
        %p517 = pneg %p290
        %s518 = sand.u32 %s280, 1
        %s519 = scalar_lea.sflag [#allocation4], %s518
        %s520 = sand.u32 %s280, 1
        %s521 = smul.addr %s520, 16
        %s522 = scalar_lea.vmem [#allocation14], %s521
        %p523 = pneg %p319
        %p524 = pneg %p316
        %s525 = sand.u32 %s306, 1
        %s526 = scalar_lea.sflag [#allocation16], %s525
        %s527 = sand.u32 %s306, 1
        %s528 = smul.addr %s527, 32
        %s529 = scalar_lea.vmem [#allocation15], %s528
        %v531 = vld [vmem:[%s8] sm:$0xff]
        %v532 = vld [vmem:[%s8 + $0x8] sm:$0xff]
        %v533 = vld [vmem:[%s9] sm:$0xff]
        %v534 = vld [vmem:[%s9 + $0x8] sm:$0xff]
        %v535 = vlaneseq
        %v536 = vshrl.u32 %v535, 7
        %v537 = vadd.s32 %v536, 8
        %v538 = vlaneseq
        %v539 = vand.u32 %v538, 127
        %vm540 = vcmp.le.s32.totalorder %v539, %v536
        %vm541 = vcmp.le.s32.totalorder %v539, %v537
        %v542 = vld [vmem:[%s460] sm:$0xff]
        %v543 = vld [vmem:[%s460 + $0x8] sm:$0xff]
        %v544 = vld [vmem:[%s1] sm:$0x1]
        %v545 = vmul.f32 %v542, %v542
        %v546 = vmul.f32 %v543, %v543
        %547 = vadd.xlane.f32.xlu0 %v545
        %v548 = vpop.xlane.xlu0 %547
        %549 = vadd.xlane.f32.xlu0 %v546
        %v550 = vpop.xlane.xlu0 %549
        %v551 = vrcp.pop 128.0
        %v552 = vmul.f32 %v548, %v551
        %v553 = vmul.f32 %v550, %v551
        %v554 = vadd.f32 %v552, 1e-05
        %v555 = vadd.f32 %v553, 1e-05
        %v556 = vrsqrt.pop %v554
        %v557 = vrsqrt.pop %v555
        %v558 = vmul.f32 %v542, %v556
        %v559 = vmul.f32 %v543, %v557
        %v561 = vlaneseq
        %v562 = vshrl.u32 %v561, 7
        %v563 = vsub.s32 0, %v562
        %v564 = vrot.slane %v544, %v563
        %v566 = vmul.f32 %v558, %v564
        %v567 = vmul.f32 %v559, %v564
        %v568 = vpack.c.bf16 %v567, %v566
        %v569 = vld [vmem:[#allocation5] sm:$0xff]
        %v570 = vld [vmem:[#allocation5 + $0x8] sm:$0xf]
        %v571 = vld [vmem:[#allocation5 + $0xc] sm:$0xff]
        %v572 = vld [vmem:[#allocation5 + $0x14] sm:$0xf]
        %v573 = vld [vmem:[#allocation5 + $0x18] sm:$0xff]
        %v574 = vld [vmem:[#allocation5 + $0x20] sm:$0xf]
        %v575 = vld [vmem:[#allocation5 + $0x24] sm:$0xff]
        %v576 = vld [vmem:[#allocation5 + $0x2c] sm:$0xf]
        %v577 = vld [vmem:[#allocation5 + $0x30] sm:$0xff]
        %v578 = vld [vmem:[#allocation5 + $0x38] sm:$0xf]
        %v579 = vld [vmem:[#allocation5 + $0x3c] sm:$0xff]
        %v580 = vld [vmem:[#allocation5 + $0x44] sm:$0xf]
        %v581 = vld [vmem:[#allocation5 + $0x48] sm:$0xff]
        %v582 = vld [vmem:[#allocation5 + $0x50] sm:$0xf]
        %v583 = vld [vmem:[#allocation5 + $0x54] sm:$0xff]
        %v584 = vld [vmem:[#allocation5 + $0x5c] sm:$0xf]
        %v585 = vld [vmem:[#allocation5 + $0x60] sm:$0xff]
        %v586 = vld [vmem:[#allocation5 + $0x68] sm:$0xf]
        %v587 = vld [vmem:[#allocation5 + $0x6c] sm:$0xff]
        %v588 = vld [vmem:[#allocation5 + $0x74] sm:$0xf]
        %v589 = vld [vmem:[#allocation5 + $0x78] sm:$0xff]
        %v590 = vld [vmem:[#allocation5 + $0x80] sm:$0xf]
        %v591 = vld [vmem:[#allocation5 + $0x84] sm:$0xff]
        %v592 = vld [vmem:[#allocation5 + $0x8c] sm:$0xf]
        %v593 = vld [vmem:[#allocation5 + $0x90] sm:$0xff]
        %v594 = vld [vmem:[#allocation5 + $0x98] sm:$0xf]
        %v595 = vld [vmem:[#allocation5 + $0x9c] sm:$0xff]
        %v596 = vld [vmem:[#allocation5 + $0xa4] sm:$0xf]
        %v597 = vld [vmem:[#allocation5 + $0xa8] sm:$0xff]
        %v598 = vld [vmem:[#allocation5 + $0xb0] sm:$0xf]
        %v599 = vld [vmem:[#allocation5 + $0xb4] sm:$0xff]
        %v600 = vld [vmem:[#allocation5 + $0xbc] sm:$0xf]
        %v633 = vunpack.c.l.b16 %v569
        %v634 = vunpack.c.h.b16 %v569
        %v635 = vunpack.c.l.b16 %v570
        %v636 = vunpack.c.l.b16 %v571
        %v637 = vunpack.c.h.b16 %v571
        %v638 = vunpack.c.l.b16 %v572
        %v639 = vunpack.c.l.b16 %v573
        %v640 = vunpack.c.h.b16 %v573
        %v641 = vunpack.c.l.b16 %v574
        %v642 = vunpack.c.l.b16 %v575
        %v643 = vunpack.c.h.b16 %v575
        %v644 = vunpack.c.l.b16 %v576
        %v645 = vunpack.c.l.b16 %v577
        %v646 = vunpack.c.h.b16 %v577
        %v647 = vunpack.c.l.b16 %v578
        %v648 = vunpack.c.l.b16 %v579
        %v649 = vunpack.c.h.b16 %v579
        %v650 = vunpack.c.l.b16 %v580
        %v651 = vunpack.c.l.b16 %v581
        %v652 = vunpack.c.h.b16 %v581
        %v653 = vunpack.c.l.b16 %v582
        %v654 = vunpack.c.l.b16 %v583
        %v655 = vunpack.c.h.b16 %v583
        %v656 = vunpack.c.l.b16 %v584
        %v657 = vunpack.c.l.b16 %v585
        %v658 = vunpack.c.h.b16 %v585
        %v659 = vunpack.c.l.b16 %v586
        %v660 = vunpack.c.l.b16 %v587
        %v661 = vunpack.c.h.b16 %v587
        %v662 = vunpack.c.l.b16 %v588
        %v663 = vunpack.c.l.b16 %v589
        %v664 = vunpack.c.h.b16 %v589
        %v665 = vunpack.c.l.b16 %v590
        %v666 = vunpack.c.l.b16 %v591
        %v667 = vunpack.c.h.b16 %v591
        %v668 = vunpack.c.l.b16 %v592
        %v669 = vunpack.c.l.b16 %v593
        %v670 = vunpack.c.h.b16 %v593
        %v671 = vunpack.c.l.b16 %v594
        %v672 = vunpack.c.l.b16 %v595
        %v673 = vunpack.c.h.b16 %v595
        %v674 = vunpack.c.l.b16 %v596
        %v675 = vunpack.c.l.b16 %v597
        %v676 = vunpack.c.h.b16 %v597
        %v677 = vunpack.c.l.b16 %v598
        %v678 = vunpack.c.l.b16 %v599
        %v679 = vunpack.c.h.b16 %v599
        %v680 = vunpack.c.l.b16 %v600
        %v681 = vpack.c.b16 %v636, %v633
        %v682 = vpack.c.b16 %v637, %v634
        %v683 = vpack.c.b16 %v638, %v635
        %v684 = vpack.c.b16 %v642, %v639
        %v685 = vpack.c.b16 %v643, %v640
        %v686 = vpack.c.b16 %v644, %v641
        %v687 = vpack.c.b16 %v648, %v645
        %v688 = vpack.c.b16 %v649, %v646
        %v689 = vpack.c.b16 %v650, %v647
        %v690 = vpack.c.b16 %v654, %v651
        %v691 = vpack.c.b16 %v655, %v652
        %v692 = vpack.c.b16 %v656, %v653
        %v693 = vpack.c.b16 %v660, %v657
        %v694 = vpack.c.b16 %v661, %v658
        %v695 = vpack.c.b16 %v662, %v659
        %v696 = vpack.c.b16 %v666, %v663
        %v697 = vpack.c.b16 %v667, %v664
        %v698 = vpack.c.b16 %v668, %v665
        %v699 = vpack.c.b16 %v672, %v669
        %v700 = vpack.c.b16 %v673, %v670
        %v701 = vpack.c.b16 %v674, %v671
        %v702 = vpack.c.b16 %v678, %v675
        %v703 = vpack.c.b16 %v679, %v676
        %v704 = vpack.c.b16 %v680, %v677
        %729 = vmatprep.subr.bf16.mxu0 %v682
        %730 = vmatpush1.bf16.msra.mxu0 %v681
        %731 = vmatprep.subr.bf16.mxu0 %v685
        %732 = vmatpush1.bf16.msra.mxu0 %v684
        %733 = vmatprep.subr.bf16.mxu0 %v688
        %734 = vmatpush1.bf16.msra.mxu0 %v687
        %735 = vmatprep.subr.bf16.mxu0 %v691
        %736 = vmatpush1.bf16.msra.mxu0 %v690
        %737 = vmatprep.subr.bf16.mxu0 %v694
        %738 = vmatpush1.bf16.msra.mxu0 %v693
        %739 = vmatprep.subr.bf16.mxu0 %v697
        %740 = vmatpush1.bf16.msra.mxu0 %v696
        %741 = vmatprep.subr.bf16.mxu0 %v700
        %742 = vmatpush1.bf16.msra.mxu0 %v699
        %743 = vmatprep.subr.bf16.mxu0 %v703
        %744 = vmatpush1.bf16.msra.mxu0 %v702
        %745 = vmatprep.subr.bf16.mxu0 0
        %746 = vmatpush1.bf16.msra.mxu0 0
        %747 = vmatprep.subr.bf16.mxu0 0
        %748 = vmatpush1.bf16.msra.mxu0 0
        %749 = vmatprep.subr.bf16.mxu0 0
        %750 = vmatpush1.bf16.msra.mxu0 0
        %751 = vmatprep.subr.bf16.mxu0 0
        %752 = vmatpush1.bf16.msra.mxu0 0
        %753 = vmatprep.subr.bf16.mxu0 0
        %754 = vmatpush1.bf16.msra.mxu0 0
        %755 = vmatprep.subr.bf16.mxu0 0
        %756 = vmatpush1.bf16.msra.mxu0 0
        %757 = vmatprep.subr.bf16.mxu0 0
        %758 = vmatpush1.bf16.msra.mxu0 0
        %759 = vmatprep.subr.bf16.mxu0 0
        %760 = vmatpush1.bf16.msra.mxu0 0
        %761 = vmatprep.mubr.bf16.mxu0 0
        %762 = vmatmul.mubr.bf16.gmra.mrb[0].mxu0 %v568
        %v763 = vpop.f32.mrb[0].mxu0
        %v764 = vadd.f32 0.0, %v763
        %v765 = vpop.f32.mrb[0].mxu0
        %v766 = vadd.f32 0.0, %v765
        %v767 = vpop.f32.mrb[0].mxu0
        %v768 = vadd.f32 0.0, %v767
        %v769 = vpop.f32.mrb[0].mxu0
        %v770 = vadd.f32 0.0, %v769
        %771 = vdwg.mxu0
        %772 = vmatprep.subr.bf16.mxu0 0
        %773 = vmatpush1.bf16.msra.mxu0 %v683
        %774 = vmatprep.subr.bf16.mxu0 0
        %775 = vmatpush1.bf16.msra.mxu0 %v686
        %776 = vmatprep.subr.bf16.mxu0 0
        %777 = vmatpush1.bf16.msra.mxu0 %v689
        %778 = vmatprep.subr.bf16.mxu0 0
        %779 = vmatpush1.bf16.msra.mxu0 %v692
        %780 = vmatprep.subr.bf16.mxu0 0
        %781 = vmatpush1.bf16.msra.mxu0 %v695
        %782 = vmatprep.subr.bf16.mxu0 0
        %783 = vmatpush1.bf16.msra.mxu0 %v698
        %784 = vmatprep.subr.bf16.mxu0 0
        %785 = vmatpush1.bf16.msra.mxu0 %v701
        %786 = vmatprep.subr.bf16.mxu0 0
        %787 = vmatpush1.bf16.msra.mxu0 %v704
        %788 = vmatprep.subr.bf16.mxu0 0
        %789 = vmatpush1.bf16.msra.mxu0 0
        %790 = vmatprep.subr.bf16.mxu0 0
        %791 = vmatpush1.bf16.msra.mxu0 0
        %792 = vmatprep.subr.bf16.mxu0 0
        %793 = vmatpush1.bf16.msra.mxu0 0
        %794 = vmatprep.subr.bf16.mxu0 0
        %795 = vmatpush1.bf16.msra.mxu0 0
        %796 = vmatprep.subr.bf16.mxu0 0
        %797 = vmatpush1.bf16.msra.mxu0 0
        %798 = vmatprep.subr.bf16.mxu0 0
        %799 = vmatpush1.bf16.msra.mxu0 0
        %800 = vmatprep.subr.bf16.mxu0 0
        %801 = vmatpush1.bf16.msra.mxu0 0
        %802 = vmatprep.subr.bf16.mxu0 0
        %803 = vmatpush1.bf16.msra.mxu0 0
        %804 = vmatprep.mubr.bf16.mxu0 0
        %805 = vmatmul.mubr.bf16.gmra.mrb[0].mxu0 %v568
        %v806 = vpop.f32.mrb[0].mxu0
        %v807 = vadd.f32 0.0, %v806
        %v808 = vpop.f32.mrb[0].mxu0
        %v809 = vpop.f32.mrb[0].mxu0
        %v810 = vadd.f32 0.0, %v809
        %v811 = vpop.f32.mrb[0].mxu0
        %812 = vdwg.mxu0
        %v813 = vld [vmem:[#allocation7] sm:$0xff]
        %v814 = vld [vmem:[#allocation7 + $0x8] sm:$0xff]
        %v815 = vld [vmem:[#allocation7 + $0x10] sm:$0xff]
        %v816 = vld [vmem:[#allocation7 + $0x18] sm:$0xff]
        %v817 = vld [vmem:[#allocation7 + $0x20] sm:$0xff]
        %v818 = vld [vmem:[#allocation7 + $0x28] sm:$0xff]
        %v819 = vld [vmem:[#allocation7 + $0x30] sm:$0xff]
        %v820 = vld [vmem:[#allocation7 + $0x38] sm:$0xff]
        %v821 = vld [vmem:[#allocation7 + $0x40] sm:$0xff]
        %v822 = vld [vmem:[#allocation7 + $0x48] sm:$0xff]
        %v823 = vld [vmem:[#allocation7 + $0x50] sm:$0xff]
        %v824 = vld [vmem:[#allocation7 + $0x58] sm:$0xff]
        %v825 = vld [vmem:[#allocation7 + $0x60] sm:$0xff]
        %v826 = vld [vmem:[#allocation7 + $0x68] sm:$0xff]
        %v827 = vld [vmem:[#allocation7 + $0x70] sm:$0xff]
        %v828 = vld [vmem:[#allocation7 + $0x78] sm:$0xff]
        %v845 = vunpack.c.l.b16 %v813
        %v846 = vunpack.c.h.b16 %v813
        %v847 = vunpack.c.l.b16 %v814
        %v848 = vunpack.c.h.b16 %v814
        %v849 = vunpack.c.l.b16 %v815
        %v850 = vunpack.c.h.b16 %v815
        %v851 = vunpack.c.l.b16 %v816
        %v852 = vunpack.c.h.b16 %v816
        %v853 = vunpack.c.l.b16 %v817
        %v854 = vunpack.c.h.b16 %v817
        %v855 = vunpack.c.l.b16 %v818
        %v856 = vunpack.c.h.b16 %v818
        %v857 = vunpack.c.l.b16 %v819
        %v858 = vunpack.c.h.b16 %v819
        %v859 = vunpack.c.l.b16 %v820
        %v860 = vunpack.c.h.b16 %v820
        %v861 = vunpack.c.l.b16 %v821
        %v862 = vunpack.c.h.b16 %v821
        %v863 = vunpack.c.l.b16 %v822
        %v864 = vunpack.c.h.b16 %v822
        %v865 = vunpack.c.l.b16 %v823
        %v866 = vunpack.c.h.b16 %v823
        %v867 = vunpack.c.l.b16 %v824
        %v868 = vunpack.c.h.b16 %v824
        %v869 = vunpack.c.l.b16 %v825
        %v870 = vunpack.c.h.b16 %v825
        %v871 = vunpack.c.l.b16 %v826
        %v872 = vunpack.c.h.b16 %v826
        %v873 = vunpack.c.l.b16 %v827
        %v874 = vunpack.c.h.b16 %v827
        %v875 = vunpack.c.l.b16 %v828
        %v876 = vunpack.c.h.b16 %v828
        %v877 = vpack.c.b16 %v847, %v845
        %v878 = vpack.c.b16 %v848, %v846
        %v879 = vpack.c.b16 %v851, %v849
        %v880 = vpack.c.b16 %v852, %v850
        %v881 = vpack.c.b16 %v855, %v853
        %v882 = vpack.c.b16 %v856, %v854
        %v883 = vpack.c.b16 %v859, %v857
        %v884 = vpack.c.b16 %v860, %v858
        %v885 = vpack.c.b16 %v863, %v861
        %v886 = vpack.c.b16 %v864, %v862
        %v887 = vpack.c.b16 %v867, %v865
        %v888 = vpack.c.b16 %v868, %v866
        %v889 = vpack.c.b16 %v871, %v869
        %v890 = vpack.c.b16 %v872, %v870
        %v891 = vpack.c.b16 %v875, %v873
        %v892 = vpack.c.b16 %v876, %v874
        %909 = vmatprep.subr.bf16.mxu0 %v878
        %910 = vmatpush1.bf16.msra.mxu0 %v877
        %911 = vmatprep.subr.bf16.mxu0 %v880
        %912 = vmatpush1.bf16.msra.mxu0 %v879
        %913 = vmatprep.subr.bf16.mxu0 %v882
        %914 = vmatpush1.bf16.msra.mxu0 %v881
        %915 = vmatprep.subr.bf16.mxu0 %v884
        %916 = vmatpush1.bf16.msra.mxu0 %v883
        %917 = vmatprep.subr.bf16.mxu0 %v886
        %918 = vmatpush1.bf16.msra.mxu0 %v885
        %919 = vmatprep.subr.bf16.mxu0 %v888
        %920 = vmatpush1.bf16.msra.mxu0 %v887
        %921 = vmatprep.subr.bf16.mxu0 %v890
        %922 = vmatpush1.bf16.msra.mxu0 %v889
        %923 = vmatprep.subr.bf16.mxu0 %v892
        %924 = vmatpush1.bf16.msra.mxu0 %v891
        %925 = vmatprep.subr.bf16.mxu0 0
        %926 = vmatpush1.bf16.msra.mxu0 0
        %927 = vmatprep.subr.bf16.mxu0 0
        %928 = vmatpush1.bf16.msra.mxu0 0
        %929 = vmatprep.subr.bf16.mxu0 0
        %930 = vmatpush1.bf16.msra.mxu0 0
        %931 = vmatprep.subr.bf16.mxu0 0
        %932 = vmatpush1.bf16.msra.mxu0 0
        %933 = vmatprep.subr.bf16.mxu0 0
        %934 = vmatpush1.bf16.msra.mxu0 0
        %935 = vmatprep.subr.bf16.mxu0 0
        %936 = vmatpush1.bf16.msra.mxu0 0
        %937 = vmatprep.subr.bf16.mxu0 0
        %938 = vmatpush1.bf16.msra.mxu0 0
        %939 = vmatprep.subr.bf16.mxu0 0
        %940 = vmatpush1.bf16.msra.mxu0 0
        %941 = vmatprep.mubr.bf16.mxu0 0
        %942 = vmatmul.mubr.bf16.gmra.mrb[0].mxu0 %v568
        %v943 = vpop.f32.mrb[0].mxu0
        %v944 = vadd.f32 0.0, %v943
        %v945 = vpop.f32.mrb[0].mxu0
        %v946 = vadd.f32 0.0, %v945
        %v947 = vpop.f32.mrb[0].mxu0
        %v948 = vadd.f32 0.0, %v947
        %v949 = vpop.f32.mrb[0].mxu0
        %v950 = vadd.f32 0.0, %v949
        %951 = vdwg.mxu0
        %v952 = vmul.f32 %v764, %v531
        %v953 = vmul.f32 %v768, %v532
        %v954 = vmul.f32 %v944, %v533
        %v955 = vmul.f32 %v948, %v534
        %v956 = vadd.f32 %v952, %v954
        %v957 = vadd.f32 %v953, %v955
        %v958 = vmul.f32 %v766, %v531
        %v959 = vmul.f32 %v770, %v532
        %v960 = vmul.f32 %v946, %v533
        %v961 = vmul.f32 %v950, %v534
        %v962 = vadd.f32 %v958, %v960
        %v963 = vadd.f32 %v959, %v961
        %966 = vrot.lane.b32.xlu0 %v956, 96
        %v967 = vpop.permute.xlu0 %966
        %968 = vrot.lane.b32.xlu0 %v957, 96
        %v969 = vpop.permute.xlu0 %968
        %972 = vrot.lane.b32.xlu0 %v956, 64
        %v973 = vpop.permute.xlu0 %972
        %974 = vrot.lane.b32.xlu0 %v957, 64
        %v975 = vpop.permute.xlu0 %974
        %978 = vrot.lane.b32.xlu0 %v956, 32
        %v979 = vpop.permute.xlu0 %978
        %980 = vrot.lane.b32.xlu0 %v957, 32
        %v981 = vpop.permute.xlu0 %980
        %v984 = vcombine.low %v956, %v973
        %v985 = vcombine.high %v956, %v973
        %v987 = vunpack.c.l.s4 1983009808
        %v988 = vunpack.c.0.s8 %v987
        %v989 = vlaneseq
        %v990 = vshrl.u32 %v989, 7
        %v991 = vsub.s32 %v988, %v990
        %v992 = vrot.slane %v984, %v991
        %v994 = vunpack.c.l.s4 1983009808
        %v995 = vunpack.c.0.s8 %v994
        %v996 = vlaneseq
        %v997 = vshrl.u32 %v996, 7
        %v998 = vsub.s32 %v995, %v997
        %v999 = vrot.slane %v985, %v998
        %v1000 = vcombine.low %v967, %v979
        %v1001 = vcombine.high %v967, %v979
        %v1003 = vunpack.c.l.s4 1983009808
        %v1004 = vunpack.c.0.s8 %v1003
        %v1005 = vlaneseq
        %v1006 = vshrl.u32 %v1005, 7
        %v1007 = vsub.s32 %v1004, %v1006
        %v1008 = vrot.slane %v1000, %v1007
        %v1010 = vunpack.c.l.s4 1983009808
        %v1011 = vunpack.c.0.s8 %v1010
        %v1012 = vlaneseq
        %v1013 = vshrl.u32 %v1012, 7
        %v1014 = vsub.s32 %v1011, %v1013
        %v1015 = vrot.slane %v1001, %v1014
        %v1016 = vcombine.low %v992, %v1008
        %v1017 = vcombine.high %v992, %v1008
        %v1019 = vunpack.c.l.s4 1934713408
        %v1020 = vunpack.c.0.s8 %v1019
        %v1021 = vlaneseq
        %v1022 = vshrl.u32 %v1021, 7
        %v1023 = vsub.s32 %v1020, %v1022
        %v1024 = vrot.slane %v1016, %v1023
        %v1026 = vunpack.c.l.s4 1934713408
        %v1027 = vunpack.c.0.s8 %v1026
        %v1028 = vlaneseq
        %v1029 = vshrl.u32 %v1028, 7
        %v1030 = vsub.s32 %v1027, %v1029
        %v1031 = vrot.slane %v1017, %v1030
        %v1032 = vcombine.low %v999, %v1015
        %v1033 = vcombine.high %v999, %v1015
        %v1035 = vunpack.c.l.s4 1934713408
        %v1036 = vunpack.c.0.s8 %v1035
        %v1037 = vlaneseq
        %v1038 = vshrl.u32 %v1037, 7
        %v1039 = vsub.s32 %v1036, %v1038
        %v1040 = vrot.slane %v1032, %v1039
        %v1042 = vunpack.c.l.s4 1934713408
        %v1043 = vunpack.c.0.s8 %v1042
        %v1044 = vlaneseq
        %v1045 = vshrl.u32 %v1044, 7
        %v1046 = vsub.s32 %v1043, %v1045
        %v1047 = vrot.slane %v1033, %v1046
        %v1048 = vcombine.high %v1024, 0.0
        %v1049 = vcombine.high %v1031, 0.0
        %v1050 = vcombine.high %v1040, 0.0
        %v1051 = vcombine.high %v1047, 0.0
        %v1052 = vcombine.low %v957, %v975
        %v1053 = vcombine.high %v957, %v975
        %v1055 = vunpack.c.l.s4 1983009808
        %v1056 = vunpack.c.0.s8 %v1055
        %v1057 = vlaneseq
        %v1058 = vshrl.u32 %v1057, 7
        %v1059 = vsub.s32 %v1056, %v1058
        %v1060 = vrot.slane %v1052, %v1059
        %v1062 = vunpack.c.l.s4 1983009808
        %v1063 = vunpack.c.0.s8 %v1062
        %v1064 = vlaneseq
        %v1065 = vshrl.u32 %v1064, 7
        %v1066 = vsub.s32 %v1063, %v1065
        %v1067 = vrot.slane %v1053, %v1066
        %v1068 = vcombine.low %v969, %v981
        %v1069 = vcombine.high %v969, %v981
        %v1071 = vunpack.c.l.s4 1983009808
        %v1072 = vunpack.c.0.s8 %v1071
        %v1073 = vlaneseq
        %v1074 = vshrl.u32 %v1073, 7
        %v1075 = vsub.s32 %v1072, %v1074
        %v1076 = vrot.slane %v1068, %v1075
        %v1078 = vunpack.c.l.s4 1983009808
        %v1079 = vunpack.c.0.s8 %v1078
        %v1080 = vlaneseq
        %v1081 = vshrl.u32 %v1080, 7
        %v1082 = vsub.s32 %v1079, %v1081
        %v1083 = vrot.slane %v1069, %v1082
        %v1084 = vcombine.low %v1060, %v1076
        %v1085 = vcombine.high %v1060, %v1076
        %v1087 = vunpack.c.l.s4 1934713408
        %v1088 = vunpack.c.0.s8 %v1087
        %v1089 = vlaneseq
        %v1090 = vshrl.u32 %v1089, 7
        %v1091 = vsub.s32 %v1088, %v1090
        %v1092 = vrot.slane %v1084, %v1091
        %v1094 = vunpack.c.l.s4 1934713408
        %v1095 = vunpack.c.0.s8 %v1094
        %v1096 = vlaneseq
        %v1097 = vshrl.u32 %v1096, 7
        %v1098 = vsub.s32 %v1095, %v1097
        %v1099 = vrot.slane %v1085, %v1098
        %v1100 = vcombine.low %v1067, %v1083
        %v1101 = vcombine.high %v1067, %v1083
        %v1103 = vunpack.c.l.s4 1934713408
        %v1104 = vunpack.c.0.s8 %v1103
        %v1105 = vlaneseq
        %v1106 = vshrl.u32 %v1105, 7
        %v1107 = vsub.s32 %v1104, %v1106
        %v1108 = vrot.slane %v1100, %v1107
        %v1110 = vunpack.c.l.s4 1934713408
        %v1111 = vunpack.c.0.s8 %v1110
        %v1112 = vlaneseq
        %v1113 = vshrl.u32 %v1112, 7
        %v1114 = vsub.s32 %v1111, %v1113
        %v1115 = vrot.slane %v1101, %v1114
        %v1116 = vcombine.high %v1092, 0.0
        %v1117 = vcombine.high %v1099, 0.0
        %v1118 = vcombine.high %v1108, 0.0
        %v1119 = vcombine.high %v1115, 0.0
        %v1120 = vcombine.low %v1024, %v1031
        %v1122 = vunpack.c.l.s4 1983009808
        %v1123 = vunpack.c.0.s8 %v1122
        %v1124 = vlaneseq
        %v1125 = vshrl.u32 %v1124, 7
        %v1126 = vsub.s32 %v1123, %v1125
        %v1127 = vrot.slane %v1120, %v1126
        %v1128 = vcombine.low %v1048, %v1049
        %v1130 = vunpack.c.l.s4 1983009808
        %v1131 = vunpack.c.0.s8 %v1130
        %v1132 = vlaneseq
        %v1133 = vshrl.u32 %v1132, 7
        %v1134 = vsub.s32 %v1131, %v1133
        %v1135 = vrot.slane %v1128, %v1134
        %v1136 = vcombine.low %v1040, %v1047
        %v1138 = vunpack.c.l.s4 1983009808
        %v1139 = vunpack.c.0.s8 %v1138
        %v1140 = vlaneseq
        %v1141 = vshrl.u32 %v1140, 7
        %v1142 = vsub.s32 %v1139, %v1141
        %v1143 = vrot.slane %v1136, %v1142
        %v1144 = vcombine.low %v1050, %v1051
        %v1146 = vunpack.c.l.s4 1983009808
        %v1147 = vunpack.c.0.s8 %v1146
        %v1148 = vlaneseq
        %v1149 = vshrl.u32 %v1148, 7
        %v1150 = vsub.s32 %v1147, %v1149
        %v1151 = vrot.slane %v1144, %v1150
        %v1152 = vcombine.low %v1127, %v1135
        %v1153 = vcombine.high %v1127, %v1135
        %v1155 = vunpack.c.l.s4 1934713408
        %v1156 = vunpack.c.0.s8 %v1155
        %v1157 = vlaneseq
        %v1158 = vshrl.u32 %v1157, 7
        %v1159 = vsub.s32 %v1156, %v1158
        %v1160 = vrot.slane %v1152, %v1159
        %v1162 = vunpack.c.l.s4 1934713408
        %v1163 = vunpack.c.0.s8 %v1162
        %v1164 = vlaneseq
        %v1165 = vshrl.u32 %v1164, 7
        %v1166 = vsub.s32 %v1163, %v1165
        %v1167 = vrot.slane %v1153, %v1166
        %v1168 = vcombine.low %v1143, %v1151
        %v1169 = vcombine.high %v1143, %v1151
        %v1171 = vunpack.c.l.s4 1934713408
        %v1172 = vunpack.c.0.s8 %v1171
        %v1173 = vlaneseq
        %v1174 = vshrl.u32 %v1173, 7
        %v1175 = vsub.s32 %v1172, %v1174
        %v1176 = vrot.slane %v1168, %v1175
        %v1178 = vunpack.c.l.s4 1934713408
        %v1179 = vunpack.c.0.s8 %v1178
        %v1180 = vlaneseq
        %v1181 = vshrl.u32 %v1180, 7
        %v1182 = vsub.s32 %v1179, %v1181
        %v1183 = vrot.slane %v1169, %v1182
        %v1184 = vcombine.low %v1160, %v1176
        %v1185 = vcombine.high %v1160, %v1176
        %v1186 = vcombine.low %v1167, %v1183
        %v1187 = vcombine.high %v1167, %v1183
        %v1188 = vcombine.low %v1092, %v1099
        %v1190 = vunpack.c.l.s4 1983009808
        %v1191 = vunpack.c.0.s8 %v1190
        %v1192 = vlaneseq
        %v1193 = vshrl.u32 %v1192, 7
        %v1194 = vsub.s32 %v1191, %v1193
        %v1195 = vrot.slane %v1188, %v1194
        %v1196 = vcombine.low %v1116, %v1117
        %v1198 = vunpack.c.l.s4 1983009808
        %v1199 = vunpack.c.0.s8 %v1198
        %v1200 = vlaneseq
        %v1201 = vshrl.u32 %v1200, 7
        %v1202 = vsub.s32 %v1199, %v1201
        %v1203 = vrot.slane %v1196, %v1202
        %v1204 = vcombine.low %v1108, %v1115
        %v1206 = vunpack.c.l.s4 1983009808
        %v1207 = vunpack.c.0.s8 %v1206
        %v1208 = vlaneseq
        %v1209 = vshrl.u32 %v1208, 7
        %v1210 = vsub.s32 %v1207, %v1209
        %v1211 = vrot.slane %v1204, %v1210
        %v1212 = vcombine.low %v1118, %v1119
        %v1214 = vunpack.c.l.s4 1983009808
        %v1215 = vunpack.c.0.s8 %v1214
        %v1216 = vlaneseq
        %v1217 = vshrl.u32 %v1216, 7
        %v1218 = vsub.s32 %v1215, %v1217
        %v1219 = vrot.slane %v1212, %v1218
        %v1220 = vcombine.low %v1195, %v1203
        %v1221 = vcombine.high %v1195, %v1203
        %v1223 = vunpack.c.l.s4 1934713408
        %v1224 = vunpack.c.0.s8 %v1223
        %v1225 = vlaneseq
        %v1226 = vshrl.u32 %v1225, 7
        %v1227 = vsub.s32 %v1224, %v1226
        %v1228 = vrot.slane %v1220, %v1227
        %v1230 = vunpack.c.l.s4 1934713408
        %v1231 = vunpack.c.0.s8 %v1230
        %v1232 = vlaneseq
        %v1233 = vshrl.u32 %v1232, 7
        %v1234 = vsub.s32 %v1231, %v1233
        %v1235 = vrot.slane %v1221, %v1234
        %v1236 = vcombine.low %v1211, %v1219
        %v1237 = vcombine.high %v1211, %v1219
        %v1239 = vunpack.c.l.s4 1934713408
        %v1240 = vunpack.c.0.s8 %v1239
        %v1241 = vlaneseq
        %v1242 = vshrl.u32 %v1241, 7
        %v1243 = vsub.s32 %v1240, %v1242
        %v1244 = vrot.slane %v1236, %v1243
        %v1246 = vunpack.c.l.s4 1934713408
        %v1247 = vunpack.c.0.s8 %v1246
        %v1248 = vlaneseq
        %v1249 = vshrl.u32 %v1248, 7
        %v1250 = vsub.s32 %v1247, %v1249
        %v1251 = vrot.slane %v1237, %v1250
        %v1252 = vcombine.low %v1228, %v1244
        %v1253 = vcombine.high %v1228, %v1244
        %v1254 = vcombine.low %v1235, %v1251
        %v1255 = vcombine.high %v1235, %v1251
        %v1256 = vpack.c.bf16 %v1252, %v1184
        %v1257 = vpack.c.bf16 %v1253, %v1185
        %v1258 = vpack.c.bf16 %v1254, %v1186
        %v1259 = vpack.c.bf16 %v1255, %v1187
        %1262 = vrot.lane.b32.xlu0 %v962, 96
        %v1263 = vpop.permute.xlu0 %1262
        %1264 = vrot.lane.b32.xlu0 %v963, 96
        %v1265 = vpop.permute.xlu0 %1264
        %1268 = vrot.lane.b32.xlu0 %v962, 64
        %v1269 = vpop.permute.xlu0 %1268
        %1270 = vrot.lane.b32.xlu0 %v963, 64
        %v1271 = vpop.permute.xlu0 %1270
        %1274 = vrot.lane.b32.xlu0 %v962, 32
        %v1275 = vpop.permute.xlu0 %1274
        %1276 = vrot.lane.b32.xlu0 %v963, 32
        %v1277 = vpop.permute.xlu0 %1276
        %v1280 = vcombine.low %v962, %v1269
        %v1281 = vcombine.high %v962, %v1269
        %v1283 = vunpack.c.l.s4 1983009808
        %v1284 = vunpack.c.0.s8 %v1283
        %v1285 = vlaneseq
        %v1286 = vshrl.u32 %v1285, 7
        %v1287 = vsub.s32 %v1284, %v1286
        %v1288 = vrot.slane %v1280, %v1287
        %v1290 = vunpack.c.l.s4 1983009808
        %v1291 = vunpack.c.0.s8 %v1290
        %v1292 = vlaneseq
        %v1293 = vshrl.u32 %v1292, 7
        %v1294 = vsub.s32 %v1291, %v1293
        %v1295 = vrot.slane %v1281, %v1294
        %v1296 = vcombine.low %v1263, %v1275
        %v1297 = vcombine.high %v1263, %v1275
        %v1299 = vunpack.c.l.s4 1983009808
        %v1300 = vunpack.c.0.s8 %v1299
        %v1301 = vlaneseq
        %v1302 = vshrl.u32 %v1301, 7
        %v1303 = vsub.s32 %v1300, %v1302
        %v1304 = vrot.slane %v1296, %v1303
        %v1306 = vunpack.c.l.s4 1983009808
        %v1307 = vunpack.c.0.s8 %v1306
        %v1308 = vlaneseq
        %v1309 = vshrl.u32 %v1308, 7
        %v1310 = vsub.s32 %v1307, %v1309
        %v1311 = vrot.slane %v1297, %v1310
        %v1312 = vcombine.low %v1288, %v1304
        %v1313 = vcombine.high %v1288, %v1304
        %v1315 = vunpack.c.l.s4 1934713408
        %v1316 = vunpack.c.0.s8 %v1315
        %v1317 = vlaneseq
        %v1318 = vshrl.u32 %v1317, 7
        %v1319 = vsub.s32 %v1316, %v1318
        %v1320 = vrot.slane %v1312, %v1319
        %v1322 = vunpack.c.l.s4 1934713408
        %v1323 = vunpack.c.0.s8 %v1322
        %v1324 = vlaneseq
        %v1325 = vshrl.u32 %v1324, 7
        %v1326 = vsub.s32 %v1323, %v1325
        %v1327 = vrot.slane %v1313, %v1326
        %v1328 = vcombine.low %v1295, %v1311
        %v1329 = vcombine.high %v1295, %v1311
        %v1331 = vunpack.c.l.s4 1934713408
        %v1332 = vunpack.c.0.s8 %v1331
        %v1333 = vlaneseq
        %v1334 = vshrl.u32 %v1333, 7
        %v1335 = vsub.s32 %v1332, %v1334
        %v1336 = vrot.slane %v1328, %v1335
        %v1338 = vunpack.c.l.s4 1934713408
        %v1339 = vunpack.c.0.s8 %v1338
        %v1340 = vlaneseq
        %v1341 = vshrl.u32 %v1340, 7
        %v1342 = vsub.s32 %v1339, %v1341
        %v1343 = vrot.slane %v1329, %v1342
        %v1344 = vcombine.high %v1320, 0.0
        %v1345 = vcombine.high %v1327, 0.0
        %v1346 = vcombine.high %v1336, 0.0
        %v1347 = vcombine.high %v1343, 0.0
        %v1348 = vcombine.low %v963, %v1271
        %v1349 = vcombine.high %v963, %v1271
        %v1351 = vunpack.c.l.s4 1983009808
        %v1352 = vunpack.c.0.s8 %v1351
        %v1353 = vlaneseq
        %v1354 = vshrl.u32 %v1353, 7
        %v1355 = vsub.s32 %v1352, %v1354
        %v1356 = vrot.slane %v1348, %v1355
        %v1358 = vunpack.c.l.s4 1983009808
        %v1359 = vunpack.c.0.s8 %v1358
        %v1360 = vlaneseq
        %v1361 = vshrl.u32 %v1360, 7
        %v1362 = vsub.s32 %v1359, %v1361
        %v1363 = vrot.slane %v1349, %v1362
        %v1364 = vcombine.low %v1265, %v1277
        %v1365 = vcombine.high %v1265, %v1277
        %v1367 = vunpack.c.l.s4 1983009808
        %v1368 = vunpack.c.0.s8 %v1367
        %v1369 = vlaneseq
        %v1370 = vshrl.u32 %v1369, 7
        %v1371 = vsub.s32 %v1368, %v1370
        %v1372 = vrot.slane %v1364, %v1371
        %v1374 = vunpack.c.l.s4 1983009808
        %v1375 = vunpack.c.0.s8 %v1374
        %v1376 = vlaneseq
        %v1377 = vshrl.u32 %v1376, 7
        %v1378 = vsub.s32 %v1375, %v1377
        %v1379 = vrot.slane %v1365, %v1378
        %v1380 = vcombine.low %v1356, %v1372
        %v1381 = vcombine.high %v1356, %v1372
        %v1383 = vunpack.c.l.s4 1934713408
        %v1384 = vunpack.c.0.s8 %v1383
        %v1385 = vlaneseq
        %v1386 = vshrl.u32 %v1385, 7
        %v1387 = vsub.s32 %v1384, %v1386
        %v1388 = vrot.slane %v1380, %v1387
        %v1390 = vunpack.c.l.s4 1934713408
        %v1391 = vunpack.c.0.s8 %v1390
        %v1392 = vlaneseq
        %v1393 = vshrl.u32 %v1392, 7
        %v1394 = vsub.s32 %v1391, %v1393
        %v1395 = vrot.slane %v1381, %v1394
        %v1396 = vcombine.low %v1363, %v1379
        %v1397 = vcombine.high %v1363, %v1379
        %v1399 = vunpack.c.l.s4 1934713408
        %v1400 = vunpack.c.0.s8 %v1399
        %v1401 = vlaneseq
        %v1402 = vshrl.u32 %v1401, 7
        %v1403 = vsub.s32 %v1400, %v1402
        %v1404 = vrot.slane %v1396, %v1403
        %v1406 = vunpack.c.l.s4 1934713408
        %v1407 = vunpack.c.0.s8 %v1406
        %v1408 = vlaneseq
        %v1409 = vshrl.u32 %v1408, 7
        %v1410 = vsub.s32 %v1407, %v1409
        %v1411 = vrot.slane %v1397, %v1410
        %v1412 = vcombine.high %v1388, 0.0
        %v1413 = vcombine.high %v1395, 0.0
        %v1414 = vcombine.high %v1404, 0.0
        %v1415 = vcombine.high %v1411, 0.0
        %v1416 = vcombine.low %v1320, %v1327
        %v1418 = vunpack.c.l.s4 1983009808
        %v1419 = vunpack.c.0.s8 %v1418
        %v1420 = vlaneseq
        %v1421 = vshrl.u32 %v1420, 7
        %v1422 = vsub.s32 %v1419, %v1421
        %v1423 = vrot.slane %v1416, %v1422
        %v1424 = vcombine.low %v1344, %v1345
        %v1426 = vunpack.c.l.s4 1983009808
        %v1427 = vunpack.c.0.s8 %v1426
        %v1428 = vlaneseq
        %v1429 = vshrl.u32 %v1428, 7
        %v1430 = vsub.s32 %v1427, %v1429
        %v1431 = vrot.slane %v1424, %v1430
        %v1432 = vcombine.low %v1336, %v1343
        %v1434 = vunpack.c.l.s4 1983009808
        %v1435 = vunpack.c.0.s8 %v1434
        %v1436 = vlaneseq
        %v1437 = vshrl.u32 %v1436, 7
        %v1438 = vsub.s32 %v1435, %v1437
        %v1439 = vrot.slane %v1432, %v1438
        %v1440 = vcombine.low %v1346, %v1347
        %v1442 = vunpack.c.l.s4 1983009808
        %v1443 = vunpack.c.0.s8 %v1442
        %v1444 = vlaneseq
        %v1445 = vshrl.u32 %v1444, 7
        %v1446 = vsub.s32 %v1443, %v1445
        %v1447 = vrot.slane %v1440, %v1446
        %v1448 = vcombine.low %v1423, %v1431
        %v1449 = vcombine.high %v1423, %v1431
        %v1451 = vunpack.c.l.s4 1934713408
        %v1452 = vunpack.c.0.s8 %v1451
        %v1453 = vlaneseq
        %v1454 = vshrl.u32 %v1453, 7
        %v1455 = vsub.s32 %v1452, %v1454
        %v1456 = vrot.slane %v1448, %v1455
        %v1458 = vunpack.c.l.s4 1934713408
        %v1459 = vunpack.c.0.s8 %v1458
        %v1460 = vlaneseq
        %v1461 = vshrl.u32 %v1460, 7
        %v1462 = vsub.s32 %v1459, %v1461
        %v1463 = vrot.slane %v1449, %v1462
        %v1464 = vcombine.low %v1439, %v1447
        %v1465 = vcombine.high %v1439, %v1447
        %v1467 = vunpack.c.l.s4 1934713408
        %v1468 = vunpack.c.0.s8 %v1467
        %v1469 = vlaneseq
        %v1470 = vshrl.u32 %v1469, 7
        %v1471 = vsub.s32 %v1468, %v1470
        %v1472 = vrot.slane %v1464, %v1471
        %v1474 = vunpack.c.l.s4 1934713408
        %v1475 = vunpack.c.0.s8 %v1474
        %v1476 = vlaneseq
        %v1477 = vshrl.u32 %v1476, 7
        %v1478 = vsub.s32 %v1475, %v1477
        %v1479 = vrot.slane %v1465, %v1478
        %v1480 = vcombine.low %v1456, %v1472
        %v1481 = vcombine.high %v1456, %v1472
        %v1482 = vcombine.low %v1463, %v1479
        %v1483 = vcombine.high %v1463, %v1479
        %v1484 = vcombine.low %v1388, %v1395
        %v1486 = vunpack.c.l.s4 1983009808
        %v1487 = vunpack.c.0.s8 %v1486
        %v1488 = vlaneseq
        %v1489 = vshrl.u32 %v1488, 7
        %v1490 = vsub.s32 %v1487, %v1489
        %v1491 = vrot.slane %v1484, %v1490
        %v1492 = vcombine.low %v1412, %v1413
        %v1494 = vunpack.c.l.s4 1983009808
        %v1495 = vunpack.c.0.s8 %v1494
        %v1496 = vlaneseq
        %v1497 = vshrl.u32 %v1496, 7
        %v1498 = vsub.s32 %v1495, %v1497
        %v1499 = vrot.slane %v1492, %v1498
        %v1500 = vcombine.low %v1404, %v1411
        %v1502 = vunpack.c.l.s4 1983009808
        %v1503 = vunpack.c.0.s8 %v1502
        %v1504 = vlaneseq
        %v1505 = vshrl.u32 %v1504, 7
        %v1506 = vsub.s32 %v1503, %v1505
        %v1507 = vrot.slane %v1500, %v1506
        %v1508 = vcombine.low %v1414, %v1415
        %v1510 = vunpack.c.l.s4 1983009808
        %v1511 = vunpack.c.0.s8 %v1510
        %v1512 = vlaneseq
        %v1513 = vshrl.u32 %v1512, 7
        %v1514 = vsub.s32 %v1511, %v1513
        %v1515 = vrot.slane %v1508, %v1514
        %v1516 = vcombine.low %v1491, %v1499
        %v1517 = vcombine.high %v1491, %v1499
        %v1519 = vunpack.c.l.s4 1934713408
        %v1520 = vunpack.c.0.s8 %v1519
        %v1521 = vlaneseq
        %v1522 = vshrl.u32 %v1521, 7
        %v1523 = vsub.s32 %v1520, %v1522
        %v1524 = vrot.slane %v1516, %v1523
        %v1526 = vunpack.c.l.s4 1934713408
        %v1527 = vunpack.c.0.s8 %v1526
        %v1528 = vlaneseq
        %v1529 = vshrl.u32 %v1528, 7
        %v1530 = vsub.s32 %v1527, %v1529
        %v1531 = vrot.slane %v1517, %v1530
        %v1532 = vcombine.low %v1507, %v1515
        %v1533 = vcombine.high %v1507, %v1515
        %v1535 = vunpack.c.l.s4 1934713408
        %v1536 = vunpack.c.0.s8 %v1535
        %v1537 = vlaneseq
        %v1538 = vshrl.u32 %v1537, 7
        %v1539 = vsub.s32 %v1536, %v1538
        %v1540 = vrot.slane %v1532, %v1539
        %v1542 = vunpack.c.l.s4 1934713408
        %v1543 = vunpack.c.0.s8 %v1542
        %v1544 = vlaneseq
        %v1545 = vshrl.u32 %v1544, 7
        %v1546 = vsub.s32 %v1543, %v1545
        %v1547 = vrot.slane %v1533, %v1546
        %v1548 = vcombine.low %v1524, %v1540
        %v1549 = vcombine.high %v1524, %v1540
        %v1550 = vcombine.low %v1531, %v1547
        %v1551 = vcombine.high %v1531, %v1547
        %v1552 = vpack.c.bf16 %v1548, %v1480
        %v1553 = vpack.c.bf16 %v1549, %v1481
        %v1554 = vpack.c.bf16 %v1550, %v1482
        %v1555 = vpack.c.bf16 %v1551, %v1483
        %1558 = vrot.lane.b32.xlu0 %v807, 96
        %v1559 = vpop.permute.xlu0 %1558
        %1560 = vrot.lane.b32.xlu0 %v810, 96
        %v1561 = vpop.permute.xlu0 %1560
        %1564 = vrot.lane.b32.xlu0 %v807, 64
        %v1565 = vpop.permute.xlu0 %1564
        %1566 = vrot.lane.b32.xlu0 %v810, 64
        %v1567 = vpop.permute.xlu0 %1566
        %1570 = vrot.lane.b32.xlu0 %v807, 32
        %v1571 = vpop.permute.xlu0 %1570
        %1572 = vrot.lane.b32.xlu0 %v810, 32
        %v1573 = vpop.permute.xlu0 %1572
        %v1576 = vcombine.low %v807, %v1565
        %v1577 = vcombine.high %v807, %v1565
        %v1579 = vunpack.c.l.s4 1983009808
        %v1580 = vunpack.c.0.s8 %v1579
        %v1581 = vlaneseq
        %v1582 = vshrl.u32 %v1581, 7
        %v1583 = vsub.s32 %v1580, %v1582
        %v1584 = vrot.slane %v1576, %v1583
        %v1586 = vunpack.c.l.s4 1983009808
        %v1587 = vunpack.c.0.s8 %v1586
        %v1588 = vlaneseq
        %v1589 = vshrl.u32 %v1588, 7
        %v1590 = vsub.s32 %v1587, %v1589
        %v1591 = vrot.slane %v1577, %v1590
        %v1592 = vcombine.low %v1559, %v1571
        %v1593 = vcombine.high %v1559, %v1571
        %v1595 = vunpack.c.l.s4 1983009808
        %v1596 = vunpack.c.0.s8 %v1595
        %v1597 = vlaneseq
        %v1598 = vshrl.u32 %v1597, 7
        %v1599 = vsub.s32 %v1596, %v1598
        %v1600 = vrot.slane %v1592, %v1599
        %v1602 = vunpack.c.l.s4 1983009808
        %v1603 = vunpack.c.0.s8 %v1602
        %v1604 = vlaneseq
        %v1605 = vshrl.u32 %v1604, 7
        %v1606 = vsub.s32 %v1603, %v1605
        %v1607 = vrot.slane %v1593, %v1606
        %v1608 = vcombine.low %v1584, %v1600
        %v1609 = vcombine.high %v1584, %v1600
        %v1611 = vunpack.c.l.s4 1934713408
        %v1612 = vunpack.c.0.s8 %v1611
        %v1613 = vlaneseq
        %v1614 = vshrl.u32 %v1613, 7
        %v1615 = vsub.s32 %v1612, %v1614
        %v1616 = vrot.slane %v1608, %v1615
        %v1618 = vunpack.c.l.s4 1934713408
        %v1619 = vunpack.c.0.s8 %v1618
        %v1620 = vlaneseq
        %v1621 = vshrl.u32 %v1620, 7
        %v1622 = vsub.s32 %v1619, %v1621
        %v1623 = vrot.slane %v1609, %v1622
        %v1624 = vcombine.low %v1591, %v1607
        %v1625 = vcombine.high %v1591, %v1607
        %v1627 = vunpack.c.l.s4 1934713408
        %v1628 = vunpack.c.0.s8 %v1627
        %v1629 = vlaneseq
        %v1630 = vshrl.u32 %v1629, 7
        %v1631 = vsub.s32 %v1628, %v1630
        %v1632 = vrot.slane %v1624, %v1631
        %v1634 = vunpack.c.l.s4 1934713408
        %v1635 = vunpack.c.0.s8 %v1634
        %v1636 = vlaneseq
        %v1637 = vshrl.u32 %v1636, 7
        %v1638 = vsub.s32 %v1635, %v1637
        %v1639 = vrot.slane %v1625, %v1638
        %v1640 = vcombine.high %v1616, 0.0
        %v1641 = vcombine.high %v1623, 0.0
        %v1642 = vcombine.high %v1632, 0.0
        %v1643 = vcombine.high %v1639, 0.0
        %v1644 = vcombine.low %v810, %v1567
        %v1645 = vcombine.high %v810, %v1567
        %v1647 = vunpack.c.l.s4 1983009808
        %v1648 = vunpack.c.0.s8 %v1647
        %v1649 = vlaneseq
        %v1650 = vshrl.u32 %v1649, 7
        %v1651 = vsub.s32 %v1648, %v1650
        %v1652 = vrot.slane %v1644, %v1651
        %v1654 = vunpack.c.l.s4 1983009808
        %v1655 = vunpack.c.0.s8 %v1654
        %v1656 = vlaneseq
        %v1657 = vshrl.u32 %v1656, 7
        %v1658 = vsub.s32 %v1655, %v1657
        %v1659 = vrot.slane %v1645, %v1658
        %v1660 = vcombine.low %v1561, %v1573
        %v1661 = vcombine.high %v1561, %v1573
        %v1663 = vunpack.c.l.s4 1983009808
        %v1664 = vunpack.c.0.s8 %v1663
        %v1665 = vlaneseq
        %v1666 = vshrl.u32 %v1665, 7
        %v1667 = vsub.s32 %v1664, %v1666
        %v1668 = vrot.slane %v1660, %v1667
        %v1670 = vunpack.c.l.s4 1983009808
        %v1671 = vunpack.c.0.s8 %v1670
        %v1672 = vlaneseq
        %v1673 = vshrl.u32 %v1672, 7
        %v1674 = vsub.s32 %v1671, %v1673
        %v1675 = vrot.slane %v1661, %v1674
        %v1676 = vcombine.low %v1652, %v1668
        %v1677 = vcombine.high %v1652, %v1668
        %v1679 = vunpack.c.l.s4 1934713408
        %v1680 = vunpack.c.0.s8 %v1679
        %v1681 = vlaneseq
        %v1682 = vshrl.u32 %v1681, 7
        %v1683 = vsub.s32 %v1680, %v1682
        %v1684 = vrot.slane %v1676, %v1683
        %v1686 = vunpack.c.l.s4 1934713408
        %v1687 = vunpack.c.0.s8 %v1686
        %v1688 = vlaneseq
        %v1689 = vshrl.u32 %v1688, 7
        %v1690 = vsub.s32 %v1687, %v1689
        %v1691 = vrot.slane %v1677, %v1690
        %v1692 = vcombine.low %v1659, %v1675
        %v1693 = vcombine.high %v1659, %v1675
        %v1695 = vunpack.c.l.s4 1934713408
        %v1696 = vunpack.c.0.s8 %v1695
        %v1697 = vlaneseq
        %v1698 = vshrl.u32 %v1697, 7
        %v1699 = vsub.s32 %v1696, %v1698
        %v1700 = vrot.slane %v1692, %v1699
        %v1702 = vunpack.c.l.s4 1934713408
        %v1703 = vunpack.c.0.s8 %v1702
        %v1704 = vlaneseq
        %v1705 = vshrl.u32 %v1704, 7
        %v1706 = vsub.s32 %v1703, %v1705
        %v1707 = vrot.slane %v1693, %v1706
        %v1708 = vcombine.high %v1684, 0.0
        %v1709 = vcombine.high %v1691, 0.0
        %v1710 = vcombine.high %v1700, 0.0
        %v1711 = vcombine.high %v1707, 0.0
        %v1712 = vcombine.low %v1616, %v1623
        %v1714 = vunpack.c.l.s4 1983009808
        %v1715 = vunpack.c.0.s8 %v1714
        %v1716 = vlaneseq
        %v1717 = vshrl.u32 %v1716, 7
        %v1718 = vsub.s32 %v1715, %v1717
        %v1719 = vrot.slane %v1712, %v1718
        %v1720 = vcombine.low %v1640, %v1641
        %v1722 = vunpack.c.l.s4 1983009808
        %v1723 = vunpack.c.0.s8 %v1722
        %v1724 = vlaneseq
        %v1725 = vshrl.u32 %v1724, 7
        %v1726 = vsub.s32 %v1723, %v1725
        %v1727 = vrot.slane %v1720, %v1726
        %v1728 = vcombine.low %v1632, %v1639
        %v1730 = vunpack.c.l.s4 1983009808
        %v1731 = vunpack.c.0.s8 %v1730
        %v1732 = vlaneseq
        %v1733 = vshrl.u32 %v1732, 7
        %v1734 = vsub.s32 %v1731, %v1733
        %v1735 = vrot.slane %v1728, %v1734
        %v1736 = vcombine.low %v1642, %v1643
        %v1738 = vunpack.c.l.s4 1983009808
        %v1739 = vunpack.c.0.s8 %v1738
        %v1740 = vlaneseq
        %v1741 = vshrl.u32 %v1740, 7
        %v1742 = vsub.s32 %v1739, %v1741
        %v1743 = vrot.slane %v1736, %v1742
        %v1744 = vcombine.low %v1719, %v1727
        %v1745 = vcombine.high %v1719, %v1727
        %v1747 = vunpack.c.l.s4 1934713408
        %v1748 = vunpack.c.0.s8 %v1747
        %v1749 = vlaneseq
        %v1750 = vshrl.u32 %v1749, 7
        %v1751 = vsub.s32 %v1748, %v1750
        %v1752 = vrot.slane %v1744, %v1751
        %v1754 = vunpack.c.l.s4 1934713408
        %v1755 = vunpack.c.0.s8 %v1754
        %v1756 = vlaneseq
        %v1757 = vshrl.u32 %v1756, 7
        %v1758 = vsub.s32 %v1755, %v1757
        %v1759 = vrot.slane %v1745, %v1758
        %v1760 = vcombine.low %v1735, %v1743
        %v1761 = vcombine.high %v1735, %v1743
        %v1763 = vunpack.c.l.s4 1934713408
        %v1764 = vunpack.c.0.s8 %v1763
        %v1765 = vlaneseq
        %v1766 = vshrl.u32 %v1765, 7
        %v1767 = vsub.s32 %v1764, %v1766
        %v1768 = vrot.slane %v1760, %v1767
        %v1770 = vunpack.c.l.s4 1934713408
        %v1771 = vunpack.c.0.s8 %v1770
        %v1772 = vlaneseq
        %v1773 = vshrl.u32 %v1772, 7
        %v1774 = vsub.s32 %v1771, %v1773
        %v1775 = vrot.slane %v1761, %v1774
        %v1776 = vcombine.low %v1752, %v1768
        %v1777 = vcombine.high %v1752, %v1768
        %v1778 = vcombine.low %v1759, %v1775
        %v1779 = vcombine.high %v1759, %v1775
        %v1780 = vcombine.low %v1684, %v1691
        %v1782 = vunpack.c.l.s4 1983009808
        %v1783 = vunpack.c.0.s8 %v1782
        %v1784 = vlaneseq
        %v1785 = vshrl.u32 %v1784, 7
        %v1786 = vsub.s32 %v1783, %v1785
        %v1787 = vrot.slane %v1780, %v1786
        %v1788 = vcombine.low %v1708, %v1709
        %v1790 = vunpack.c.l.s4 1983009808
        %v1791 = vunpack.c.0.s8 %v1790
        %v1792 = vlaneseq
        %v1793 = vshrl.u32 %v1792, 7
        %v1794 = vsub.s32 %v1791, %v1793
        %v1795 = vrot.slane %v1788, %v1794
        %v1796 = vcombine.low %v1700, %v1707
        %v1798 = vunpack.c.l.s4 1983009808
        %v1799 = vunpack.c.0.s8 %v1798
        %v1800 = vlaneseq
        %v1801 = vshrl.u32 %v1800, 7
        %v1802 = vsub.s32 %v1799, %v1801
        %v1803 = vrot.slane %v1796, %v1802
        %v1804 = vcombine.low %v1710, %v1711
        %v1806 = vunpack.c.l.s4 1983009808
        %v1807 = vunpack.c.0.s8 %v1806
        %v1808 = vlaneseq
        %v1809 = vshrl.u32 %v1808, 7
        %v1810 = vsub.s32 %v1807, %v1809
        %v1811 = vrot.slane %v1804, %v1810
        %v1812 = vcombine.low %v1787, %v1795
        %v1813 = vcombine.high %v1787, %v1795
        %v1815 = vunpack.c.l.s4 1934713408
        %v1816 = vunpack.c.0.s8 %v1815
        %v1817 = vlaneseq
        %v1818 = vshrl.u32 %v1817, 7
        %v1819 = vsub.s32 %v1816, %v1818
        %v1820 = vrot.slane %v1812, %v1819
        %v1822 = vunpack.c.l.s4 1934713408
        %v1823 = vunpack.c.0.s8 %v1822
        %v1824 = vlaneseq
        %v1825 = vshrl.u32 %v1824, 7
        %v1826 = vsub.s32 %v1823, %v1825
        %v1827 = vrot.slane %v1813, %v1826
        %v1828 = vcombine.low %v1803, %v1811
        %v1829 = vcombine.high %v1803, %v1811
        %v1831 = vunpack.c.l.s4 1934713408
        %v1832 = vunpack.c.0.s8 %v1831
        %v1833 = vlaneseq
        %v1834 = vshrl.u32 %v1833, 7
        %v1835 = vsub.s32 %v1832, %v1834
        %v1836 = vrot.slane %v1828, %v1835
        %v1838 = vunpack.c.l.s4 1934713408
        %v1839 = vunpack.c.0.s8 %v1838
        %v1840 = vlaneseq
        %v1841 = vshrl.u32 %v1840, 7
        %v1842 = vsub.s32 %v1839, %v1841
        %v1843 = vrot.slane %v1829, %v1842
        %v1844 = vcombine.low %v1820, %v1836
        %v1845 = vcombine.high %v1820, %v1836
        %v1846 = vcombine.low %v1827, %v1843
        %v1847 = vcombine.high %v1827, %v1843
        %v1848 = vpack.c.bf16 %v1844, %v1776
        %v1849 = vpack.c.bf16 %v1845, %v1777
        %v1850 = vpack.c.bf16 %v1846, %v1778
        %v1851 = vpack.c.bf16 %v1847, %v1779
        %vm1852 = vcmask 261120
        %v1854 = vsel %vm1852, %v1256, 0
        %v1857 = vsel %vm1852, %v1552, 0
        %1859 = vmatprep.subr.bf16.mxu0 0
        %1860 = vmatpush1.bf16.xpose.msra.mxu0 %v1857
        %1861 = vmatprep.subr.bf16.mxu0 0
        %1862 = vmatpush1.bf16.xpose.msra.mxu0 0
        %1863 = vmatprep.subr.bf16.mxu0 0
        %1864 = vmatpush1.bf16.xpose.msra.mxu0 0
        %1865 = vmatprep.subr.bf16.mxu0 0
        %1866 = vmatpush1.bf16.xpose.msra.mxu0 0
        %1867 = vmatprep.subr.bf16.mxu0 0
        %1868 = vmatpush1.bf16.xpose.msra.mxu0 0
        %1869 = vmatprep.subr.bf16.mxu0 0
        %1870 = vmatpush1.bf16.xpose.msra.mxu0 0
        %1871 = vmatprep.subr.bf16.mxu0 0
        %1872 = vmatpush1.bf16.xpose.msra.mxu0 0
        %1873 = vmatprep.subr.bf16.mxu0 0
        %1874 = vmatpush1.bf16.xpose.msra.mxu0 0
        %1875 = vmatprep.subr.bf16.mxu0 0
        %1876 = vmatpush1.bf16.xpose.msra.mxu0 0
        %1877 = vmatprep.subr.bf16.mxu0 0
        %1878 = vmatpush1.bf16.xpose.msra.mxu0 0
        %1879 = vmatprep.subr.bf16.mxu0 0
        %1880 = vmatpush1.bf16.xpose.msra.mxu0 0
        %1881 = vmatprep.subr.bf16.mxu0 0
        %1882 = vmatpush1.bf16.xpose.msra.mxu0 0
        %1883 = vmatprep.subr.bf16.mxu0 0
        %1884 = vmatpush1.bf16.xpose.msra.mxu0 0
        %1885 = vmatprep.subr.bf16.mxu0 0
        %1886 = vmatpush1.bf16.xpose.msra.mxu0 0
        %1887 = vmatprep.subr.bf16.mxu0 0
        %1888 = vmatpush1.bf16.xpose.msra.mxu0 0
        %1889 = vmatprep.subr.bf16.mxu0 0
        %1890 = vmatpush1.bf16.xpose.msra.mxu0 0
        %1891 = vmatprep.mubr.bf16.mxu0 0
        %1892 = vmatmul.mubr.bf16.gmra.mrb[0].mxu0 %v1854
        %v1893 = vpop.f32.mrb[0].mxu0
        %v1894 = vadd.f32 0.0, %v1893
        %v1895 = vpop.f32.mrb[0].mxu0
        %v1896 = vpop.f32.mrb[0].mxu0
        %v1897 = vadd.f32 0.0, %v1896
        %v1898 = vpop.f32.mrb[0].mxu0
        %1899 = vdwg.mxu0
        %v1901 = vsel %vm1852, %v1257, 0
        %v1904 = vsel %vm1852, %v1553, 0
        %1906 = vmatprep.subr.bf16.mxu0 0
        %1907 = vmatpush1.bf16.xpose.msra.mxu0 %v1904
        %1908 = vmatprep.subr.bf16.mxu0 0
        %1909 = vmatpush1.bf16.xpose.msra.mxu0 0
        %1910 = vmatprep.subr.bf16.mxu0 0
        %1911 = vmatpush1.bf16.xpose.msra.mxu0 0
        %1912 = vmatprep.subr.bf16.mxu0 0
        %1913 = vmatpush1.bf16.xpose.msra.mxu0 0
        %1914 = vmatprep.subr.bf16.mxu0 0
        %1915 = vmatpush1.bf16.xpose.msra.mxu0 0
        %1916 = vmatprep.subr.bf16.mxu0 0
        %1917 = vmatpush1.bf16.xpose.msra.mxu0 0
        %1918 = vmatprep.subr.bf16.mxu0 0
        %1919 = vmatpush1.bf16.xpose.msra.mxu0 0
        %1920 = vmatprep.subr.bf16.mxu0 0
        %1921 = vmatpush1.bf16.xpose.msra.mxu0 0
        %1922 = vmatprep.subr.bf16.mxu0 0
        %1923 = vmatpush1.bf16.xpose.msra.mxu0 0
        %1924 = vmatprep.subr.bf16.mxu0 0
        %1925 = vmatpush1.bf16.xpose.msra.mxu0 0
        %1926 = vmatprep.subr.bf16.mxu0 0
        %1927 = vmatpush1.bf16.xpose.msra.mxu0 0
        %1928 = vmatprep.subr.bf16.mxu0 0
        %1929 = vmatpush1.bf16.xpose.msra.mxu0 0
        %1930 = vmatprep.subr.bf16.mxu0 0
        %1931 = vmatpush1.bf16.xpose.msra.mxu0 0
        %1932 = vmatprep.subr.bf16.mxu0 0
        %1933 = vmatpush1.bf16.xpose.msra.mxu0 0
        %1934 = vmatprep.subr.bf16.mxu0 0
        %1935 = vmatpush1.bf16.xpose.msra.mxu0 0
        %1936 = vmatprep.subr.bf16.mxu0 0
        %1937 = vmatpush1.bf16.xpose.msra.mxu0 0
        %1938 = vmatprep.mubr.bf16.mxu0 0
        %1939 = vmatmul.mubr.bf16.gmra.mrb[0].mxu0 %v1901
        %v1940 = vpop.f32.mrb[0].mxu0
        %v1941 = vadd.f32 0.0, %v1940
        %v1942 = vpop.f32.mrb[0].mxu0
        %v1943 = vpop.f32.mrb[0].mxu0
        %v1944 = vadd.f32 0.0, %v1943
        %v1945 = vpop.f32.mrb[0].mxu0
        %1946 = vdwg.mxu0
        %v1948 = vsel %vm1852, %v1258, 0
        %v1951 = vsel %vm1852, %v1554, 0
        %1953 = vmatprep.subr.bf16.mxu0 0
        %1954 = vmatpush1.bf16.xpose.msra.mxu0 %v1951
        %1955 = vmatprep.subr.bf16.mxu0 0
        %1956 = vmatpush1.bf16.xpose.msra.mxu0 0
        %1957 = vmatprep.subr.bf16.mxu0 0
        %1958 = vmatpush1.bf16.xpose.msra.mxu0 0
        %1959 = vmatprep.subr.bf16.mxu0 0
        %1960 = vmatpush1.bf16.xpose.msra.mxu0 0
        %1961 = vmatprep.subr.bf16.mxu0 0
        %1962 = vmatpush1.bf16.xpose.msra.mxu0 0
        %1963 = vmatprep.subr.bf16.mxu0 0
        %1964 = vmatpush1.bf16.xpose.msra.mxu0 0
        %1965 = vmatprep.subr.bf16.mxu0 0
        %1966 = vmatpush1.bf16.xpose.msra.mxu0 0
        %1967 = vmatprep.subr.bf16.mxu0 0
        %1968 = vmatpush1.bf16.xpose.msra.mxu0 0
        %1969 = vmatprep.subr.bf16.mxu0 0
        %1970 = vmatpush1.bf16.xpose.msra.mxu0 0
        %1971 = vmatprep.subr.bf16.mxu0 0
        %1972 = vmatpush1.bf16.xpose.msra.mxu0 0
        %1973 = vmatprep.subr.bf16.mxu0 0
        %1974 = vmatpush1.bf16.xpose.msra.mxu0 0
        %1975 = vmatprep.subr.bf16.mxu0 0
        %1976 = vmatpush1.bf16.xpose.msra.mxu0 0
        %1977 = vmatprep.subr.bf16.mxu0 0
        %1978 = vmatpush1.bf16.xpose.msra.mxu0 0
        %1979 = vmatprep.subr.bf16.mxu0 0
        %1980 = vmatpush1.bf16.xpose.msra.mxu0 0
        %1981 = vmatprep.subr.bf16.mxu0 0
        %1982 = vmatpush1.bf16.xpose.msra.mxu0 0
        %1983 = vmatprep.subr.bf16.mxu0 0
        %1984 = vmatpush1.bf16.xpose.msra.mxu0 0
        %1985 = vmatprep.mubr.bf16.mxu0 0
        %1986 = vmatmul.mubr.bf16.gmra.mrb[0].mxu0 %v1948
        %v1987 = vpop.f32.mrb[0].mxu0
        %v1988 = vadd.f32 0.0, %v1987
        %v1989 = vpop.f32.mrb[0].mxu0
        %v1990 = vpop.f32.mrb[0].mxu0
        %v1991 = vadd.f32 0.0, %v1990
        %v1992 = vpop.f32.mrb[0].mxu0
        %1993 = vdwg.mxu0
        %v1995 = vsel %vm1852, %v1259, 0
        %v1998 = vsel %vm1852, %v1555, 0
        %2000 = vmatprep.subr.bf16.mxu0 0
        %2001 = vmatpush1.bf16.xpose.msra.mxu0 %v1998
        %2002 = vmatprep.subr.bf16.mxu0 0
        %2003 = vmatpush1.bf16.xpose.msra.mxu0 0
        %2004 = vmatprep.subr.bf16.mxu0 0
        %2005 = vmatpush1.bf16.xpose.msra.mxu0 0
        %2006 = vmatprep.subr.bf16.mxu0 0
        %2007 = vmatpush1.bf16.xpose.msra.mxu0 0
        %2008 = vmatprep.subr.bf16.mxu0 0
        %2009 = vmatpush1.bf16.xpose.msra.mxu0 0
        %2010 = vmatprep.subr.bf16.mxu0 0
        %2011 = vmatpush1.bf16.xpose.msra.mxu0 0
        %2012 = vmatprep.subr.bf16.mxu0 0
        %2013 = vmatpush1.bf16.xpose.msra.mxu0 0
        %2014 = vmatprep.subr.bf16.mxu0 0
        %2015 = vmatpush1.bf16.xpose.msra.mxu0 0
        %2016 = vmatprep.subr.bf16.mxu0 0
        %2017 = vmatpush1.bf16.xpose.msra.mxu0 0
        %2018 = vmatprep.subr.bf16.mxu0 0
        %2019 = vmatpush1.bf16.xpose.msra.mxu0 0
        %2020 = vmatprep.subr.bf16.mxu0 0
        %2021 = vmatpush1.bf16.xpose.msra.mxu0 0
        %2022 = vmatprep.subr.bf16.mxu0 0
        %2023 = vmatpush1.bf16.xpose.msra.mxu0 0
        %2024 = vmatprep.subr.bf16.mxu0 0
        %2025 = vmatpush1.bf16.xpose.msra.mxu0 0
        %2026 = vmatprep.subr.bf16.mxu0 0
        %2027 = vmatpush1.bf16.xpose.msra.mxu0 0
        %2028 = vmatprep.subr.bf16.mxu0 0
        %2029 = vmatpush1.bf16.xpose.msra.mxu0 0
        %2030 = vmatprep.subr.bf16.mxu0 0
        %2031 = vmatpush1.bf16.xpose.msra.mxu0 0
        %2032 = vmatprep.mubr.bf16.mxu0 0
        %2033 = vmatmul.mubr.bf16.gmra.mrb[0].mxu0 %v1995
        %v2034 = vpop.f32.mrb[0].mxu0
        %v2035 = vadd.f32 0.0, %v2034
        %v2036 = vpop.f32.mrb[0].mxu0
        %v2037 = vpop.f32.mrb[0].mxu0
        %v2038 = vadd.f32 0.0, %v2037
        %v2039 = vpop.f32.mrb[0].mxu0
        %2040 = vdwg.mxu0
        %v2041 = vmul.f32 %v1894, 0.17677669
        %v2042 = vmul.f32 %v1897, 0.17677669
        %v2043 = vmul.f32 %v1941, 0.17677669
        %v2044 = vmul.f32 %v1944, 0.17677669
        %v2045 = vmul.f32 %v1988, 0.17677669
        %v2046 = vmul.f32 %v1991, 0.17677669
        %v2047 = vmul.f32 %v2035, 0.17677669
        %v2048 = vmul.f32 %v2038, 0.17677669
        %v2049 = vsel %vm540, 1, 0
        %v2050 = vsel %vm541, 1, 0
        %vm2051 = vcmp.eq.s32.totalorder %v2049, 1
        %vm2052 = vcmp.eq.s32.totalorder %v2050, 1
        %v2053 = vsel %vm2051, %v2041, -1e+30
        %v2054 = vsel %vm2052, %v2042, -1e+30
        %v2055 = vsel %vm2051, %v2043, -1e+30
        %v2056 = vsel %vm2052, %v2044, -1e+30
        %v2057 = vsel %vm2051, %v2045, -1e+30
        %v2058 = vsel %vm2052, %v2046, -1e+30
        %v2059 = vsel %vm2051, %v2047, -1e+30
        %v2060 = vsel %vm2052, %v2048, -1e+30
        %vm2061 = vcmask 130048
        %v2062 = vsel %vm2061, %v2053, -inf
        %2063 = vmax.xlane.f32.xlu0 %v2062
        %v2064 = vpop.xlane.xlu0 %2063
        %v2065 = vsel %vm2061, %v2054, -inf
        %2066 = vmax.xlane.f32.xlu0 %v2065
        %v2067 = vpop.xlane.xlu0 %2066
        %v2068 = vsel %vm2061, %v2055, -inf
        %2069 = vmax.xlane.f32.xlu0 %v2068
        %v2070 = vpop.xlane.xlu0 %2069
        %v2071 = vsel %vm2061, %v2056, -inf
        %2072 = vmax.xlane.f32.xlu0 %v2071
        %v2073 = vpop.xlane.xlu0 %2072
        %v2074 = vsel %vm2061, %v2057, -inf
        %2075 = vmax.xlane.f32.xlu0 %v2074
        %v2076 = vpop.xlane.xlu0 %2075
        %v2077 = vsel %vm2061, %v2058, -inf
        %2078 = vmax.xlane.f32.xlu0 %v2077
        %v2079 = vpop.xlane.xlu0 %2078
        %v2080 = vsel %vm2061, %v2059, -inf
        %2081 = vmax.xlane.f32.xlu0 %v2080
        %v2082 = vpop.xlane.xlu0 %2081
        %v2083 = vsel %vm2061, %v2060, -inf
        %2084 = vmax.xlane.f32.xlu0 %v2083
        %v2085 = vpop.xlane.xlu0 %2084
        %v2086 = vsub.f32 %v2053, %v2064
        %v2087 = vsub.f32 %v2054, %v2067
        %v2088 = vsub.f32 %v2055, %v2070
        %v2089 = vsub.f32 %v2056, %v2073
        %v2090 = vsub.f32 %v2057, %v2076
        %v2091 = vsub.f32 %v2058, %v2079
        %v2092 = vsub.f32 %v2059, %v2082
        %v2093 = vsub.f32 %v2060, %v2085
        %v2094 = vmul.f32 %v2086, 1.442695
        %v2095 = vpow.pop %v2094
        %v2096 = vmul.f32 %v2087, 1.442695
        %v2097 = vpow.pop %v2096
        %v2098 = vmul.f32 %v2088, 1.442695
        %v2099 = vpow.pop %v2098
        %v2100 = vmul.f32 %v2089, 1.442695
        %v2101 = vpow.pop %v2100
        %v2102 = vmul.f32 %v2090, 1.442695
        %v2103 = vpow.pop %v2102
        %v2104 = vmul.f32 %v2091, 1.442695
        %v2105 = vpow.pop %v2104
        %v2106 = vmul.f32 %v2092, 1.442695
        %v2107 = vpow.pop %v2106
        %v2108 = vmul.f32 %v2093, 1.442695
        %v2109 = vpow.pop %v2108
        %v2110 = vsel %vm2061, %v2095, 0.0
        %2111 = vadd.xlane.f32.xlu0 %v2110
        %v2112 = vpop.xlane.xlu0 %2111
        %v2113 = vsel %vm2061, %v2097, 0.0
        %2114 = vadd.xlane.f32.xlu0 %v2113
        %v2115 = vpop.xlane.xlu0 %2114
        %v2116 = vsel %vm2061, %v2099, 0.0
        %2117 = vadd.xlane.f32.xlu0 %v2116
        %v2118 = vpop.xlane.xlu0 %2117
        %v2119 = vsel %vm2061, %v2101, 0.0
        %2120 = vadd.xlane.f32.xlu0 %v2119
        %v2121 = vpop.xlane.xlu0 %2120
        %v2122 = vsel %vm2061, %v2103, 0.0
        %2123 = vadd.xlane.f32.xlu0 %v2122
        %v2124 = vpop.xlane.xlu0 %2123
        %v2125 = vsel %vm2061, %v2105, 0.0
        %2126 = vadd.xlane.f32.xlu0 %v2125
        %v2127 = vpop.xlane.xlu0 %2126
        %v2128 = vsel %vm2061, %v2107, 0.0
        %2129 = vadd.xlane.f32.xlu0 %v2128
        %v2130 = vpop.xlane.xlu0 %2129
        %v2131 = vsel %vm2061, %v2109, 0.0
        %2132 = vadd.xlane.f32.xlu0 %v2131
        %v2133 = vpop.xlane.xlu0 %2132
        %v2134 = vrcp.pop %v2112
        %v2135 = vmul.f32 %v2095, %v2134
        %v2136 = vrcp.pop %v2115
        %v2137 = vmul.f32 %v2097, %v2136
        %v2138 = vrcp.pop %v2118
        %v2139 = vmul.f32 %v2099, %v2138
        %v2140 = vrcp.pop %v2121
        %v2141 = vmul.f32 %v2101, %v2140
        %v2142 = vrcp.pop %v2124
        %v2143 = vmul.f32 %v2103, %v2142
        %v2144 = vrcp.pop %v2127
        %v2145 = vmul.f32 %v2105, %v2144
        %v2146 = vrcp.pop %v2130
        %v2147 = vmul.f32 %v2107, %v2146
        %v2148 = vrcp.pop %v2133
        %v2149 = vmul.f32 %v2109, %v2148
        %v2150 = vpack.c.bf16 %v2137, %v2135
        %v2151 = vpack.c.bf16 %v2141, %v2139
        %v2152 = vpack.c.bf16 %v2145, %v2143
        %v2153 = vpack.c.bf16 %v2149, %v2147
        %v2155 = vsel %vm2061, %v2150, 0
        %2157 = vmatprep.subr.bf16.mxu0 0
        %2158 = vmatpush1.bf16.msra.mxu0 %v1848
        %2159 = vmatprep.subr.bf16.mxu0 0
        %2160 = vmatpush1.bf16.msra.mxu0 0
        %2161 = vmatprep.subr.bf16.mxu0 0
        %2162 = vmatpush1.bf16.msra.mxu0 0
        %2163 = vmatprep.subr.bf16.mxu0 0
        %2164 = vmatpush1.bf16.msra.mxu0 0
        %2165 = vmatprep.subr.bf16.mxu0 0
        %2166 = vmatpush1.bf16.msra.mxu0 0
        %2167 = vmatprep.subr.bf16.mxu0 0
        %2168 = vmatpush1.bf16.msra.mxu0 0
        %2169 = vmatprep.subr.bf16.mxu0 0
        %2170 = vmatpush1.bf16.msra.mxu0 0
        %2171 = vmatprep.subr.bf16.mxu0 0
        %2172 = vmatpush1.bf16.msra.mxu0 0
        %2173 = vmatprep.subr.bf16.mxu0 0
        %2174 = vmatpush1.bf16.msra.mxu0 0
        %2175 = vmatprep.subr.bf16.mxu0 0
        %2176 = vmatpush1.bf16.msra.mxu0 0
        %2177 = vmatprep.subr.bf16.mxu0 0
        %2178 = vmatpush1.bf16.msra.mxu0 0
        %2179 = vmatprep.subr.bf16.mxu0 0
        %2180 = vmatpush1.bf16.msra.mxu0 0
        %2181 = vmatprep.subr.bf16.mxu0 0
        %2182 = vmatpush1.bf16.msra.mxu0 0
        %2183 = vmatprep.subr.bf16.mxu0 0
        %2184 = vmatpush1.bf16.msra.mxu0 0
        %2185 = vmatprep.subr.bf16.mxu0 0
        %2186 = vmatpush1.bf16.msra.mxu0 0
        %2187 = vmatprep.subr.bf16.mxu0 0
        %2188 = vmatpush1.bf16.msra.mxu0 0
        %2189 = vmatprep.mubr.bf16.mxu0 0
        %2190 = vmatmul.mubr.bf16.gmra.mrb[0].mxu0 %v2155
        %v2191 = vpop.f32.mrb[0].mxu0
        %v2192 = vadd.f32 0.0, %v2191
        %v2193 = vpop.f32.mrb[0].mxu0
        %v2194 = vpop.f32.mrb[0].mxu0
        %v2195 = vadd.f32 0.0, %v2194
        %v2196 = vpop.f32.mrb[0].mxu0
        %2197 = vdwg.mxu0
        %v2199 = vsel %vm2061, %v2151, 0
        %2201 = vmatprep.subr.bf16.mxu0 0
        %2202 = vmatpush1.bf16.msra.mxu0 %v1849
        %2203 = vmatprep.subr.bf16.mxu0 0
        %2204 = vmatpush1.bf16.msra.mxu0 0
        %2205 = vmatprep.subr.bf16.mxu0 0
        %2206 = vmatpush1.bf16.msra.mxu0 0
        %2207 = vmatprep.subr.bf16.mxu0 0
        %2208 = vmatpush1.bf16.msra.mxu0 0
        %2209 = vmatprep.subr.bf16.mxu0 0
        %2210 = vmatpush1.bf16.msra.mxu0 0
        %2211 = vmatprep.subr.bf16.mxu0 0
        %2212 = vmatpush1.bf16.msra.mxu0 0
        %2213 = vmatprep.subr.bf16.mxu0 0
        %2214 = vmatpush1.bf16.msra.mxu0 0
        %2215 = vmatprep.subr.bf16.mxu0 0
        %2216 = vmatpush1.bf16.msra.mxu0 0
        %2217 = vmatprep.subr.bf16.mxu0 0
        %2218 = vmatpush1.bf16.msra.mxu0 0
        %2219 = vmatprep.subr.bf16.mxu0 0
        %2220 = vmatpush1.bf16.msra.mxu0 0
        %2221 = vmatprep.subr.bf16.mxu0 0
        %2222 = vmatpush1.bf16.msra.mxu0 0
        %2223 = vmatprep.subr.bf16.mxu0 0
        %2224 = vmatpush1.bf16.msra.mxu0 0
        %2225 = vmatprep.subr.bf16.mxu0 0
        %2226 = vmatpush1.bf16.msra.mxu0 0
        %2227 = vmatprep.subr.bf16.mxu0 0
        %2228 = vmatpush1.bf16.msra.mxu0 0
        %2229 = vmatprep.subr.bf16.mxu0 0
        %2230 = vmatpush1.bf16.msra.mxu0 0
        %2231 = vmatprep.subr.bf16.mxu0 0
        %2232 = vmatpush1.bf16.msra.mxu0 0
        %2233 = vmatprep.mubr.bf16.mxu0 0
        %2234 = vmatmul.mubr.bf16.gmra.mrb[0].mxu0 %v2199
        %v2235 = vpop.f32.mrb[0].mxu0
        %v2236 = vadd.f32 0.0, %v2235
        %v2237 = vpop.f32.mrb[0].mxu0
        %v2238 = vpop.f32.mrb[0].mxu0
        %v2239 = vadd.f32 0.0, %v2238
        %v2240 = vpop.f32.mrb[0].mxu0
        %2241 = vdwg.mxu0
        %v2243 = vsel %vm2061, %v2152, 0
        %2245 = vmatprep.subr.bf16.mxu0 0
        %2246 = vmatpush1.bf16.msra.mxu0 %v1850
        %2247 = vmatprep.subr.bf16.mxu0 0
        %2248 = vmatpush1.bf16.msra.mxu0 0
        %2249 = vmatprep.subr.bf16.mxu0 0
        %2250 = vmatpush1.bf16.msra.mxu0 0
        %2251 = vmatprep.subr.bf16.mxu0 0
        %2252 = vmatpush1.bf16.msra.mxu0 0
        %2253 = vmatprep.subr.bf16.mxu0 0
        %2254 = vmatpush1.bf16.msra.mxu0 0
        %2255 = vmatprep.subr.bf16.mxu0 0
        %2256 = vmatpush1.bf16.msra.mxu0 0
        %2257 = vmatprep.subr.bf16.mxu0 0
        %2258 = vmatpush1.bf16.msra.mxu0 0
        %2259 = vmatprep.subr.bf16.mxu0 0
        %2260 = vmatpush1.bf16.msra.mxu0 0
        %2261 = vmatprep.subr.bf16.mxu0 0
        %2262 = vmatpush1.bf16.msra.mxu0 0
        %2263 = vmatprep.subr.bf16.mxu0 0
        %2264 = vmatpush1.bf16.msra.mxu0 0
        %2265 = vmatprep.subr.bf16.mxu0 0
        %2266 = vmatpush1.bf16.msra.mxu0 0
        %2267 = vmatprep.subr.bf16.mxu0 0
        %2268 = vmatpush1.bf16.msra.mxu0 0
        %2269 = vmatprep.subr.bf16.mxu0 0
        %2270 = vmatpush1.bf16.msra.mxu0 0
        %2271 = vmatprep.subr.bf16.mxu0 0
        %2272 = vmatpush1.bf16.msra.mxu0 0
        %2273 = vmatprep.subr.bf16.mxu0 0
        %2274 = vmatpush1.bf16.msra.mxu0 0
        %2275 = vmatprep.subr.bf16.mxu0 0
        %2276 = vmatpush1.bf16.msra.mxu0 0
        %2277 = vmatprep.mubr.bf16.mxu0 0
        %2278 = vmatmul.mubr.bf16.gmra.mrb[0].mxu0 %v2243
        %v2279 = vpop.f32.mrb[0].mxu0
        %v2280 = vadd.f32 0.0, %v2279
        %v2281 = vpop.f32.mrb[0].mxu0
        %v2282 = vpop.f32.mrb[0].mxu0
        %v2283 = vadd.f32 0.0, %v2282
        %v2284 = vpop.f32.mrb[0].mxu0
        %2285 = vdwg.mxu0
        %v2287 = vsel %vm2061, %v2153, 0
        %2289 = vmatprep.subr.bf16.mxu0 0
        %2290 = vmatpush1.bf16.msra.mxu0 %v1851
        %2291 = vmatprep.subr.bf16.mxu0 0
        %2292 = vmatpush1.bf16.msra.mxu0 0
        %2293 = vmatprep.subr.bf16.mxu0 0
        %2294 = vmatpush1.bf16.msra.mxu0 0
        %2295 = vmatprep.subr.bf16.mxu0 0
        %2296 = vmatpush1.bf16.msra.mxu0 0
        %2297 = vmatprep.subr.bf16.mxu0 0
        %2298 = vmatpush1.bf16.msra.mxu0 0
        %2299 = vmatprep.subr.bf16.mxu0 0
        %2300 = vmatpush1.bf16.msra.mxu0 0
        %2301 = vmatprep.subr.bf16.mxu0 0
        %2302 = vmatpush1.bf16.msra.mxu0 0
        %2303 = vmatprep.subr.bf16.mxu0 0
        %2304 = vmatpush1.bf16.msra.mxu0 0
        %2305 = vmatprep.subr.bf16.mxu0 0
        %2306 = vmatpush1.bf16.msra.mxu0 0
        %2307 = vmatprep.subr.bf16.mxu0 0
        %2308 = vmatpush1.bf16.msra.mxu0 0
        %2309 = vmatprep.subr.bf16.mxu0 0
        %2310 = vmatpush1.bf16.msra.mxu0 0
        %2311 = vmatprep.subr.bf16.mxu0 0
        %2312 = vmatpush1.bf16.msra.mxu0 0
        %2313 = vmatprep.subr.bf16.mxu0 0
        %2314 = vmatpush1.bf16.msra.mxu0 0
        %2315 = vmatprep.subr.bf16.mxu0 0
        %2316 = vmatpush1.bf16.msra.mxu0 0
        %2317 = vmatprep.subr.bf16.mxu0 0
        %2318 = vmatpush1.bf16.msra.mxu0 0
        %2319 = vmatprep.subr.bf16.mxu0 0
        %2320 = vmatpush1.bf16.msra.mxu0 0
        %2321 = vmatprep.mubr.bf16.mxu0 0
        %2322 = vmatmul.mubr.bf16.gmra.mrb[0].mxu0 %v2287
        %v2323 = vpop.f32.mrb[0].mxu0
        %v2324 = vadd.f32 0.0, %v2323
        %v2325 = vpop.f32.mrb[0].mxu0
        %v2326 = vpop.f32.mrb[0].mxu0
        %v2327 = vadd.f32 0.0, %v2326
        %v2328 = vpop.f32.mrb[0].mxu0
        %2329 = vdwg.mxu0
        %v2330 = vcombine.low %v2192, %v2280
        %v2331 = vcombine.high %v2192, %v2280
        %v2333 = vunpack.c.l.s4 1983009808
        %v2334 = vunpack.c.0.s8 %v2333
        %v2335 = vlaneseq
        %v2336 = vshrl.u32 %v2335, 7
        %v2337 = vsub.s32 %v2334, %v2336
        %v2338 = vrot.slane %v2330, %v2337
        %v2340 = vunpack.c.l.s4 1983009808
        %v2341 = vunpack.c.0.s8 %v2340
        %v2342 = vlaneseq
        %v2343 = vshrl.u32 %v2342, 7
        %v2344 = vsub.s32 %v2341, %v2343
        %v2345 = vrot.slane %v2331, %v2344
        %v2346 = vcombine.low %v2236, %v2324
        %v2347 = vcombine.high %v2236, %v2324
        %v2349 = vunpack.c.l.s4 1983009808
        %v2350 = vunpack.c.0.s8 %v2349
        %v2351 = vlaneseq
        %v2352 = vshrl.u32 %v2351, 7
        %v2353 = vsub.s32 %v2350, %v2352
        %v2354 = vrot.slane %v2346, %v2353
        %v2356 = vunpack.c.l.s4 1983009808
        %v2357 = vunpack.c.0.s8 %v2356
        %v2358 = vlaneseq
        %v2359 = vshrl.u32 %v2358, 7
        %v2360 = vsub.s32 %v2357, %v2359
        %v2361 = vrot.slane %v2347, %v2360
        %v2362 = vcombine.low %v2338, %v2354
        %v2363 = vcombine.high %v2338, %v2354
        %v2365 = vunpack.c.l.s4 1934713408
        %v2366 = vunpack.c.0.s8 %v2365
        %v2367 = vlaneseq
        %v2368 = vshrl.u32 %v2367, 7
        %v2369 = vsub.s32 %v2366, %v2368
        %v2370 = vrot.slane %v2362, %v2369
        %v2372 = vunpack.c.l.s4 1934713408
        %v2373 = vunpack.c.0.s8 %v2372
        %v2374 = vlaneseq
        %v2375 = vshrl.u32 %v2374, 7
        %v2376 = vsub.s32 %v2373, %v2375
        %v2377 = vrot.slane %v2363, %v2376
        %v2378 = vcombine.low %v2345, %v2361
        %v2379 = vcombine.high %v2345, %v2361
        %v2381 = vunpack.c.l.s4 1934713408
        %v2382 = vunpack.c.0.s8 %v2381
        %v2383 = vlaneseq
        %v2384 = vshrl.u32 %v2383, 7
        %v2385 = vsub.s32 %v2382, %v2384
        %v2386 = vrot.slane %v2378, %v2385
        %v2388 = vunpack.c.l.s4 1934713408
        %v2389 = vunpack.c.0.s8 %v2388
        %v2390 = vlaneseq
        %v2391 = vshrl.u32 %v2390, 7
        %v2392 = vsub.s32 %v2389, %v2391
        %v2393 = vrot.slane %v2379, %v2392
        %v2394 = vcombine.high %v2370, 0.0
        %v2395 = vcombine.high %v2377, 0.0
        %v2396 = vcombine.high %v2386, 0.0
        %v2397 = vcombine.high %v2393, 0.0
        %v2398 = vcombine.low %v2195, %v2283
        %v2399 = vcombine.high %v2195, %v2283
        %v2401 = vunpack.c.l.s4 1983009808
        %v2402 = vunpack.c.0.s8 %v2401
        %v2403 = vlaneseq
        %v2404 = vshrl.u32 %v2403, 7
        %v2405 = vsub.s32 %v2402, %v2404
        %v2406 = vrot.slane %v2398, %v2405
        %v2408 = vunpack.c.l.s4 1983009808
        %v2409 = vunpack.c.0.s8 %v2408
        %v2410 = vlaneseq
        %v2411 = vshrl.u32 %v2410, 7
        %v2412 = vsub.s32 %v2409, %v2411
        %v2413 = vrot.slane %v2399, %v2412
        %v2414 = vcombine.low %v2239, %v2327
        %v2415 = vcombine.high %v2239, %v2327
        %v2417 = vunpack.c.l.s4 1983009808
        %v2418 = vunpack.c.0.s8 %v2417
        %v2419 = vlaneseq
        %v2420 = vshrl.u32 %v2419, 7
        %v2421 = vsub.s32 %v2418, %v2420
        %v2422 = vrot.slane %v2414, %v2421
        %v2424 = vunpack.c.l.s4 1983009808
        %v2425 = vunpack.c.0.s8 %v2424
        %v2426 = vlaneseq
        %v2427 = vshrl.u32 %v2426, 7
        %v2428 = vsub.s32 %v2425, %v2427
        %v2429 = vrot.slane %v2415, %v2428
        %v2430 = vcombine.low %v2406, %v2422
        %v2431 = vcombine.high %v2406, %v2422
        %v2433 = vunpack.c.l.s4 1934713408
        %v2434 = vunpack.c.0.s8 %v2433
        %v2435 = vlaneseq
        %v2436 = vshrl.u32 %v2435, 7
        %v2437 = vsub.s32 %v2434, %v2436
        %v2438 = vrot.slane %v2430, %v2437
        %v2440 = vunpack.c.l.s4 1934713408
        %v2441 = vunpack.c.0.s8 %v2440
        %v2442 = vlaneseq
        %v2443 = vshrl.u32 %v2442, 7
        %v2444 = vsub.s32 %v2441, %v2443
        %v2445 = vrot.slane %v2431, %v2444
        %v2446 = vcombine.low %v2413, %v2429
        %v2447 = vcombine.high %v2413, %v2429
        %v2449 = vunpack.c.l.s4 1934713408
        %v2450 = vunpack.c.0.s8 %v2449
        %v2451 = vlaneseq
        %v2452 = vshrl.u32 %v2451, 7
        %v2453 = vsub.s32 %v2450, %v2452
        %v2454 = vrot.slane %v2446, %v2453
        %v2456 = vunpack.c.l.s4 1934713408
        %v2457 = vunpack.c.0.s8 %v2456
        %v2458 = vlaneseq
        %v2459 = vshrl.u32 %v2458, 7
        %v2460 = vsub.s32 %v2457, %v2459
        %v2461 = vrot.slane %v2447, %v2460
        %v2462 = vcombine.high %v2438, 0.0
        %v2463 = vcombine.high %v2445, 0.0
        %v2464 = vcombine.high %v2454, 0.0
        %v2465 = vcombine.high %v2461, 0.0
        %v2466 = vcombine.low %v2370, %v2377
        %v2468 = vunpack.c.l.s4 1983009808
        %v2469 = vunpack.c.0.s8 %v2468
        %v2470 = vlaneseq
        %v2471 = vshrl.u32 %v2470, 7
        %v2472 = vsub.s32 %v2469, %v2471
        %v2473 = vrot.slane %v2466, %v2472
        %v2474 = vcombine.low %v2394, %v2395
        %v2476 = vunpack.c.l.s4 1983009808
        %v2477 = vunpack.c.0.s8 %v2476
        %v2478 = vlaneseq
        %v2479 = vshrl.u32 %v2478, 7
        %v2480 = vsub.s32 %v2477, %v2479
        %v2481 = vrot.slane %v2474, %v2480
        %v2482 = vcombine.low %v2386, %v2393
        %v2484 = vunpack.c.l.s4 1983009808
        %v2485 = vunpack.c.0.s8 %v2484
        %v2486 = vlaneseq
        %v2487 = vshrl.u32 %v2486, 7
        %v2488 = vsub.s32 %v2485, %v2487
        %v2489 = vrot.slane %v2482, %v2488
        %v2490 = vcombine.low %v2396, %v2397
        %v2492 = vunpack.c.l.s4 1983009808
        %v2493 = vunpack.c.0.s8 %v2492
        %v2494 = vlaneseq
        %v2495 = vshrl.u32 %v2494, 7
        %v2496 = vsub.s32 %v2493, %v2495
        %v2497 = vrot.slane %v2490, %v2496
        %v2498 = vcombine.low %v2473, %v2481
        %v2499 = vcombine.high %v2473, %v2481
        %v2501 = vunpack.c.l.s4 1934713408
        %v2502 = vunpack.c.0.s8 %v2501
        %v2503 = vlaneseq
        %v2504 = vshrl.u32 %v2503, 7
        %v2505 = vsub.s32 %v2502, %v2504
        %v2506 = vrot.slane %v2498, %v2505
        %v2508 = vunpack.c.l.s4 1934713408
        %v2509 = vunpack.c.0.s8 %v2508
        %v2510 = vlaneseq
        %v2511 = vshrl.u32 %v2510, 7
        %v2512 = vsub.s32 %v2509, %v2511
        %v2513 = vrot.slane %v2499, %v2512
        %v2514 = vcombine.low %v2489, %v2497
        %v2515 = vcombine.high %v2489, %v2497
        %v2517 = vunpack.c.l.s4 1934713408
        %v2518 = vunpack.c.0.s8 %v2517
        %v2519 = vlaneseq
        %v2520 = vshrl.u32 %v2519, 7
        %v2521 = vsub.s32 %v2518, %v2520
        %v2522 = vrot.slane %v2514, %v2521
        %v2524 = vunpack.c.l.s4 1934713408
        %v2525 = vunpack.c.0.s8 %v2524
        %v2526 = vlaneseq
        %v2527 = vshrl.u32 %v2526, 7
        %v2528 = vsub.s32 %v2525, %v2527
        %v2529 = vrot.slane %v2515, %v2528
        %v2530 = vcombine.low %v2506, %v2522
        %v2531 = vcombine.high %v2506, %v2522
        %v2532 = vcombine.low %v2513, %v2529
        %v2533 = vcombine.high %v2513, %v2529
        %v2534 = vcombine.low %v2438, %v2445
        %v2536 = vunpack.c.l.s4 1983009808
        %v2537 = vunpack.c.0.s8 %v2536
        %v2538 = vlaneseq
        %v2539 = vshrl.u32 %v2538, 7
        %v2540 = vsub.s32 %v2537, %v2539
        %v2541 = vrot.slane %v2534, %v2540
        %v2542 = vcombine.low %v2462, %v2463
        %v2544 = vunpack.c.l.s4 1983009808
        %v2545 = vunpack.c.0.s8 %v2544
        %v2546 = vlaneseq
        %v2547 = vshrl.u32 %v2546, 7
        %v2548 = vsub.s32 %v2545, %v2547
        %v2549 = vrot.slane %v2542, %v2548
        %v2550 = vcombine.low %v2454, %v2461
        %v2552 = vunpack.c.l.s4 1983009808
        %v2553 = vunpack.c.0.s8 %v2552
        %v2554 = vlaneseq
        %v2555 = vshrl.u32 %v2554, 7
        %v2556 = vsub.s32 %v2553, %v2555
        %v2557 = vrot.slane %v2550, %v2556
        %v2558 = vcombine.low %v2464, %v2465
        %v2560 = vunpack.c.l.s4 1983009808
        %v2561 = vunpack.c.0.s8 %v2560
        %v2562 = vlaneseq
        %v2563 = vshrl.u32 %v2562, 7
        %v2564 = vsub.s32 %v2561, %v2563
        %v2565 = vrot.slane %v2558, %v2564
        %v2566 = vcombine.low %v2541, %v2549
        %v2567 = vcombine.high %v2541, %v2549
        %v2569 = vunpack.c.l.s4 1934713408
        %v2570 = vunpack.c.0.s8 %v2569
        %v2571 = vlaneseq
        %v2572 = vshrl.u32 %v2571, 7
        %v2573 = vsub.s32 %v2570, %v2572
        %v2574 = vrot.slane %v2566, %v2573
        %v2576 = vunpack.c.l.s4 1934713408
        %v2577 = vunpack.c.0.s8 %v2576
        %v2578 = vlaneseq
        %v2579 = vshrl.u32 %v2578, 7
        %v2580 = vsub.s32 %v2577, %v2579
        %v2581 = vrot.slane %v2567, %v2580
        %v2582 = vcombine.low %v2557, %v2565
        %v2583 = vcombine.high %v2557, %v2565
        %v2585 = vunpack.c.l.s4 1934713408
        %v2586 = vunpack.c.0.s8 %v2585
        %v2587 = vlaneseq
        %v2588 = vshrl.u32 %v2587, 7
        %v2589 = vsub.s32 %v2586, %v2588
        %v2590 = vrot.slane %v2582, %v2589
        %v2592 = vunpack.c.l.s4 1934713408
        %v2593 = vunpack.c.0.s8 %v2592
        %v2594 = vlaneseq
        %v2595 = vshrl.u32 %v2594, 7
        %v2596 = vsub.s32 %v2593, %v2595
        %v2597 = vrot.slane %v2583, %v2596
        %v2598 = vcombine.low %v2574, %v2590
        %v2599 = vcombine.high %v2574, %v2590
        %v2600 = vcombine.low %v2581, %v2597
        %v2601 = vcombine.high %v2581, %v2597
        %2604 = vrot.lane.b32.xlu0 %v2531, 32
        %v2605 = vpop.permute.xlu0 %2604
        %2606 = vrot.lane.b32.xlu0 %v2599, 32
        %v2607 = vpop.permute.xlu0 %2606
        %2612 = vrot.lane.b32.xlu0 %v2532, 64
        %v2613 = vpop.permute.xlu0 %2612
        %2614 = vrot.lane.b32.xlu0 %v2600, 64
        %v2615 = vpop.permute.xlu0 %2614
        %2620 = vrot.lane.b32.xlu0 %v2533, 96
        %v2621 = vpop.permute.xlu0 %2620
        %2622 = vrot.lane.b32.xlu0 %v2601, 96
        %v2623 = vpop.permute.xlu0 %2622
        %v2626 = vsel %vm1852, %v2530, %v2605
        %v2627 = vsel %vm1852, %v2598, %v2607
        %vm2628 = vcmask 523264
        %v2629 = vsel %vm2628, %v2626, %v2613
        %v2630 = vsel %vm2628, %v2627, %v2615
        %vm2631 = vcmask 785408
        %v2632 = vsel %vm2631, %v2629, %v2621
        %v2633 = vsel %vm2631, %v2630, %v2623
        %v2634 = vpack.c.bf16 %v2633, %v2632
        %v2635 = vld [vmem:[#allocation8] sm:$0xf]
        %v2636 = vld [vmem:[#allocation8 + $0x4] sm:$0xf]
        %v2637 = vld [vmem:[#allocation8 + $0x8] sm:$0xf]
        %v2638 = vld [vmem:[#allocation8 + $0xc] sm:$0xf]
        %v2639 = vld [vmem:[#allocation8 + $0x10] sm:$0xf]
        %v2640 = vld [vmem:[#allocation8 + $0x14] sm:$0xf]
        %v2641 = vld [vmem:[#allocation8 + $0x18] sm:$0xf]
        %v2642 = vld [vmem:[#allocation8 + $0x1c] sm:$0xf]
        %v2643 = vld [vmem:[#allocation8 + $0x20] sm:$0xf]
        %v2644 = vld [vmem:[#allocation8 + $0x24] sm:$0xf]
        %v2645 = vld [vmem:[#allocation8 + $0x28] sm:$0xf]
        %v2646 = vld [vmem:[#allocation8 + $0x2c] sm:$0xf]
        %v2647 = vld [vmem:[#allocation8 + $0x30] sm:$0xf]
        %v2648 = vld [vmem:[#allocation8 + $0x34] sm:$0xf]
        %v2649 = vld [vmem:[#allocation8 + $0x38] sm:$0xf]
        %v2650 = vld [vmem:[#allocation8 + $0x3c] sm:$0xf]
        %v2667 = vunpack.c.l.b16 %v2635
        %v2668 = vunpack.c.l.b16 %v2636
        %v2669 = vunpack.c.l.b16 %v2637
        %v2670 = vunpack.c.l.b16 %v2638
        %v2671 = vunpack.c.l.b16 %v2639
        %v2672 = vunpack.c.l.b16 %v2640
        %v2673 = vunpack.c.l.b16 %v2641
        %v2674 = vunpack.c.l.b16 %v2642
        %v2675 = vunpack.c.l.b16 %v2643
        %v2676 = vunpack.c.l.b16 %v2644
        %v2677 = vunpack.c.l.b16 %v2645
        %v2678 = vunpack.c.l.b16 %v2646
        %v2679 = vunpack.c.l.b16 %v2647
        %v2680 = vunpack.c.l.b16 %v2648
        %v2681 = vunpack.c.l.b16 %v2649
        %v2682 = vunpack.c.l.b16 %v2650
        %v2683 = vpack.c.b16 %v2668, %v2667
        %v2684 = vpack.c.b16 %v2670, %v2669
        %v2685 = vpack.c.b16 %v2672, %v2671
        %v2686 = vpack.c.b16 %v2674, %v2673
        %v2687 = vpack.c.b16 %v2676, %v2675
        %v2688 = vpack.c.b16 %v2678, %v2677
        %v2689 = vpack.c.b16 %v2680, %v2679
        %v2690 = vpack.c.b16 %v2682, %v2681
        %2699 = vmatprep.subr.bf16.mxu0 0
        %2700 = vmatpush1.bf16.msra.mxu0 %v2683
        %2701 = vmatprep.subr.bf16.mxu0 0
        %2702 = vmatpush1.bf16.msra.mxu0 %v2684
        %2703 = vmatprep.subr.bf16.mxu0 0
        %2704 = vmatpush1.bf16.msra.mxu0 %v2685
        %2705 = vmatprep.subr.bf16.mxu0 0
        %2706 = vmatpush1.bf16.msra.mxu0 %v2686
        %2707 = vmatprep.subr.bf16.mxu0 0
        %2708 = vmatpush1.bf16.msra.mxu0 %v2687
        %2709 = vmatprep.subr.bf16.mxu0 0
        %2710 = vmatpush1.bf16.msra.mxu0 %v2688
        %2711 = vmatprep.subr.bf16.mxu0 0
        %2712 = vmatpush1.bf16.msra.mxu0 %v2689
        %2713 = vmatprep.subr.bf16.mxu0 0
        %2714 = vmatpush1.bf16.msra.mxu0 %v2690
        %2715 = vmatprep.subr.bf16.mxu0 0
        %2716 = vmatpush1.bf16.msra.mxu0 0
        %2717 = vmatprep.subr.bf16.mxu0 0
        %2718 = vmatpush1.bf16.msra.mxu0 0
        %2719 = vmatprep.subr.bf16.mxu0 0
        %2720 = vmatpush1.bf16.msra.mxu0 0
        %2721 = vmatprep.subr.bf16.mxu0 0
        %2722 = vmatpush1.bf16.msra.mxu0 0
        %2723 = vmatprep.subr.bf16.mxu0 0
        %2724 = vmatpush1.bf16.msra.mxu0 0
        %2725 = vmatprep.subr.bf16.mxu0 0
        %2726 = vmatpush1.bf16.msra.mxu0 0
        %2727 = vmatprep.subr.bf16.mxu0 0
        %2728 = vmatpush1.bf16.msra.mxu0 0
        %2729 = vmatprep.subr.bf16.mxu0 0
        %2730 = vmatpush1.bf16.msra.mxu0 0
        %2731 = vmatprep.mubr.bf16.mxu0 0
        %2732 = vmatmul.mubr.bf16.gmra.mrb[0].mxu0 %v2634
        %v2733 = vpop.f32.mrb[0].mxu0
        %v2734 = vadd.f32 0.0, %v2733
        %v2735 = vpop.f32.mrb[0].mxu0
        %v2736 = vpop.f32.mrb[0].mxu0
        %v2737 = vadd.f32 0.0, %v2736
        %v2738 = vpop.f32.mrb[0].mxu0
        %2739 = vdwg.mxu0
        %v2740 = vadd.f32 %v542, %v2734
        %v2741 = vadd.f32 %v543, %v2737
        %v2742 = vld [vmem:[#allocation10] sm:$0x1]
        %v2743 = vmul.f32 %v2740, %v2740
        %v2744 = vmul.f32 %v2741, %v2741
        %2745 = vadd.xlane.f32.xlu0 %v2743
        %v2746 = vpop.xlane.xlu0 %2745
        %2747 = vadd.xlane.f32.xlu0 %v2744
        %v2748 = vpop.xlane.xlu0 %2747
        %v2749 = vmul.f32 %v2746, %v551
        %v2750 = vmul.f32 %v2748, %v551
        %v2751 = vadd.f32 %v2749, 1e-05
        %v2752 = vadd.f32 %v2750, 1e-05
        %v2753 = vrsqrt.pop %v2751
        %v2754 = vrsqrt.pop %v2752
        %v2755 = vmul.f32 %v2740, %v2753
        %v2756 = vmul.f32 %v2741, %v2754
        %v2758 = vlaneseq
        %v2759 = vshrl.u32 %v2758, 7
        %v2760 = vsub.s32 0, %v2759
        %v2761 = vrot.slane %v2742, %v2760
        %v2763 = vmul.f32 %v2755, %v2761
        %v2764 = vmul.f32 %v2756, %v2761
        %v2765 = vpack.c.bf16 %v2764, %v2763
        %v2766 = vld [vmem:[#allocation11] sm:$0xff]
        %v2767 = vld [vmem:[#allocation11 + $0x8] sm:$0xff]
        %v2768 = vld [vmem:[#allocation11 + $0x10] sm:$0xff]
        %v2769 = vld [vmem:[#allocation11 + $0x18] sm:$0xff]
        %v2770 = vld [vmem:[#allocation11 + $0x20] sm:$0xff]
        %v2771 = vld [vmem:[#allocation11 + $0x28] sm:$0xff]
        %v2772 = vld [vmem:[#allocation11 + $0x30] sm:$0xff]
        %v2773 = vld [vmem:[#allocation11 + $0x38] sm:$0xff]
        %v2774 = vld [vmem:[#allocation11 + $0x40] sm:$0xff]
        %v2775 = vld [vmem:[#allocation11 + $0x48] sm:$0xff]
        %v2776 = vld [vmem:[#allocation11 + $0x50] sm:$0xff]
        %v2777 = vld [vmem:[#allocation11 + $0x58] sm:$0xff]
        %v2778 = vld [vmem:[#allocation11 + $0x60] sm:$0xff]
        %v2779 = vld [vmem:[#allocation11 + $0x68] sm:$0xff]
        %v2780 = vld [vmem:[#allocation11 + $0x70] sm:$0xff]
        %v2781 = vld [vmem:[#allocation11 + $0x78] sm:$0xff]
        %v2782 = vld [vmem:[#allocation11 + $0x80] sm:$0xff]
        %v2783 = vld [vmem:[#allocation11 + $0x88] sm:$0xff]
        %v2784 = vld [vmem:[#allocation11 + $0x90] sm:$0xff]
        %v2785 = vld [vmem:[#allocation11 + $0x98] sm:$0xff]
        %v2786 = vld [vmem:[#allocation11 + $0xa0] sm:$0xff]
        %v2787 = vld [vmem:[#allocation11 + $0xa8] sm:$0xff]
        %v2788 = vld [vmem:[#allocation11 + $0xb0] sm:$0xff]
        %v2789 = vld [vmem:[#allocation11 + $0xb8] sm:$0xff]
        %v2790 = vld [vmem:[#allocation11 + $0xc0] sm:$0xff]
        %v2791 = vld [vmem:[#allocation11 + $0xc8] sm:$0xff]
        %v2792 = vld [vmem:[#allocation11 + $0xd0] sm:$0xff]
        %v2793 = vld [vmem:[#allocation11 + $0xd8] sm:$0xff]
        %v2794 = vld [vmem:[#allocation11 + $0xe0] sm:$0xff]
        %v2795 = vld [vmem:[#allocation11 + $0xe8] sm:$0xff]
        %v2796 = vld [vmem:[#allocation11 + $0xf0] sm:$0xff]
        %v2797 = vld [vmem:[#allocation11 + $0xf8] sm:$0xff]
        %v2830 = vunpack.c.l.b16 %v2766
        %v2831 = vunpack.c.h.b16 %v2766
        %v2832 = vunpack.c.l.b16 %v2767
        %v2833 = vunpack.c.h.b16 %v2767
        %v2834 = vunpack.c.l.b16 %v2768
        %v2835 = vunpack.c.h.b16 %v2768
        %v2836 = vunpack.c.l.b16 %v2769
        %v2837 = vunpack.c.h.b16 %v2769
        %v2838 = vunpack.c.l.b16 %v2770
        %v2839 = vunpack.c.h.b16 %v2770
        %v2840 = vunpack.c.l.b16 %v2771
        %v2841 = vunpack.c.h.b16 %v2771
        %v2842 = vunpack.c.l.b16 %v2772
        %v2843 = vunpack.c.h.b16 %v2772
        %v2844 = vunpack.c.l.b16 %v2773
        %v2845 = vunpack.c.h.b16 %v2773
        %v2846 = vunpack.c.l.b16 %v2774
        %v2847 = vunpack.c.h.b16 %v2774
        %v2848 = vunpack.c.l.b16 %v2775
        %v2849 = vunpack.c.h.b16 %v2775
        %v2850 = vunpack.c.l.b16 %v2776
        %v2851 = vunpack.c.h.b16 %v2776
        %v2852 = vunpack.c.l.b16 %v2777
        %v2853 = vunpack.c.h.b16 %v2777
        %v2854 = vunpack.c.l.b16 %v2778
        %v2855 = vunpack.c.h.b16 %v2778
        %v2856 = vunpack.c.l.b16 %v2779
        %v2857 = vunpack.c.h.b16 %v2779
        %v2858 = vunpack.c.l.b16 %v2780
        %v2859 = vunpack.c.h.b16 %v2780
        %v2860 = vunpack.c.l.b16 %v2781
        %v2861 = vunpack.c.h.b16 %v2781
        %v2862 = vunpack.c.l.b16 %v2782
        %v2863 = vunpack.c.h.b16 %v2782
        %v2864 = vunpack.c.l.b16 %v2783
        %v2865 = vunpack.c.h.b16 %v2783
        %v2866 = vunpack.c.l.b16 %v2784
        %v2867 = vunpack.c.h.b16 %v2784
        %v2868 = vunpack.c.l.b16 %v2785
        %v2869 = vunpack.c.h.b16 %v2785
        %v2870 = vunpack.c.l.b16 %v2786
        %v2871 = vunpack.c.h.b16 %v2786
        %v2872 = vunpack.c.l.b16 %v2787
        %v2873 = vunpack.c.h.b16 %v2787
        %v2874 = vunpack.c.l.b16 %v2788
        %v2875 = vunpack.c.h.b16 %v2788
        %v2876 = vunpack.c.l.b16 %v2789
        %v2877 = vunpack.c.h.b16 %v2789
        %v2878 = vunpack.c.l.b16 %v2790
        %v2879 = vunpack.c.h.b16 %v2790
        %v2880 = vunpack.c.l.b16 %v2791
        %v2881 = vunpack.c.h.b16 %v2791
        %v2882 = vunpack.c.l.b16 %v2792
        %v2883 = vunpack.c.h.b16 %v2792
        %v2884 = vunpack.c.l.b16 %v2793
        %v2885 = vunpack.c.h.b16 %v2793
        %v2886 = vunpack.c.l.b16 %v2794
        %v2887 = vunpack.c.h.b16 %v2794
        %v2888 = vunpack.c.l.b16 %v2795
        %v2889 = vunpack.c.h.b16 %v2795
        %v2890 = vunpack.c.l.b16 %v2796
        %v2891 = vunpack.c.h.b16 %v2796
        %v2892 = vunpack.c.l.b16 %v2797
        %v2893 = vunpack.c.h.b16 %v2797
        %v2894 = vpack.c.b16 %v2834, %v2830
        %v2895 = vpack.c.b16 %v2835, %v2831
        %v2896 = vpack.c.b16 %v2836, %v2832
        %v2897 = vpack.c.b16 %v2837, %v2833
        %v2898 = vpack.c.b16 %v2842, %v2838
        %v2899 = vpack.c.b16 %v2843, %v2839
        %v2900 = vpack.c.b16 %v2844, %v2840
        %v2901 = vpack.c.b16 %v2845, %v2841
        %v2902 = vpack.c.b16 %v2850, %v2846
        %v2903 = vpack.c.b16 %v2851, %v2847
        %v2904 = vpack.c.b16 %v2852, %v2848
        %v2905 = vpack.c.b16 %v2853, %v2849
        %v2906 = vpack.c.b16 %v2858, %v2854
        %v2907 = vpack.c.b16 %v2859, %v2855
        %v2908 = vpack.c.b16 %v2860, %v2856
        %v2909 = vpack.c.b16 %v2861, %v2857
        %v2910 = vpack.c.b16 %v2866, %v2862
        %v2911 = vpack.c.b16 %v2867, %v2863
        %v2912 = vpack.c.b16 %v2868, %v2864
        %v2913 = vpack.c.b16 %v2869, %v2865
        %v2914 = vpack.c.b16 %v2874, %v2870
        %v2915 = vpack.c.b16 %v2875, %v2871
        %v2916 = vpack.c.b16 %v2876, %v2872
        %v2917 = vpack.c.b16 %v2877, %v2873
        %v2918 = vpack.c.b16 %v2882, %v2878
        %v2919 = vpack.c.b16 %v2883, %v2879
        %v2920 = vpack.c.b16 %v2884, %v2880
        %v2921 = vpack.c.b16 %v2885, %v2881
        %v2922 = vpack.c.b16 %v2890, %v2886
        %v2923 = vpack.c.b16 %v2891, %v2887
        %v2924 = vpack.c.b16 %v2892, %v2888
        %v2925 = vpack.c.b16 %v2893, %v2889
        %2958 = vmatprep.subr.bf16.mxu0 %v2895
        %2959 = vmatpush1.bf16.msra.mxu0 %v2894
        %2960 = vmatprep.subr.bf16.mxu0 %v2899
        %2961 = vmatpush1.bf16.msra.mxu0 %v2898
        %2962 = vmatprep.subr.bf16.mxu0 %v2903
        %2963 = vmatpush1.bf16.msra.mxu0 %v2902
        %2964 = vmatprep.subr.bf16.mxu0 %v2907
        %2965 = vmatpush1.bf16.msra.mxu0 %v2906
        %2966 = vmatprep.subr.bf16.mxu0 %v2911
        %2967 = vmatpush1.bf16.msra.mxu0 %v2910
        %2968 = vmatprep.subr.bf16.mxu0 %v2915
        %2969 = vmatpush1.bf16.msra.mxu0 %v2914
        %2970 = vmatprep.subr.bf16.mxu0 %v2919
        %2971 = vmatpush1.bf16.msra.mxu0 %v2918
        %2972 = vmatprep.subr.bf16.mxu0 %v2923
        %2973 = vmatpush1.bf16.msra.mxu0 %v2922
        %2974 = vmatprep.subr.bf16.mxu0 0
        %2975 = vmatpush1.bf16.msra.mxu0 0
        %2976 = vmatprep.subr.bf16.mxu0 0
        %2977 = vmatpush1.bf16.msra.mxu0 0
        %2978 = vmatprep.subr.bf16.mxu0 0
        %2979 = vmatpush1.bf16.msra.mxu0 0
        %2980 = vmatprep.subr.bf16.mxu0 0
        %2981 = vmatpush1.bf16.msra.mxu0 0
        %2982 = vmatprep.subr.bf16.mxu0 0
        %2983 = vmatpush1.bf16.msra.mxu0 0
        %2984 = vmatprep.subr.bf16.mxu0 0
        %2985 = vmatpush1.bf16.msra.mxu0 0
        %2986 = vmatprep.subr.bf16.mxu0 0
        %2987 = vmatpush1.bf16.msra.mxu0 0
        %2988 = vmatprep.subr.bf16.mxu0 0
        %2989 = vmatpush1.bf16.msra.mxu0 0
        %2990 = vmatprep.mubr.bf16.mxu0 0
        %2991 = vmatmul.mubr.bf16.gmra.mrb[0].mxu0 %v2765
        %v2992 = vpop.f32.mrb[0].mxu0
        %v2993 = vadd.f32 0.0, %v2992
        %v2994 = vpop.f32.mrb[0].mxu0
        %v2995 = vadd.f32 0.0, %v2994
        %v2996 = vpop.f32.mrb[0].mxu0
        %v2997 = vadd.f32 0.0, %v2996
        %v2998 = vpop.f32.mrb[0].mxu0
        %v2999 = vadd.f32 0.0, %v2998
        %3000 = vdwg.mxu0
        %3001 = vmatprep.subr.bf16.mxu0 %v2897
        %3002 = vmatpush1.bf16.msra.mxu0 %v2896
        %3003 = vmatprep.subr.bf16.mxu0 %v2901
        %3004 = vmatpush1.bf16.msra.mxu0 %v2900
        %3005 = vmatprep.subr.bf16.mxu0 %v2905
        %3006 = vmatpush1.bf16.msra.mxu0 %v2904
        %3007 = vmatprep.subr.bf16.mxu0 %v2909
        %3008 = vmatpush1.bf16.msra.mxu0 %v2908
        %3009 = vmatprep.subr.bf16.mxu0 %v2913
        %3010 = vmatpush1.bf16.msra.mxu0 %v2912
        %3011 = vmatprep.subr.bf16.mxu0 %v2917
        %3012 = vmatpush1.bf16.msra.mxu0 %v2916
        %3013 = vmatprep.subr.bf16.mxu0 %v2921
        %3014 = vmatpush1.bf16.msra.mxu0 %v2920
        %3015 = vmatprep.subr.bf16.mxu0 %v2925
        %3016 = vmatpush1.bf16.msra.mxu0 %v2924
        %3017 = vmatprep.subr.bf16.mxu0 0
        %3018 = vmatpush1.bf16.msra.mxu0 0
        %3019 = vmatprep.subr.bf16.mxu0 0
        %3020 = vmatpush1.bf16.msra.mxu0 0
        %3021 = vmatprep.subr.bf16.mxu0 0
        %3022 = vmatpush1.bf16.msra.mxu0 0
        %3023 = vmatprep.subr.bf16.mxu0 0
        %3024 = vmatpush1.bf16.msra.mxu0 0
        %3025 = vmatprep.subr.bf16.mxu0 0
        %3026 = vmatpush1.bf16.msra.mxu0 0
        %3027 = vmatprep.subr.bf16.mxu0 0
        %3028 = vmatpush1.bf16.msra.mxu0 0
        %3029 = vmatprep.subr.bf16.mxu0 0
        %3030 = vmatpush1.bf16.msra.mxu0 0
        %3031 = vmatprep.subr.bf16.mxu0 0
        %3032 = vmatpush1.bf16.msra.mxu0 0
        %3033 = vmatprep.mubr.bf16.mxu0 0
        %3034 = vmatmul.mubr.bf16.gmra.mrb[0].mxu0 %v2765
        %v3035 = vpop.f32.mrb[0].mxu0
        %v3036 = vadd.f32 0.0, %v3035
        %v3037 = vpop.f32.mrb[0].mxu0
        %v3038 = vadd.f32 0.0, %v3037
        %v3039 = vpop.f32.mrb[0].mxu0
        %v3040 = vadd.f32 0.0, %v3039
        %v3041 = vpop.f32.mrb[0].mxu0
        %v3042 = vadd.f32 0.0, %v3041
        %3043 = vdwg.mxu0
        %v3044 = vxor.u32 %v2993, 2147483648
        %v3045 = vxor.u32 %v2995, 2147483648
        %v3046 = vxor.u32 %v2997, 2147483648
        %v3047 = vxor.u32 %v2999, 2147483648
        %v3048 = vmul.f32 %v3044, 1.442695
        %v3049 = vpow.pop %v3048
        %v3050 = vmul.f32 %v3045, 1.442695
        %v3051 = vpow.pop %v3050
        %v3052 = vmul.f32 %v3046, 1.442695
        %v3053 = vpow.pop %v3052
        %v3054 = vmul.f32 %v3047, 1.442695
        %v3055 = vpow.pop %v3054
        %v3056 = vadd.f32 %v3049, 1.0
        %v3057 = vadd.f32 %v3051, 1.0
        %v3058 = vadd.f32 %v3053, 1.0
        %v3059 = vadd.f32 %v3055, 1.0
        %v3060 = vrcp.pop %v3056
        %v3061 = vmul.f32 1.0, %v3060
        %v3062 = vrcp.pop %v3057
        %v3063 = vmul.f32 1.0, %v3062
        %v3064 = vrcp.pop %v3058
        %v3065 = vmul.f32 1.0, %v3064
        %v3066 = vrcp.pop %v3059
        %v3067 = vmul.f32 1.0, %v3066
        %v3068 = vmul.f32 %v2993, %v3061
        %v3069 = vmul.f32 %v2995, %v3063
        %v3070 = vmul.f32 %v2997, %v3065
        %v3071 = vmul.f32 %v2999, %v3067
        %v3072 = vmul.f32 %v3068, %v3036
        %v3073 = vmul.f32 %v3069, %v3038
        %v3074 = vmul.f32 %v3070, %v3040
        %v3075 = vmul.f32 %v3071, %v3042
        %v3076 = vpack.c.bf16 %v3074, %v3072
        %v3077 = vpack.c.bf16 %v3075, %v3073
        %v3078 = vld [vmem:[#allocation13] sm:$0xf]
        %v3079 = vld [vmem:[#allocation13 + $0x4] sm:$0xf]
        %v3080 = vld [vmem:[#allocation13 + $0x8] sm:$0xf]
        %v3081 = vld [vmem:[#allocation13 + $0xc] sm:$0xf]
        %v3082 = vld [vmem:[#allocation13 + $0x10] sm:$0xf]
        %v3083 = vld [vmem:[#allocation13 + $0x14] sm:$0xf]
        %v3084 = vld [vmem:[#allocation13 + $0x18] sm:$0xf]
        %v3085 = vld [vmem:[#allocation13 + $0x1c] sm:$0xf]
        %v3086 = vld [vmem:[#allocation13 + $0x20] sm:$0xf]
        %v3087 = vld [vmem:[#allocation13 + $0x24] sm:$0xf]
        %v3088 = vld [vmem:[#allocation13 + $0x28] sm:$0xf]
        %v3089 = vld [vmem:[#allocation13 + $0x2c] sm:$0xf]
        %v3090 = vld [vmem:[#allocation13 + $0x30] sm:$0xf]
        %v3091 = vld [vmem:[#allocation13 + $0x34] sm:$0xf]
        %v3092 = vld [vmem:[#allocation13 + $0x38] sm:$0xf]
        %v3093 = vld [vmem:[#allocation13 + $0x3c] sm:$0xf]
        %v3094 = vld [vmem:[#allocation13 + $0x40] sm:$0xf]
        %v3095 = vld [vmem:[#allocation13 + $0x44] sm:$0xf]
        %v3096 = vld [vmem:[#allocation13 + $0x48] sm:$0xf]
        %v3097 = vld [vmem:[#allocation13 + $0x4c] sm:$0xf]
        %v3098 = vld [vmem:[#allocation13 + $0x50] sm:$0xf]
        %v3099 = vld [vmem:[#allocation13 + $0x54] sm:$0xf]
        %v3100 = vld [vmem:[#allocation13 + $0x58] sm:$0xf]
        %v3101 = vld [vmem:[#allocation13 + $0x5c] sm:$0xf]
        %v3102 = vld [vmem:[#allocation13 + $0x60] sm:$0xf]
        %v3103 = vld [vmem:[#allocation13 + $0x64] sm:$0xf]
        %v3104 = vld [vmem:[#allocation13 + $0x68] sm:$0xf]
        %v3105 = vld [vmem:[#allocation13 + $0x6c] sm:$0xf]
        %v3106 = vld [vmem:[#allocation13 + $0x70] sm:$0xf]
        %v3107 = vld [vmem:[#allocation13 + $0x74] sm:$0xf]
        %v3108 = vld [vmem:[#allocation13 + $0x78] sm:$0xf]
        %v3109 = vld [vmem:[#allocation13 + $0x7c] sm:$0xf]
        %v3142 = vunpack.c.l.b16 %v3078
        %v3143 = vunpack.c.l.b16 %v3079
        %v3144 = vunpack.c.l.b16 %v3080
        %v3145 = vunpack.c.l.b16 %v3081
        %v3146 = vunpack.c.l.b16 %v3082
        %v3147 = vunpack.c.l.b16 %v3083
        %v3148 = vunpack.c.l.b16 %v3084
        %v3149 = vunpack.c.l.b16 %v3085
        %v3150 = vunpack.c.l.b16 %v3086
        %v3151 = vunpack.c.l.b16 %v3087
        %v3152 = vunpack.c.l.b16 %v3088
        %v3153 = vunpack.c.l.b16 %v3089
        %v3154 = vunpack.c.l.b16 %v3090
        %v3155 = vunpack.c.l.b16 %v3091
        %v3156 = vunpack.c.l.b16 %v3092
        %v3157 = vunpack.c.l.b16 %v3093
        %v3158 = vunpack.c.l.b16 %v3094
        %v3159 = vunpack.c.l.b16 %v3095
        %v3160 = vunpack.c.l.b16 %v3096
        %v3161 = vunpack.c.l.b16 %v3097
        %v3162 = vunpack.c.l.b16 %v3098
        %v3163 = vunpack.c.l.b16 %v3099
        %v3164 = vunpack.c.l.b16 %v3100
        %v3165 = vunpack.c.l.b16 %v3101
        %v3166 = vunpack.c.l.b16 %v3102
        %v3167 = vunpack.c.l.b16 %v3103
        %v3168 = vunpack.c.l.b16 %v3104
        %v3169 = vunpack.c.l.b16 %v3105
        %v3170 = vunpack.c.l.b16 %v3106
        %v3171 = vunpack.c.l.b16 %v3107
        %v3172 = vunpack.c.l.b16 %v3108
        %v3173 = vunpack.c.l.b16 %v3109
        %v3174 = vpack.c.b16 %v3143, %v3142
        %v3175 = vpack.c.b16 %v3145, %v3144
        %v3176 = vpack.c.b16 %v3147, %v3146
        %v3177 = vpack.c.b16 %v3149, %v3148
        %v3178 = vpack.c.b16 %v3151, %v3150
        %v3179 = vpack.c.b16 %v3153, %v3152
        %v3180 = vpack.c.b16 %v3155, %v3154
        %v3181 = vpack.c.b16 %v3157, %v3156
        %v3182 = vpack.c.b16 %v3159, %v3158
        %v3183 = vpack.c.b16 %v3161, %v3160
        %v3184 = vpack.c.b16 %v3163, %v3162
        %v3185 = vpack.c.b16 %v3165, %v3164
        %v3186 = vpack.c.b16 %v3167, %v3166
        %v3187 = vpack.c.b16 %v3169, %v3168
        %v3188 = vpack.c.b16 %v3171, %v3170
        %v3189 = vpack.c.b16 %v3173, %v3172
        %3206 = vmatprep.subr.bf16.mxu0 0
        %3207 = vmatpush1.bf16.msra.mxu0 %v3174
        %3208 = vmatprep.subr.bf16.mxu0 0
        %3209 = vmatpush1.bf16.msra.mxu0 %v3175
        %3210 = vmatprep.subr.bf16.mxu0 0
        %3211 = vmatpush1.bf16.msra.mxu0 %v3176
        %3212 = vmatprep.subr.bf16.mxu0 0
        %3213 = vmatpush1.bf16.msra.mxu0 %v3177
        %3214 = vmatprep.subr.bf16.mxu0 0
        %3215 = vmatpush1.bf16.msra.mxu0 %v3178
        %3216 = vmatprep.subr.bf16.mxu0 0
        %3217 = vmatpush1.bf16.msra.mxu0 %v3179
        %3218 = vmatprep.subr.bf16.mxu0 0
        %3219 = vmatpush1.bf16.msra.mxu0 %v3180
        %3220 = vmatprep.subr.bf16.mxu0 0
        %3221 = vmatpush1.bf16.msra.mxu0 %v3181
        %3222 = vmatprep.subr.bf16.mxu0 0
        %3223 = vmatpush1.bf16.msra.mxu0 %v3182
        %3224 = vmatprep.subr.bf16.mxu0 0
        %3225 = vmatpush1.bf16.msra.mxu0 %v3183
        %3226 = vmatprep.subr.bf16.mxu0 0
        %3227 = vmatpush1.bf16.msra.mxu0 %v3184
        %3228 = vmatprep.subr.bf16.mxu0 0
        %3229 = vmatpush1.bf16.msra.mxu0 %v3185
        %3230 = vmatprep.subr.bf16.mxu0 0
        %3231 = vmatpush1.bf16.msra.mxu0 %v3186
        %3232 = vmatprep.subr.bf16.mxu0 0
        %3233 = vmatpush1.bf16.msra.mxu0 %v3187
        %3234 = vmatprep.subr.bf16.mxu0 0
        %3235 = vmatpush1.bf16.msra.mxu0 %v3188
        %3236 = vmatprep.subr.bf16.mxu0 0
        %3237 = vmatpush1.bf16.msra.mxu0 %v3189
        %3238 = vmatprep.mubr.bf16.mxu0 %v3077
        %3239 = vmatmul.mubr.bf16.gmra.mrb[0].mxu0 %v3076
        %v3240 = vpop.f32.mrb[0].mxu0
        %v3241 = vadd.f32 0.0, %v3240
        %v3242 = vpop.f32.mrb[0].mxu0
        %v3243 = vpop.f32.mrb[0].mxu0
        %v3244 = vadd.f32 0.0, %v3243
        %v3245 = vpop.f32.mrb[0].mxu0
        %3246 = vdwg.mxu0
        %v3247 = vadd.f32 %v2740, %v3241
        %v3248 = vadd.f32 %v2741, %v3244
        %3249 = vst [vmem:[%s529] sm:$0xff] %v3247
        %3250 = vst [vmem:[%s529 + $0x8] sm:$0xff] %v3248
        %s3251 = scalar_lea.vmem %s1, 1
        %v3252 = vld [vmem:[%s3251] sm:$0x1]
        %v3253 = vmul.f32 %v3247, %v3247
        %v3254 = vmul.f32 %v3248, %v3248
        %3255 = vadd.xlane.f32.xlu0 %v3253
        %v3256 = vpop.xlane.xlu0 %3255
        %3257 = vadd.xlane.f32.xlu0 %v3254
        %v3258 = vpop.xlane.xlu0 %3257
        %v3259 = vmul.f32 %v3256, %v551
        %v3260 = vmul.f32 %v3258, %v551
        %v3261 = vadd.f32 %v3259, 1e-05
        %v3262 = vadd.f32 %v3260, 1e-05
        %v3263 = vrsqrt.pop %v3261
        %v3264 = vrsqrt.pop %v3262
        %v3265 = vmul.f32 %v3247, %v3263
        %v3266 = vmul.f32 %v3248, %v3264
        %v3268 = vlaneseq
        %v3269 = vshrl.u32 %v3268, 7
        %v3270 = vsub.s32 0, %v3269
        %v3271 = vrot.slane %v3252, %v3270
        %v3273 = vmul.f32 %v3265, %v3271
        %v3274 = vmul.f32 %v3266, %v3271
        %v3275 = vpack.c.bf16 %v3274, %v3273
        %s3276 = scalar_lea.vmem [#allocation5], 192
        %v3277 = vld [vmem:[%s3276] sm:$0xff]
        %v3278 = vld [vmem:[%s3276 + $0x8] sm:$0xf]
        %v3279 = vld [vmem:[%s3276 + $0xc] sm:$0xff]
        %v3280 = vld [vmem:[%s3276 + $0x14] sm:$0xf]
        %v3281 = vld [vmem:[%s3276 + $0x18] sm:$0xff]
        %v3282 = vld [vmem:[%s3276 + $0x20] sm:$0xf]
        %v3283 = vld [vmem:[%s3276 + $0x24] sm:$0xff]
        %v3284 = vld [vmem:[%s3276 + $0x2c] sm:$0xf]
        %v3285 = vld [vmem:[%s3276 + $0x30] sm:$0xff]
        %v3286 = vld [vmem:[%s3276 + $0x38] sm:$0xf]
        %v3287 = vld [vmem:[%s3276 + $0x3c] sm:$0xff]
        %v3288 = vld [vmem:[%s3276 + $0x44] sm:$0xf]
        %v3289 = vld [vmem:[%s3276 + $0x48] sm:$0xff]
        %v3290 = vld [vmem:[%s3276 + $0x50] sm:$0xf]
        %v3291 = vld [vmem:[%s3276 + $0x54] sm:$0xff]
        %v3292 = vld [vmem:[%s3276 + $0x5c] sm:$0xf]
        %v3293 = vld [vmem:[%s3276 + $0x60] sm:$0xff]
        %v3294 = vld [vmem:[%s3276 + $0x68] sm:$0xf]
        %v3295 = vld [vmem:[%s3276 + $0x6c] sm:$0xff]
        %v3296 = vld [vmem:[%s3276 + $0x74] sm:$0xf]
        %v3297 = vld [vmem:[%s3276 + $0x78] sm:$0xff]
        %v3298 = vld [vmem:[%s3276 + $0x80] sm:$0xf]
        %v3299 = vld [vmem:[%s3276 + $0x84] sm:$0xff]
        %v3300 = vld [vmem:[%s3276 + $0x8c] sm:$0xf]
        %v3301 = vld [vmem:[%s3276 + $0x90] sm:$0xff]
        %v3302 = vld [vmem:[%s3276 + $0x98] sm:$0xf]
        %v3303 = vld [vmem:[%s3276 + $0x9c] sm:$0xff]
        %v3304 = vld [vmem:[%s3276 + $0xa4] sm:$0xf]
        %v3305 = vld [vmem:[%s3276 + $0xa8] sm:$0xff]
        %v3306 = vld [vmem:[%s3276 + $0xb0] sm:$0xf]
        %v3307 = vld [vmem:[%s3276 + $0xb4] sm:$0xff]
        %v3308 = vld [vmem:[%s3276 + $0xbc] sm:$0xf]
        %v3341 = vunpack.c.l.b16 %v3277
        %v3342 = vunpack.c.h.b16 %v3277
        %v3343 = vunpack.c.l.b16 %v3278
        %v3344 = vunpack.c.l.b16 %v3279
        %v3345 = vunpack.c.h.b16 %v3279
        %v3346 = vunpack.c.l.b16 %v3280
        %v3347 = vunpack.c.l.b16 %v3281
        %v3348 = vunpack.c.h.b16 %v3281
        %v3349 = vunpack.c.l.b16 %v3282
        %v3350 = vunpack.c.l.b16 %v3283
        %v3351 = vunpack.c.h.b16 %v3283
        %v3352 = vunpack.c.l.b16 %v3284
        %v3353 = vunpack.c.l.b16 %v3285
        %v3354 = vunpack.c.h.b16 %v3285
        %v3355 = vunpack.c.l.b16 %v3286
        %v3356 = vunpack.c.l.b16 %v3287
        %v3357 = vunpack.c.h.b16 %v3287
        %v3358 = vunpack.c.l.b16 %v3288
        %v3359 = vunpack.c.l.b16 %v3289
        %v3360 = vunpack.c.h.b16 %v3289
        %v3361 = vunpack.c.l.b16 %v3290
        %v3362 = vunpack.c.l.b16 %v3291
        %v3363 = vunpack.c.h.b16 %v3291
        %v3364 = vunpack.c.l.b16 %v3292
        %v3365 = vunpack.c.l.b16 %v3293
        %v3366 = vunpack.c.h.b16 %v3293
        %v3367 = vunpack.c.l.b16 %v3294
        %v3368 = vunpack.c.l.b16 %v3295
        %v3369 = vunpack.c.h.b16 %v3295
        %v3370 = vunpack.c.l.b16 %v3296
        %v3371 = vunpack.c.l.b16 %v3297
        %v3372 = vunpack.c.h.b16 %v3297
        %v3373 = vunpack.c.l.b16 %v3298
        %v3374 = vunpack.c.l.b16 %v3299
        %v3375 = vunpack.c.h.b16 %v3299
        %v3376 = vunpack.c.l.b16 %v3300
        %v3377 = vunpack.c.l.b16 %v3301
        %v3378 = vunpack.c.h.b16 %v3301
        %v3379 = vunpack.c.l.b16 %v3302
        %v3380 = vunpack.c.l.b16 %v3303
        %v3381 = vunpack.c.h.b16 %v3303
        %v3382 = vunpack.c.l.b16 %v3304
        %v3383 = vunpack.c.l.b16 %v3305
        %v3384 = vunpack.c.h.b16 %v3305
        %v3385 = vunpack.c.l.b16 %v3306
        %v3386 = vunpack.c.l.b16 %v3307
        %v3387 = vunpack.c.h.b16 %v3307
        %v3388 = vunpack.c.l.b16 %v3308
        %v3389 = vpack.c.b16 %v3344, %v3341
        %v3390 = vpack.c.b16 %v3345, %v3342
        %v3391 = vpack.c.b16 %v3346, %v3343
        %v3392 = vpack.c.b16 %v3350, %v3347
        %v3393 = vpack.c.b16 %v3351, %v3348
        %v3394 = vpack.c.b16 %v3352, %v3349
        %v3395 = vpack.c.b16 %v3356, %v3353
        %v3396 = vpack.c.b16 %v3357, %v3354
        %v3397 = vpack.c.b16 %v3358, %v3355
        %v3398 = vpack.c.b16 %v3362, %v3359
        %v3399 = vpack.c.b16 %v3363, %v3360
        %v3400 = vpack.c.b16 %v3364, %v3361
        %v3401 = vpack.c.b16 %v3368, %v3365
        %v3402 = vpack.c.b16 %v3369, %v3366
        %v3403 = vpack.c.b16 %v3370, %v3367
        %v3404 = vpack.c.b16 %v3374, %v3371
        %v3405 = vpack.c.b16 %v3375, %v3372
        %v3406 = vpack.c.b16 %v3376, %v3373
        %v3407 = vpack.c.b16 %v3380, %v3377
        %v3408 = vpack.c.b16 %v3381, %v3378
        %v3409 = vpack.c.b16 %v3382, %v3379
        %v3410 = vpack.c.b16 %v3386, %v3383
        %v3411 = vpack.c.b16 %v3387, %v3384
        %v3412 = vpack.c.b16 %v3388, %v3385
        %3437 = vmatprep.subr.bf16.mxu0 %v3390
        %3438 = vmatpush1.bf16.msra.mxu0 %v3389
        %3439 = vmatprep.subr.bf16.mxu0 %v3393
        %3440 = vmatpush1.bf16.msra.mxu0 %v3392
        %3441 = vmatprep.subr.bf16.mxu0 %v3396
        %3442 = vmatpush1.bf16.msra.mxu0 %v3395
        %3443 = vmatprep.subr.bf16.mxu0 %v3399
        %3444 = vmatpush1.bf16.msra.mxu0 %v3398
        %3445 = vmatprep.subr.bf16.mxu0 %v3402
        %3446 = vmatpush1.bf16.msra.mxu0 %v3401
        %3447 = vmatprep.subr.bf16.mxu0 %v3405
        %3448 = vmatpush1.bf16.msra.mxu0 %v3404
        %3449 = vmatprep.subr.bf16.mxu0 %v3408
        %3450 = vmatpush1.bf16.msra.mxu0 %v3407
        %3451 = vmatprep.subr.bf16.mxu0 %v3411
        %3452 = vmatpush1.bf16.msra.mxu0 %v3410
        %3453 = vmatprep.subr.bf16.mxu0 0
        %3454 = vmatpush1.bf16.msra.mxu0 0
        %3455 = vmatprep.subr.bf16.mxu0 0
        %3456 = vmatpush1.bf16.msra.mxu0 0
        %3457 = vmatprep.subr.bf16.mxu0 0
        %3458 = vmatpush1.bf16.msra.mxu0 0
        %3459 = vmatprep.subr.bf16.mxu0 0
        %3460 = vmatpush1.bf16.msra.mxu0 0
        %3461 = vmatprep.subr.bf16.mxu0 0
        %3462 = vmatpush1.bf16.msra.mxu0 0
        %3463 = vmatprep.subr.bf16.mxu0 0
        %3464 = vmatpush1.bf16.msra.mxu0 0
        %3465 = vmatprep.subr.bf16.mxu0 0
        %3466 = vmatpush1.bf16.msra.mxu0 0
        %3467 = vmatprep.subr.bf16.mxu0 0
        %3468 = vmatpush1.bf16.msra.mxu0 0
        %3469 = vmatprep.mubr.bf16.mxu0 0
        %3470 = vmatmul.mubr.bf16.gmra.mrb[0].mxu0 %v3275
        %v3471 = vpop.f32.mrb[0].mxu0
        %v3472 = vadd.f32 0.0, %v3471
        %v3473 = vpop.f32.mrb[0].mxu0
        %v3474 = vadd.f32 0.0, %v3473
        %v3475 = vpop.f32.mrb[0].mxu0
        %v3476 = vadd.f32 0.0, %v3475
        %v3477 = vpop.f32.mrb[0].mxu0
        %v3478 = vadd.f32 0.0, %v3477
        %3479 = vdwg.mxu0
        %3480 = vmatprep.subr.bf16.mxu0 0
        %3481 = vmatpush1.bf16.msra.mxu0 %v3391
        %3482 = vmatprep.subr.bf16.mxu0 0
        %3483 = vmatpush1.bf16.msra.mxu0 %v3394
        %3484 = vmatprep.subr.bf16.mxu0 0
        %3485 = vmatpush1.bf16.msra.mxu0 %v3397
        %3486 = vmatprep.subr.bf16.mxu0 0
        %3487 = vmatpush1.bf16.msra.mxu0 %v3400
        %3488 = vmatprep.subr.bf16.mxu0 0
        %3489 = vmatpush1.bf16.msra.mxu0 %v3403
        %3490 = vmatprep.subr.bf16.mxu0 0
        %3491 = vmatpush1.bf16.msra.mxu0 %v3406
        %3492 = vmatprep.subr.bf16.mxu0 0
        %3493 = vmatpush1.bf16.msra.mxu0 %v3409
        %3494 = vmatprep.subr.bf16.mxu0 0
        %3495 = vmatpush1.bf16.msra.mxu0 %v3412
        %3496 = vmatprep.subr.bf16.mxu0 0
        %3497 = vmatpush1.bf16.msra.mxu0 0
        %3498 = vmatprep.subr.bf16.mxu0 0
        %3499 = vmatpush1.bf16.msra.mxu0 0
        %3500 = vmatprep.subr.bf16.mxu0 0
        %3501 = vmatpush1.bf16.msra.mxu0 0
        %3502 = vmatprep.subr.bf16.mxu0 0
        %3503 = vmatpush1.bf16.msra.mxu0 0
        %3504 = vmatprep.subr.bf16.mxu0 0
        %3505 = vmatpush1.bf16.msra.mxu0 0
        %3506 = vmatprep.subr.bf16.mxu0 0
        %3507 = vmatpush1.bf16.msra.mxu0 0
        %3508 = vmatprep.subr.bf16.mxu0 0
        %3509 = vmatpush1.bf16.msra.mxu0 0
        %3510 = vmatprep.subr.bf16.mxu0 0
        %3511 = vmatpush1.bf16.msra.mxu0 0
        %3512 = vmatprep.mubr.bf16.mxu0 0
        %3513 = vmatmul.mubr.bf16.gmra.mrb[0].mxu0 %v3275
        %v3514 = vpop.f32.mrb[0].mxu0
        %v3515 = vadd.f32 0.0, %v3514
        %v3516 = vpop.f32.mrb[0].mxu0
        %v3517 = vpop.f32.mrb[0].mxu0
        %v3518 = vadd.f32 0.0, %v3517
        %v3519 = vpop.f32.mrb[0].mxu0
        %3520 = vdwg.mxu0
        %s3521 = scalar_lea.vmem [#allocation7], 128
        %v3522 = vld [vmem:[%s3521] sm:$0xff]
        %v3523 = vld [vmem:[%s3521 + $0x8] sm:$0xff]
        %v3524 = vld [vmem:[%s3521 + $0x10] sm:$0xff]
        %v3525 = vld [vmem:[%s3521 + $0x18] sm:$0xff]
        %v3526 = vld [vmem:[%s3521 + $0x20] sm:$0xff]
        %v3527 = vld [vmem:[%s3521 + $0x28] sm:$0xff]
        %v3528 = vld [vmem:[%s3521 + $0x30] sm:$0xff]
        %v3529 = vld [vmem:[%s3521 + $0x38] sm:$0xff]
        %v3530 = vld [vmem:[%s3521 + $0x40] sm:$0xff]
        %v3531 = vld [vmem:[%s3521 + $0x48] sm:$0xff]
        %v3532 = vld [vmem:[%s3521 + $0x50] sm:$0xff]
        %v3533 = vld [vmem:[%s3521 + $0x58] sm:$0xff]
        %v3534 = vld [vmem:[%s3521 + $0x60] sm:$0xff]
        %v3535 = vld [vmem:[%s3521 + $0x68] sm:$0xff]
        %v3536 = vld [vmem:[%s3521 + $0x70] sm:$0xff]
        %v3537 = vld [vmem:[%s3521 + $0x78] sm:$0xff]
        %v3554 = vunpack.c.l.b16 %v3522
        %v3555 = vunpack.c.h.b16 %v3522
        %v3556 = vunpack.c.l.b16 %v3523
        %v3557 = vunpack.c.h.b16 %v3523
        %v3558 = vunpack.c.l.b16 %v3524
        %v3559 = vunpack.c.h.b16 %v3524
        %v3560 = vunpack.c.l.b16 %v3525
        %v3561 = vunpack.c.h.b16 %v3525
        %v3562 = vunpack.c.l.b16 %v3526
        %v3563 = vunpack.c.h.b16 %v3526
        %v3564 = vunpack.c.l.b16 %v3527
        %v3565 = vunpack.c.h.b16 %v3527
        %v3566 = vunpack.c.l.b16 %v3528
        %v3567 = vunpack.c.h.b16 %v3528
        %v3568 = vunpack.c.l.b16 %v3529
        %v3569 = vunpack.c.h.b16 %v3529
        %v3570 = vunpack.c.l.b16 %v3530
        %v3571 = vunpack.c.h.b16 %v3530
        %v3572 = vunpack.c.l.b16 %v3531
        %v3573 = vunpack.c.h.b16 %v3531
        %v3574 = vunpack.c.l.b16 %v3532
        %v3575 = vunpack.c.h.b16 %v3532
        %v3576 = vunpack.c.l.b16 %v3533
        %v3577 = vunpack.c.h.b16 %v3533
        %v3578 = vunpack.c.l.b16 %v3534
        %v3579 = vunpack.c.h.b16 %v3534
        %v3580 = vunpack.c.l.b16 %v3535
        %v3581 = vunpack.c.h.b16 %v3535
        %v3582 = vunpack.c.l.b16 %v3536
        %v3583 = vunpack.c.h.b16 %v3536
        %v3584 = vunpack.c.l.b16 %v3537
        %v3585 = vunpack.c.h.b16 %v3537
        %v3586 = vpack.c.b16 %v3556, %v3554
        %v3587 = vpack.c.b16 %v3557, %v3555
        %v3588 = vpack.c.b16 %v3560, %v3558
        %v3589 = vpack.c.b16 %v3561, %v3559
        %v3590 = vpack.c.b16 %v3564, %v3562
        %v3591 = vpack.c.b16 %v3565, %v3563
        %v3592 = vpack.c.b16 %v3568, %v3566
        %v3593 = vpack.c.b16 %v3569, %v3567
        %v3594 = vpack.c.b16 %v3572, %v3570
        %v3595 = vpack.c.b16 %v3573, %v3571
        %v3596 = vpack.c.b16 %v3576, %v3574
        %v3597 = vpack.c.b16 %v3577, %v3575
        %v3598 = vpack.c.b16 %v3580, %v3578
        %v3599 = vpack.c.b16 %v3581, %v3579
        %v3600 = vpack.c.b16 %v3584, %v3582
        %v3601 = vpack.c.b16 %v3585, %v3583
        %3618 = vmatprep.subr.bf16.mxu0 %v3587
        %3619 = vmatpush1.bf16.msra.mxu0 %v3586
        %3620 = vmatprep.subr.bf16.mxu0 %v3589
        %3621 = vmatpush1.bf16.msra.mxu0 %v3588
        %3622 = vmatprep.subr.bf16.mxu0 %v3591
        %3623 = vmatpush1.bf16.msra.mxu0 %v3590
        %3624 = vmatprep.subr.bf16.mxu0 %v3593
        %3625 = vmatpush1.bf16.msra.mxu0 %v3592
        %3626 = vmatprep.subr.bf16.mxu0 %v3595
        %3627 = vmatpush1.bf16.msra.mxu0 %v3594
        %3628 = vmatprep.subr.bf16.mxu0 %v3597
        %3629 = vmatpush1.bf16.msra.mxu0 %v3596
        %3630 = vmatprep.subr.bf16.mxu0 %v3599
        %3631 = vmatpush1.bf16.msra.mxu0 %v3598
        %3632 = vmatprep.subr.bf16.mxu0 %v3601
        %3633 = vmatpush1.bf16.msra.mxu0 %v3600
        %3634 = vmatprep.subr.bf16.mxu0 0
        %3635 = vmatpush1.bf16.msra.mxu0 0
        %3636 = vmatprep.subr.bf16.mxu0 0
        %3637 = vmatpush1.bf16.msra.mxu0 0
        %3638 = vmatprep.subr.bf16.mxu0 0
        %3639 = vmatpush1.bf16.msra.mxu0 0
        %3640 = vmatprep.subr.bf16.mxu0 0
        %3641 = vmatpush1.bf16.msra.mxu0 0
        %3642 = vmatprep.subr.bf16.mxu0 0
        %3643 = vmatpush1.bf16.msra.mxu0 0
        %3644 = vmatprep.subr.bf16.mxu0 0
        %3645 = vmatpush1.bf16.msra.mxu0 0
        %3646 = vmatprep.subr.bf16.mxu0 0
        %3647 = vmatpush1.bf16.msra.mxu0 0
        %3648 = vmatprep.subr.bf16.mxu0 0
        %3649 = vmatpush1.bf16.msra.mxu0 0
        %3650 = vmatprep.mubr.bf16.mxu0 0
        %3651 = vmatmul.mubr.bf16.gmra.mrb[0].mxu0 %v3275
        %v3652 = vpop.f32.mrb[0].mxu0
        %v3653 = vadd.f32 0.0, %v3652
        %v3654 = vpop.f32.mrb[0].mxu0
        %v3655 = vadd.f32 0.0, %v3654
        %v3656 = vpop.f32.mrb[0].mxu0
        %v3657 = vadd.f32 0.0, %v3656
        %v3658 = vpop.f32.mrb[0].mxu0
        %v3659 = vadd.f32 0.0, %v3658
        %3660 = vdwg.mxu0
        %v3661 = vmul.f32 %v3472, %v531
        %v3662 = vmul.f32 %v3476, %v532
        %v3663 = vmul.f32 %v3653, %v533
        %v3664 = vmul.f32 %v3657, %v534
        %v3665 = vadd.f32 %v3661, %v3663
        %v3666 = vadd.f32 %v3662, %v3664
        %v3667 = vmul.f32 %v3474, %v531
        %v3668 = vmul.f32 %v3478, %v532
        %v3669 = vmul.f32 %v3655, %v533
        %v3670 = vmul.f32 %v3659, %v534
        %v3671 = vadd.f32 %v3667, %v3669
        %v3672 = vadd.f32 %v3668, %v3670
        %3675 = vrot.lane.b32.xlu0 %v3665, 96
        %v3676 = vpop.permute.xlu0 %3675
        %3677 = vrot.lane.b32.xlu0 %v3666, 96
        %v3678 = vpop.permute.xlu0 %3677
        %3681 = vrot.lane.b32.xlu0 %v3665, 64
        %v3682 = vpop.permute.xlu0 %3681
        %3683 = vrot.lane.b32.xlu0 %v3666, 64
        %v3684 = vpop.permute.xlu0 %3683
        %3687 = vrot.lane.b32.xlu0 %v3665, 32
        %v3688 = vpop.permute.xlu0 %3687
        %3689 = vrot.lane.b32.xlu0 %v3666, 32
        %v3690 = vpop.permute.xlu0 %3689
        %v3693 = vcombine.low %v3665, %v3682
        %v3694 = vcombine.high %v3665, %v3682
        %v3696 = vunpack.c.l.s4 1983009808
        %v3697 = vunpack.c.0.s8 %v3696
        %v3698 = vlaneseq
        %v3699 = vshrl.u32 %v3698, 7
        %v3700 = vsub.s32 %v3697, %v3699
        %v3701 = vrot.slane %v3693, %v3700
        %v3703 = vunpack.c.l.s4 1983009808
        %v3704 = vunpack.c.0.s8 %v3703
        %v3705 = vlaneseq
        %v3706 = vshrl.u32 %v3705, 7
        %v3707 = vsub.s32 %v3704, %v3706
        %v3708 = vrot.slane %v3694, %v3707
        %v3709 = vcombine.low %v3676, %v3688
        %v3710 = vcombine.high %v3676, %v3688
        %v3712 = vunpack.c.l.s4 1983009808
        %v3713 = vunpack.c.0.s8 %v3712
        %v3714 = vlaneseq
        %v3715 = vshrl.u32 %v3714, 7
        %v3716 = vsub.s32 %v3713, %v3715
        %v3717 = vrot.slane %v3709, %v3716
        %v3719 = vunpack.c.l.s4 1983009808
        %v3720 = vunpack.c.0.s8 %v3719
        %v3721 = vlaneseq
        %v3722 = vshrl.u32 %v3721, 7
        %v3723 = vsub.s32 %v3720, %v3722
        %v3724 = vrot.slane %v3710, %v3723
        %v3725 = vcombine.low %v3701, %v3717
        %v3726 = vcombine.high %v3701, %v3717
        %v3728 = vunpack.c.l.s4 1934713408
        %v3729 = vunpack.c.0.s8 %v3728
        %v3730 = vlaneseq
        %v3731 = vshrl.u32 %v3730, 7
        %v3732 = vsub.s32 %v3729, %v3731
        %v3733 = vrot.slane %v3725, %v3732
        %v3735 = vunpack.c.l.s4 1934713408
        %v3736 = vunpack.c.0.s8 %v3735
        %v3737 = vlaneseq
        %v3738 = vshrl.u32 %v3737, 7
        %v3739 = vsub.s32 %v3736, %v3738
        %v3740 = vrot.slane %v3726, %v3739
        %v3741 = vcombine.low %v3708, %v3724
        %v3742 = vcombine.high %v3708, %v3724
        %v3744 = vunpack.c.l.s4 1934713408
        %v3745 = vunpack.c.0.s8 %v3744
        %v3746 = vlaneseq
        %v3747 = vshrl.u32 %v3746, 7
        %v3748 = vsub.s32 %v3745, %v3747
        %v3749 = vrot.slane %v3741, %v3748
        %v3751 = vunpack.c.l.s4 1934713408
        %v3752 = vunpack.c.0.s8 %v3751
        %v3753 = vlaneseq
        %v3754 = vshrl.u32 %v3753, 7
        %v3755 = vsub.s32 %v3752, %v3754
        %v3756 = vrot.slane %v3742, %v3755
        %v3757 = vcombine.high %v3733, 0.0
        %v3758 = vcombine.high %v3740, 0.0
        %v3759 = vcombine.high %v3749, 0.0
        %v3760 = vcombine.high %v3756, 0.0
        %v3761 = vcombine.low %v3666, %v3684
        %v3762 = vcombine.high %v3666, %v3684
        %v3764 = vunpack.c.l.s4 1983009808
        %v3765 = vunpack.c.0.s8 %v3764
        %v3766 = vlaneseq
        %v3767 = vshrl.u32 %v3766, 7
        %v3768 = vsub.s32 %v3765, %v3767
        %v3769 = vrot.slane %v3761, %v3768
        %v3771 = vunpack.c.l.s4 1983009808
        %v3772 = vunpack.c.0.s8 %v3771
        %v3773 = vlaneseq
        %v3774 = vshrl.u32 %v3773, 7
        %v3775 = vsub.s32 %v3772, %v3774
        %v3776 = vrot.slane %v3762, %v3775
        %v3777 = vcombine.low %v3678, %v3690
        %v3778 = vcombine.high %v3678, %v3690
        %v3780 = vunpack.c.l.s4 1983009808
        %v3781 = vunpack.c.0.s8 %v3780
        %v3782 = vlaneseq
        %v3783 = vshrl.u32 %v3782, 7
        %v3784 = vsub.s32 %v3781, %v3783
        %v3785 = vrot.slane %v3777, %v3784
        %v3787 = vunpack.c.l.s4 1983009808
        %v3788 = vunpack.c.0.s8 %v3787
        %v3789 = vlaneseq
        %v3790 = vshrl.u32 %v3789, 7
        %v3791 = vsub.s32 %v3788, %v3790
        %v3792 = vrot.slane %v3778, %v3791
        %v3793 = vcombine.low %v3769, %v3785
        %v3794 = vcombine.high %v3769, %v3785
        %v3796 = vunpack.c.l.s4 1934713408
        %v3797 = vunpack.c.0.s8 %v3796
        %v3798 = vlaneseq
        %v3799 = vshrl.u32 %v3798, 7
        %v3800 = vsub.s32 %v3797, %v3799
        %v3801 = vrot.slane %v3793, %v3800
        %v3803 = vunpack.c.l.s4 1934713408
        %v3804 = vunpack.c.0.s8 %v3803
        %v3805 = vlaneseq
        %v3806 = vshrl.u32 %v3805, 7
        %v3807 = vsub.s32 %v3804, %v3806
        %v3808 = vrot.slane %v3794, %v3807
        %v3809 = vcombine.low %v3776, %v3792
        %v3810 = vcombine.high %v3776, %v3792
        %v3812 = vunpack.c.l.s4 1934713408
        %v3813 = vunpack.c.0.s8 %v3812
        %v3814 = vlaneseq
        %v3815 = vshrl.u32 %v3814, 7
        %v3816 = vsub.s32 %v3813, %v3815
        %v3817 = vrot.slane %v3809, %v3816
        %v3819 = vunpack.c.l.s4 1934713408
        %v3820 = vunpack.c.0.s8 %v3819
        %v3821 = vlaneseq
        %v3822 = vshrl.u32 %v3821, 7
        %v3823 = vsub.s32 %v3820, %v3822
        %v3824 = vrot.slane %v3810, %v3823
        %v3825 = vcombine.high %v3801, 0.0
        %v3826 = vcombine.high %v3808, 0.0
        %v3827 = vcombine.high %v3817, 0.0
        %v3828 = vcombine.high %v3824, 0.0
        %v3829 = vcombine.low %v3733, %v3740
        %v3831 = vunpack.c.l.s4 1983009808
        %v3832 = vunpack.c.0.s8 %v3831
        %v3833 = vlaneseq
        %v3834 = vshrl.u32 %v3833, 7
        %v3835 = vsub.s32 %v3832, %v3834
        %v3836 = vrot.slane %v3829, %v3835
        %v3837 = vcombine.low %v3757, %v3758
        %v3839 = vunpack.c.l.s4 1983009808
        %v3840 = vunpack.c.0.s8 %v3839
        %v3841 = vlaneseq
        %v3842 = vshrl.u32 %v3841, 7
        %v3843 = vsub.s32 %v3840, %v3842
        %v3844 = vrot.slane %v3837, %v3843
        %v3845 = vcombine.low %v3749, %v3756
        %v3847 = vunpack.c.l.s4 1983009808
        %v3848 = vunpack.c.0.s8 %v3847
        %v3849 = vlaneseq
        %v3850 = vshrl.u32 %v3849, 7
        %v3851 = vsub.s32 %v3848, %v3850
        %v3852 = vrot.slane %v3845, %v3851
        %v3853 = vcombine.low %v3759, %v3760
        %v3855 = vunpack.c.l.s4 1983009808
        %v3856 = vunpack.c.0.s8 %v3855
        %v3857 = vlaneseq
        %v3858 = vshrl.u32 %v3857, 7
        %v3859 = vsub.s32 %v3856, %v3858
        %v3860 = vrot.slane %v3853, %v3859
        %v3861 = vcombine.low %v3836, %v3844
        %v3862 = vcombine.high %v3836, %v3844
        %v3864 = vunpack.c.l.s4 1934713408
        %v3865 = vunpack.c.0.s8 %v3864
        %v3866 = vlaneseq
        %v3867 = vshrl.u32 %v3866, 7
        %v3868 = vsub.s32 %v3865, %v3867
        %v3869 = vrot.slane %v3861, %v3868
        %v3871 = vunpack.c.l.s4 1934713408
        %v3872 = vunpack.c.0.s8 %v3871
        %v3873 = vlaneseq
        %v3874 = vshrl.u32 %v3873, 7
        %v3875 = vsub.s32 %v3872, %v3874
        %v3876 = vrot.slane %v3862, %v3875
        %v3877 = vcombine.low %v3852, %v3860
        %v3878 = vcombine.high %v3852, %v3860
        %v3880 = vunpack.c.l.s4 1934713408
        %v3881 = vunpack.c.0.s8 %v3880
        %v3882 = vlaneseq
        %v3883 = vshrl.u32 %v3882, 7
        %v3884 = vsub.s32 %v3881, %v3883
        %v3885 = vrot.slane %v3877, %v3884
        %v3887 = vunpack.c.l.s4 1934713408
        %v3888 = vunpack.c.0.s8 %v3887
        %v3889 = vlaneseq
        %v3890 = vshrl.u32 %v3889, 7
        %v3891 = vsub.s32 %v3888, %v3890
        %v3892 = vrot.slane %v3878, %v3891
        %v3893 = vcombine.low %v3869, %v3885
        %v3894 = vcombine.high %v3869, %v3885
        %v3895 = vcombine.low %v3876, %v3892
        %v3896 = vcombine.high %v3876, %v3892
        %v3897 = vcombine.low %v3801, %v3808
        %v3899 = vunpack.c.l.s4 1983009808
        %v3900 = vunpack.c.0.s8 %v3899
        %v3901 = vlaneseq
        %v3902 = vshrl.u32 %v3901, 7
        %v3903 = vsub.s32 %v3900, %v3902
        %v3904 = vrot.slane %v3897, %v3903
        %v3905 = vcombine.low %v3825, %v3826
        %v3907 = vunpack.c.l.s4 1983009808
        %v3908 = vunpack.c.0.s8 %v3907
        %v3909 = vlaneseq
        %v3910 = vshrl.u32 %v3909, 7
        %v3911 = vsub.s32 %v3908, %v3910
        %v3912 = vrot.slane %v3905, %v3911
        %v3913 = vcombine.low %v3817, %v3824
        %v3915 = vunpack.c.l.s4 1983009808
        %v3916 = vunpack.c.0.s8 %v3915
        %v3917 = vlaneseq
        %v3918 = vshrl.u32 %v3917, 7
        %v3919 = vsub.s32 %v3916, %v3918
        %v3920 = vrot.slane %v3913, %v3919
        %v3921 = vcombine.low %v3827, %v3828
        %v3923 = vunpack.c.l.s4 1983009808
        %v3924 = vunpack.c.0.s8 %v3923
        %v3925 = vlaneseq
        %v3926 = vshrl.u32 %v3925, 7
        %v3927 = vsub.s32 %v3924, %v3926
        %v3928 = vrot.slane %v3921, %v3927
        %v3929 = vcombine.low %v3904, %v3912
        %v3930 = vcombine.high %v3904, %v3912
        %v3932 = vunpack.c.l.s4 1934713408
        %v3933 = vunpack.c.0.s8 %v3932
        %v3934 = vlaneseq
        %v3935 = vshrl.u32 %v3934, 7
        %v3936 = vsub.s32 %v3933, %v3935
        %v3937 = vrot.slane %v3929, %v3936
        %v3939 = vunpack.c.l.s4 1934713408
        %v3940 = vunpack.c.0.s8 %v3939
        %v3941 = vlaneseq
        %v3942 = vshrl.u32 %v3941, 7
        %v3943 = vsub.s32 %v3940, %v3942
        %v3944 = vrot.slane %v3930, %v3943
        %v3945 = vcombine.low %v3920, %v3928
        %v3946 = vcombine.high %v3920, %v3928
        %v3948 = vunpack.c.l.s4 1934713408
        %v3949 = vunpack.c.0.s8 %v3948
        %v3950 = vlaneseq
        %v3951 = vshrl.u32 %v3950, 7
        %v3952 = vsub.s32 %v3949, %v3951
        %v3953 = vrot.slane %v3945, %v3952
        %v3955 = vunpack.c.l.s4 1934713408
        %v3956 = vunpack.c.0.s8 %v3955
        %v3957 = vlaneseq
        %v3958 = vshrl.u32 %v3957, 7
        %v3959 = vsub.s32 %v3956, %v3958
        %v3960 = vrot.slane %v3946, %v3959
        %v3961 = vcombine.low %v3937, %v3953
        %v3962 = vcombine.high %v3937, %v3953
        %v3963 = vcombine.low %v3944, %v3960
        %v3964 = vcombine.high %v3944, %v3960
        %v3965 = vpack.c.bf16 %v3961, %v3893
        %v3966 = vpack.c.bf16 %v3962, %v3894
        %v3967 = vpack.c.bf16 %v3963, %v3895
        %v3968 = vpack.c.bf16 %v3964, %v3896
        %3971 = vrot.lane.b32.xlu0 %v3671, 96
        %v3972 = vpop.permute.xlu0 %3971
        %3973 = vrot.lane.b32.xlu0 %v3672, 96
        %v3974 = vpop.permute.xlu0 %3973
        %3977 = vrot.lane.b32.xlu0 %v3671, 64
        %v3978 = vpop.permute.xlu0 %3977
        %3979 = vrot.lane.b32.xlu0 %v3672, 64
        %v3980 = vpop.permute.xlu0 %3979
        %3983 = vrot.lane.b32.xlu0 %v3671, 32
        %v3984 = vpop.permute.xlu0 %3983
        %3985 = vrot.lane.b32.xlu0 %v3672, 32
        %v3986 = vpop.permute.xlu0 %3985
        %v3989 = vcombine.low %v3671, %v3978
        %v3990 = vcombine.high %v3671, %v3978
        %v3992 = vunpack.c.l.s4 1983009808
        %v3993 = vunpack.c.0.s8 %v3992
        %v3994 = vlaneseq
        %v3995 = vshrl.u32 %v3994, 7
        %v3996 = vsub.s32 %v3993, %v3995
        %v3997 = vrot.slane %v3989, %v3996
        %v3999 = vunpack.c.l.s4 1983009808
        %v4000 = vunpack.c.0.s8 %v3999
        %v4001 = vlaneseq
        %v4002 = vshrl.u32 %v4001, 7
        %v4003 = vsub.s32 %v4000, %v4002
        %v4004 = vrot.slane %v3990, %v4003
        %v4005 = vcombine.low %v3972, %v3984
        %v4006 = vcombine.high %v3972, %v3984
        %v4008 = vunpack.c.l.s4 1983009808
        %v4009 = vunpack.c.0.s8 %v4008
        %v4010 = vlaneseq
        %v4011 = vshrl.u32 %v4010, 7
        %v4012 = vsub.s32 %v4009, %v4011
        %v4013 = vrot.slane %v4005, %v4012
        %v4015 = vunpack.c.l.s4 1983009808
        %v4016 = vunpack.c.0.s8 %v4015
        %v4017 = vlaneseq
        %v4018 = vshrl.u32 %v4017, 7
        %v4019 = vsub.s32 %v4016, %v4018
        %v4020 = vrot.slane %v4006, %v4019
        %v4021 = vcombine.low %v3997, %v4013
        %v4022 = vcombine.high %v3997, %v4013
        %v4024 = vunpack.c.l.s4 1934713408
        %v4025 = vunpack.c.0.s8 %v4024
        %v4026 = vlaneseq
        %v4027 = vshrl.u32 %v4026, 7
        %v4028 = vsub.s32 %v4025, %v4027
        %v4029 = vrot.slane %v4021, %v4028
        %v4031 = vunpack.c.l.s4 1934713408
        %v4032 = vunpack.c.0.s8 %v4031
        %v4033 = vlaneseq
        %v4034 = vshrl.u32 %v4033, 7
        %v4035 = vsub.s32 %v4032, %v4034
        %v4036 = vrot.slane %v4022, %v4035
        %v4037 = vcombine.low %v4004, %v4020
        %v4038 = vcombine.high %v4004, %v4020
        %v4040 = vunpack.c.l.s4 1934713408
        %v4041 = vunpack.c.0.s8 %v4040
        %v4042 = vlaneseq
        %v4043 = vshrl.u32 %v4042, 7
        %v4044 = vsub.s32 %v4041, %v4043
        %v4045 = vrot.slane %v4037, %v4044
        %v4047 = vunpack.c.l.s4 1934713408
        %v4048 = vunpack.c.0.s8 %v4047
        %v4049 = vlaneseq
        %v4050 = vshrl.u32 %v4049, 7
        %v4051 = vsub.s32 %v4048, %v4050
        %v4052 = vrot.slane %v4038, %v4051
        %v4053 = vcombine.high %v4029, 0.0
        %v4054 = vcombine.high %v4036, 0.0
        %v4055 = vcombine.high %v4045, 0.0
        %v4056 = vcombine.high %v4052, 0.0
        %v4057 = vcombine.low %v3672, %v3980
        %v4058 = vcombine.high %v3672, %v3980
        %v4060 = vunpack.c.l.s4 1983009808
        %v4061 = vunpack.c.0.s8 %v4060
        %v4062 = vlaneseq
        %v4063 = vshrl.u32 %v4062, 7
        %v4064 = vsub.s32 %v4061, %v4063
        %v4065 = vrot.slane %v4057, %v4064
        %v4067 = vunpack.c.l.s4 1983009808
        %v4068 = vunpack.c.0.s8 %v4067
        %v4069 = vlaneseq
        %v4070 = vshrl.u32 %v4069, 7
        %v4071 = vsub.s32 %v4068, %v4070
        %v4072 = vrot.slane %v4058, %v4071
        %v4073 = vcombine.low %v3974, %v3986
        %v4074 = vcombine.high %v3974, %v3986
        %v4076 = vunpack.c.l.s4 1983009808
        %v4077 = vunpack.c.0.s8 %v4076
        %v4078 = vlaneseq
        %v4079 = vshrl.u32 %v4078, 7
        %v4080 = vsub.s32 %v4077, %v4079
        %v4081 = vrot.slane %v4073, %v4080
        %v4083 = vunpack.c.l.s4 1983009808
        %v4084 = vunpack.c.0.s8 %v4083
        %v4085 = vlaneseq
        %v4086 = vshrl.u32 %v4085, 7
        %v4087 = vsub.s32 %v4084, %v4086
        %v4088 = vrot.slane %v4074, %v4087
        %v4089 = vcombine.low %v4065, %v4081
        %v4090 = vcombine.high %v4065, %v4081
        %v4092 = vunpack.c.l.s4 1934713408
        %v4093 = vunpack.c.0.s8 %v4092
        %v4094 = vlaneseq
        %v4095 = vshrl.u32 %v4094, 7
        %v4096 = vsub.s32 %v4093, %v4095
        %v4097 = vrot.slane %v4089, %v4096
        %v4099 = vunpack.c.l.s4 1934713408
        %v4100 = vunpack.c.0.s8 %v4099
        %v4101 = vlaneseq
        %v4102 = vshrl.u32 %v4101, 7
        %v4103 = vsub.s32 %v4100, %v4102
        %v4104 = vrot.slane %v4090, %v4103
        %v4105 = vcombine.low %v4072, %v4088
        %v4106 = vcombine.high %v4072, %v4088
        %v4108 = vunpack.c.l.s4 1934713408
        %v4109 = vunpack.c.0.s8 %v4108
        %v4110 = vlaneseq
        %v4111 = vshrl.u32 %v4110, 7
        %v4112 = vsub.s32 %v4109, %v4111
        %v4113 = vrot.slane %v4105, %v4112
        %v4115 = vunpack.c.l.s4 1934713408
        %v4116 = vunpack.c.0.s8 %v4115
        %v4117 = vlaneseq
        %v4118 = vshrl.u32 %v4117, 7
        %v4119 = vsub.s32 %v4116, %v4118
        %v4120 = vrot.slane %v4106, %v4119
        %v4121 = vcombine.high %v4097, 0.0
        %v4122 = vcombine.high %v4104, 0.0
        %v4123 = vcombine.high %v4113, 0.0
        %v4124 = vcombine.high %v4120, 0.0
        %v4125 = vcombine.low %v4029, %v4036
        %v4127 = vunpack.c.l.s4 1983009808
        %v4128 = vunpack.c.0.s8 %v4127
        %v4129 = vlaneseq
        %v4130 = vshrl.u32 %v4129, 7
        %v4131 = vsub.s32 %v4128, %v4130
        %v4132 = vrot.slane %v4125, %v4131
        %v4133 = vcombine.low %v4053, %v4054
        %v4135 = vunpack.c.l.s4 1983009808
        %v4136 = vunpack.c.0.s8 %v4135
        %v4137 = vlaneseq
        %v4138 = vshrl.u32 %v4137, 7
        %v4139 = vsub.s32 %v4136, %v4138
        %v4140 = vrot.slane %v4133, %v4139
        %v4141 = vcombine.low %v4045, %v4052
        %v4143 = vunpack.c.l.s4 1983009808
        %v4144 = vunpack.c.0.s8 %v4143
        %v4145 = vlaneseq
        %v4146 = vshrl.u32 %v4145, 7
        %v4147 = vsub.s32 %v4144, %v4146
        %v4148 = vrot.slane %v4141, %v4147
        %v4149 = vcombine.low %v4055, %v4056
        %v4151 = vunpack.c.l.s4 1983009808
        %v4152 = vunpack.c.0.s8 %v4151
        %v4153 = vlaneseq
        %v4154 = vshrl.u32 %v4153, 7
        %v4155 = vsub.s32 %v4152, %v4154
        %v4156 = vrot.slane %v4149, %v4155
        %v4157 = vcombine.low %v4132, %v4140
        %v4158 = vcombine.high %v4132, %v4140
        %v4160 = vunpack.c.l.s4 1934713408
        %v4161 = vunpack.c.0.s8 %v4160
        %v4162 = vlaneseq
        %v4163 = vshrl.u32 %v4162, 7
        %v4164 = vsub.s32 %v4161, %v4163
        %v4165 = vrot.slane %v4157, %v4164
        %v4167 = vunpack.c.l.s4 1934713408
        %v4168 = vunpack.c.0.s8 %v4167
        %v4169 = vlaneseq
        %v4170 = vshrl.u32 %v4169, 7
        %v4171 = vsub.s32 %v4168, %v4170
        %v4172 = vrot.slane %v4158, %v4171
        %v4173 = vcombine.low %v4148, %v4156
        %v4174 = vcombine.high %v4148, %v4156
        %v4176 = vunpack.c.l.s4 1934713408
        %v4177 = vunpack.c.0.s8 %v4176
        %v4178 = vlaneseq
        %v4179 = vshrl.u32 %v4178, 7
        %v4180 = vsub.s32 %v4177, %v4179
        %v4181 = vrot.slane %v4173, %v4180
        %v4183 = vunpack.c.l.s4 1934713408
        %v4184 = vunpack.c.0.s8 %v4183
        %v4185 = vlaneseq
        %v4186 = vshrl.u32 %v4185, 7
        %v4187 = vsub.s32 %v4184, %v4186
        %v4188 = vrot.slane %v4174, %v4187
        %v4189 = vcombine.low %v4165, %v4181
        %v4190 = vcombine.high %v4165, %v4181
        %v4191 = vcombine.low %v4172, %v4188
        %v4192 = vcombine.high %v4172, %v4188
        %v4193 = vcombine.low %v4097, %v4104
        %v4195 = vunpack.c.l.s4 1983009808
        %v4196 = vunpack.c.0.s8 %v4195
        %v4197 = vlaneseq
        %v4198 = vshrl.u32 %v4197, 7
        %v4199 = vsub.s32 %v4196, %v4198
        %v4200 = vrot.slane %v4193, %v4199
        %v4201 = vcombine.low %v4121, %v4122
        %v4203 = vunpack.c.l.s4 1983009808
        %v4204 = vunpack.c.0.s8 %v4203
        %v4205 = vlaneseq
        %v4206 = vshrl.u32 %v4205, 7
        %v4207 = vsub.s32 %v4204, %v4206
        %v4208 = vrot.slane %v4201, %v4207
        %v4209 = vcombine.low %v4113, %v4120
        %v4211 = vunpack.c.l.s4 1983009808
        %v4212 = vunpack.c.0.s8 %v4211
        %v4213 = vlaneseq
        %v4214 = vshrl.u32 %v4213, 7
        %v4215 = vsub.s32 %v4212, %v4214
        %v4216 = vrot.slane %v4209, %v4215
        %v4217 = vcombine.low %v4123, %v4124
        %v4219 = vunpack.c.l.s4 1983009808
        %v4220 = vunpack.c.0.s8 %v4219
        %v4221 = vlaneseq
        %v4222 = vshrl.u32 %v4221, 7
        %v4223 = vsub.s32 %v4220, %v4222
        %v4224 = vrot.slane %v4217, %v4223
        %v4225 = vcombine.low %v4200, %v4208
        %v4226 = vcombine.high %v4200, %v4208
        %v4228 = vunpack.c.l.s4 1934713408
        %v4229 = vunpack.c.0.s8 %v4228
        %v4230 = vlaneseq
        %v4231 = vshrl.u32 %v4230, 7
        %v4232 = vsub.s32 %v4229, %v4231
        %v4233 = vrot.slane %v4225, %v4232
        %v4235 = vunpack.c.l.s4 1934713408
        %v4236 = vunpack.c.0.s8 %v4235
        %v4237 = vlaneseq
        %v4238 = vshrl.u32 %v4237, 7
        %v4239 = vsub.s32 %v4236, %v4238
        %v4240 = vrot.slane %v4226, %v4239
        %v4241 = vcombine.low %v4216, %v4224
        %v4242 = vcombine.high %v4216, %v4224
        %v4244 = vunpack.c.l.s4 1934713408
        %v4245 = vunpack.c.0.s8 %v4244
        %v4246 = vlaneseq
        %v4247 = vshrl.u32 %v4246, 7
        %v4248 = vsub.s32 %v4245, %v4247
        %v4249 = vrot.slane %v4241, %v4248
        %v4251 = vunpack.c.l.s4 1934713408
        %v4252 = vunpack.c.0.s8 %v4251
        %v4253 = vlaneseq
        %v4254 = vshrl.u32 %v4253, 7
        %v4255 = vsub.s32 %v4252, %v4254
        %v4256 = vrot.slane %v4242, %v4255
        %v4257 = vcombine.low %v4233, %v4249
        %v4258 = vcombine.high %v4233, %v4249
        %v4259 = vcombine.low %v4240, %v4256
        %v4260 = vcombine.high %v4240, %v4256
        %v4261 = vpack.c.bf16 %v4257, %v4189
        %v4262 = vpack.c.bf16 %v4258, %v4190
        %v4263 = vpack.c.bf16 %v4259, %v4191
        %v4264 = vpack.c.bf16 %v4260, %v4192
        %4267 = vrot.lane.b32.xlu0 %v3515, 96
        %v4268 = vpop.permute.xlu0 %4267
        %4269 = vrot.lane.b32.xlu0 %v3518, 96
        %v4270 = vpop.permute.xlu0 %4269
        %4273 = vrot.lane.b32.xlu0 %v3515, 64
        %v4274 = vpop.permute.xlu0 %4273
        %4275 = vrot.lane.b32.xlu0 %v3518, 64
        %v4276 = vpop.permute.xlu0 %4275
        %4279 = vrot.lane.b32.xlu0 %v3515, 32
        %v4280 = vpop.permute.xlu0 %4279
        %4281 = vrot.lane.b32.xlu0 %v3518, 32
        %v4282 = vpop.permute.xlu0 %4281
        %v4285 = vcombine.low %v3515, %v4274
        %v4286 = vcombine.high %v3515, %v4274
        %v4288 = vunpack.c.l.s4 1983009808
        %v4289 = vunpack.c.0.s8 %v4288
        %v4290 = vlaneseq
        %v4291 = vshrl.u32 %v4290, 7
        %v4292 = vsub.s32 %v4289, %v4291
        %v4293 = vrot.slane %v4285, %v4292
        %v4295 = vunpack.c.l.s4 1983009808
        %v4296 = vunpack.c.0.s8 %v4295
        %v4297 = vlaneseq
        %v4298 = vshrl.u32 %v4297, 7
        %v4299 = vsub.s32 %v4296, %v4298
        %v4300 = vrot.slane %v4286, %v4299
        %v4301 = vcombine.low %v4268, %v4280
        %v4302 = vcombine.high %v4268, %v4280
        %v4304 = vunpack.c.l.s4 1983009808
        %v4305 = vunpack.c.0.s8 %v4304
        %v4306 = vlaneseq
        %v4307 = vshrl.u32 %v4306, 7
        %v4308 = vsub.s32 %v4305, %v4307
        %v4309 = vrot.slane %v4301, %v4308
        %v4311 = vunpack.c.l.s4 1983009808
        %v4312 = vunpack.c.0.s8 %v4311
        %v4313 = vlaneseq
        %v4314 = vshrl.u32 %v4313, 7
        %v4315 = vsub.s32 %v4312, %v4314
        %v4316 = vrot.slane %v4302, %v4315
        %v4317 = vcombine.low %v4293, %v4309
        %v4318 = vcombine.high %v4293, %v4309
        %v4320 = vunpack.c.l.s4 1934713408
        %v4321 = vunpack.c.0.s8 %v4320
        %v4322 = vlaneseq
        %v4323 = vshrl.u32 %v4322, 7
        %v4324 = vsub.s32 %v4321, %v4323
        %v4325 = vrot.slane %v4317, %v4324
        %v4327 = vunpack.c.l.s4 1934713408
        %v4328 = vunpack.c.0.s8 %v4327
        %v4329 = vlaneseq
        %v4330 = vshrl.u32 %v4329, 7
        %v4331 = vsub.s32 %v4328, %v4330
        %v4332 = vrot.slane %v4318, %v4331
        %v4333 = vcombine.low %v4300, %v4316
        %v4334 = vcombine.high %v4300, %v4316
        %v4336 = vunpack.c.l.s4 1934713408
        %v4337 = vunpack.c.0.s8 %v4336
        %v4338 = vlaneseq
        %v4339 = vshrl.u32 %v4338, 7
        %v4340 = vsub.s32 %v4337, %v4339
        %v4341 = vrot.slane %v4333, %v4340
        %v4343 = vunpack.c.l.s4 1934713408
        %v4344 = vunpack.c.0.s8 %v4343
        %v4345 = vlaneseq
        %v4346 = vshrl.u32 %v4345, 7
        %v4347 = vsub.s32 %v4344, %v4346
        %v4348 = vrot.slane %v4334, %v4347
        %v4349 = vcombine.high %v4325, 0.0
        %v4350 = vcombine.high %v4332, 0.0
        %v4351 = vcombine.high %v4341, 0.0
        %v4352 = vcombine.high %v4348, 0.0
        %v4353 = vcombine.low %v3518, %v4276
        %v4354 = vcombine.high %v3518, %v4276
        %v4356 = vunpack.c.l.s4 1983009808
        %v4357 = vunpack.c.0.s8 %v4356
        %v4358 = vlaneseq
        %v4359 = vshrl.u32 %v4358, 7
        %v4360 = vsub.s32 %v4357, %v4359
        %v4361 = vrot.slane %v4353, %v4360
        %v4363 = vunpack.c.l.s4 1983009808
        %v4364 = vunpack.c.0.s8 %v4363
        %v4365 = vlaneseq
        %v4366 = vshrl.u32 %v4365, 7
        %v4367 = vsub.s32 %v4364, %v4366
        %v4368 = vrot.slane %v4354, %v4367
        %v4369 = vcombine.low %v4270, %v4282
        %v4370 = vcombine.high %v4270, %v4282
        %v4372 = vunpack.c.l.s4 1983009808
        %v4373 = vunpack.c.0.s8 %v4372
        %v4374 = vlaneseq
        %v4375 = vshrl.u32 %v4374, 7
        %v4376 = vsub.s32 %v4373, %v4375
        %v4377 = vrot.slane %v4369, %v4376
        %v4379 = vunpack.c.l.s4 1983009808
        %v4380 = vunpack.c.0.s8 %v4379
        %v4381 = vlaneseq
        %v4382 = vshrl.u32 %v4381, 7
        %v4383 = vsub.s32 %v4380, %v4382
        %v4384 = vrot.slane %v4370, %v4383
        %v4385 = vcombine.low %v4361, %v4377
        %v4386 = vcombine.high %v4361, %v4377
        %v4388 = vunpack.c.l.s4 1934713408
        %v4389 = vunpack.c.0.s8 %v4388
        %v4390 = vlaneseq
        %v4391 = vshrl.u32 %v4390, 7
        %v4392 = vsub.s32 %v4389, %v4391
        %v4393 = vrot.slane %v4385, %v4392
        %v4395 = vunpack.c.l.s4 1934713408
        %v4396 = vunpack.c.0.s8 %v4395
        %v4397 = vlaneseq
        %v4398 = vshrl.u32 %v4397, 7
        %v4399 = vsub.s32 %v4396, %v4398
        %v4400 = vrot.slane %v4386, %v4399
        %v4401 = vcombine.low %v4368, %v4384
        %v4402 = vcombine.high %v4368, %v4384
        %v4404 = vunpack.c.l.s4 1934713408
        %v4405 = vunpack.c.0.s8 %v4404
        %v4406 = vlaneseq
        %v4407 = vshrl.u32 %v4406, 7
        %v4408 = vsub.s32 %v4405, %v4407
        %v4409 = vrot.slane %v4401, %v4408
        %v4411 = vunpack.c.l.s4 1934713408
        %v4412 = vunpack.c.0.s8 %v4411
        %v4413 = vlaneseq
        %v4414 = vshrl.u32 %v4413, 7
        %v4415 = vsub.s32 %v4412, %v4414
        %v4416 = vrot.slane %v4402, %v4415
        %v4417 = vcombine.high %v4393, 0.0
        %v4418 = vcombine.high %v4400, 0.0
        %v4419 = vcombine.high %v4409, 0.0
        %v4420 = vcombine.high %v4416, 0.0
        %v4421 = vcombine.low %v4325, %v4332
        %v4423 = vunpack.c.l.s4 1983009808
        %v4424 = vunpack.c.0.s8 %v4423
        %v4425 = vlaneseq
        %v4426 = vshrl.u32 %v4425, 7
        %v4427 = vsub.s32 %v4424, %v4426
        %v4428 = vrot.slane %v4421, %v4427
        %v4429 = vcombine.low %v4349, %v4350
        %v4431 = vunpack.c.l.s4 1983009808
        %v4432 = vunpack.c.0.s8 %v4431
        %v4433 = vlaneseq
        %v4434 = vshrl.u32 %v4433, 7
        %v4435 = vsub.s32 %v4432, %v4434
        %v4436 = vrot.slane %v4429, %v4435
        %v4437 = vcombine.low %v4341, %v4348
        %v4439 = vunpack.c.l.s4 1983009808
        %v4440 = vunpack.c.0.s8 %v4439
        %v4441 = vlaneseq
        %v4442 = vshrl.u32 %v4441, 7
        %v4443 = vsub.s32 %v4440, %v4442
        %v4444 = vrot.slane %v4437, %v4443
        %v4445 = vcombine.low %v4351, %v4352
        %v4447 = vunpack.c.l.s4 1983009808
        %v4448 = vunpack.c.0.s8 %v4447
        %v4449 = vlaneseq
        %v4450 = vshrl.u32 %v4449, 7
        %v4451 = vsub.s32 %v4448, %v4450
        %v4452 = vrot.slane %v4445, %v4451
        %v4453 = vcombine.low %v4428, %v4436
        %v4454 = vcombine.high %v4428, %v4436
        %v4456 = vunpack.c.l.s4 1934713408
        %v4457 = vunpack.c.0.s8 %v4456
        %v4458 = vlaneseq
        %v4459 = vshrl.u32 %v4458, 7
        %v4460 = vsub.s32 %v4457, %v4459
        %v4461 = vrot.slane %v4453, %v4460
        %v4463 = vunpack.c.l.s4 1934713408
        %v4464 = vunpack.c.0.s8 %v4463
        %v4465 = vlaneseq
        %v4466 = vshrl.u32 %v4465, 7
        %v4467 = vsub.s32 %v4464, %v4466
        %v4468 = vrot.slane %v4454, %v4467
        %v4469 = vcombine.low %v4444, %v4452
        %v4470 = vcombine.high %v4444, %v4452
        %v4472 = vunpack.c.l.s4 1934713408
        %v4473 = vunpack.c.0.s8 %v4472
        %v4474 = vlaneseq
        %v4475 = vshrl.u32 %v4474, 7
        %v4476 = vsub.s32 %v4473, %v4475
        %v4477 = vrot.slane %v4469, %v4476
        %v4479 = vunpack.c.l.s4 1934713408
        %v4480 = vunpack.c.0.s8 %v4479
        %v4481 = vlaneseq
        %v4482 = vshrl.u32 %v4481, 7
        %v4483 = vsub.s32 %v4480, %v4482
        %v4484 = vrot.slane %v4470, %v4483
        %v4485 = vcombine.low %v4461, %v4477
        %v4486 = vcombine.high %v4461, %v4477
        %v4487 = vcombine.low %v4468, %v4484
        %v4488 = vcombine.high %v4468, %v4484
        %v4489 = vcombine.low %v4393, %v4400
        %v4491 = vunpack.c.l.s4 1983009808
        %v4492 = vunpack.c.0.s8 %v4491
        %v4493 = vlaneseq
        %v4494 = vshrl.u32 %v4493, 7
        %v4495 = vsub.s32 %v4492, %v4494
        %v4496 = vrot.slane %v4489, %v4495
        %v4497 = vcombine.low %v4417, %v4418
        %v4499 = vunpack.c.l.s4 1983009808
        %v4500 = vunpack.c.0.s8 %v4499
        %v4501 = vlaneseq
        %v4502 = vshrl.u32 %v4501, 7
        %v4503 = vsub.s32 %v4500, %v4502
        %v4504 = vrot.slane %v4497, %v4503
        %v4505 = vcombine.low %v4409, %v4416
        %v4507 = vunpack.c.l.s4 1983009808
        %v4508 = vunpack.c.0.s8 %v4507
        %v4509 = vlaneseq
        %v4510 = vshrl.u32 %v4509, 7
        %v4511 = vsub.s32 %v4508, %v4510
        %v4512 = vrot.slane %v4505, %v4511
        %v4513 = vcombine.low %v4419, %v4420
        %v4515 = vunpack.c.l.s4 1983009808
        %v4516 = vunpack.c.0.s8 %v4515
        %v4517 = vlaneseq
        %v4518 = vshrl.u32 %v4517, 7
        %v4519 = vsub.s32 %v4516, %v4518
        %v4520 = vrot.slane %v4513, %v4519
        %v4521 = vcombine.low %v4496, %v4504
        %v4522 = vcombine.high %v4496, %v4504
        %v4524 = vunpack.c.l.s4 1934713408
        %v4525 = vunpack.c.0.s8 %v4524
        %v4526 = vlaneseq
        %v4527 = vshrl.u32 %v4526, 7
        %v4528 = vsub.s32 %v4525, %v4527
        %v4529 = vrot.slane %v4521, %v4528
        %v4531 = vunpack.c.l.s4 1934713408
        %v4532 = vunpack.c.0.s8 %v4531
        %v4533 = vlaneseq
        %v4534 = vshrl.u32 %v4533, 7
        %v4535 = vsub.s32 %v4532, %v4534
        %v4536 = vrot.slane %v4522, %v4535
        %v4537 = vcombine.low %v4512, %v4520
        %v4538 = vcombine.high %v4512, %v4520
        %v4540 = vunpack.c.l.s4 1934713408
        %v4541 = vunpack.c.0.s8 %v4540
        %v4542 = vlaneseq
        %v4543 = vshrl.u32 %v4542, 7
        %v4544 = vsub.s32 %v4541, %v4543
        %v4545 = vrot.slane %v4537, %v4544
        %v4547 = vunpack.c.l.s4 1934713408
        %v4548 = vunpack.c.0.s8 %v4547
        %v4549 = vlaneseq
        %v4550 = vshrl.u32 %v4549, 7
        %v4551 = vsub.s32 %v4548, %v4550
        %v4552 = vrot.slane %v4538, %v4551
        %v4553 = vcombine.low %v4529, %v4545
        %v4554 = vcombine.high %v4529, %v4545
        %v4555 = vcombine.low %v4536, %v4552
        %v4556 = vcombine.high %v4536, %v4552
        %v4557 = vpack.c.bf16 %v4553, %v4485
        %v4558 = vpack.c.bf16 %v4554, %v4486
        %v4559 = vpack.c.bf16 %v4555, %v4487
        %v4560 = vpack.c.bf16 %v4556, %v4488
        %v4562 = vsel %vm1852, %v3965, 0
        %v4565 = vsel %vm1852, %v4261, 0
        %4567 = vmatprep.subr.bf16.mxu0 0
        %4568 = vmatpush1.bf16.xpose.msra.mxu0 %v4565
        %4569 = vmatprep.subr.bf16.mxu0 0
        %4570 = vmatpush1.bf16.xpose.msra.mxu0 0
        %4571 = vmatprep.subr.bf16.mxu0 0
        %4572 = vmatpush1.bf16.xpose.msra.mxu0 0
        %4573 = vmatprep.subr.bf16.mxu0 0
        %4574 = vmatpush1.bf16.xpose.msra.mxu0 0
        %4575 = vmatprep.subr.bf16.mxu0 0
        %4576 = vmatpush1.bf16.xpose.msra.mxu0 0
        %4577 = vmatprep.subr.bf16.mxu0 0
        %4578 = vmatpush1.bf16.xpose.msra.mxu0 0
        %4579 = vmatprep.subr.bf16.mxu0 0
        %4580 = vmatpush1.bf16.xpose.msra.mxu0 0
        %4581 = vmatprep.subr.bf16.mxu0 0
        %4582 = vmatpush1.bf16.xpose.msra.mxu0 0
        %4583 = vmatprep.subr.bf16.mxu0 0
        %4584 = vmatpush1.bf16.xpose.msra.mxu0 0
        %4585 = vmatprep.subr.bf16.mxu0 0
        %4586 = vmatpush1.bf16.xpose.msra.mxu0 0
        %4587 = vmatprep.subr.bf16.mxu0 0
        %4588 = vmatpush1.bf16.xpose.msra.mxu0 0
        %4589 = vmatprep.subr.bf16.mxu0 0
        %4590 = vmatpush1.bf16.xpose.msra.mxu0 0
        %4591 = vmatprep.subr.bf16.mxu0 0
        %4592 = vmatpush1.bf16.xpose.msra.mxu0 0
        %4593 = vmatprep.subr.bf16.mxu0 0
        %4594 = vmatpush1.bf16.xpose.msra.mxu0 0
        %4595 = vmatprep.subr.bf16.mxu0 0
        %4596 = vmatpush1.bf16.xpose.msra.mxu0 0
        %4597 = vmatprep.subr.bf16.mxu0 0
        %4598 = vmatpush1.bf16.xpose.msra.mxu0 0
        %4599 = vmatprep.mubr.bf16.mxu0 0
        %4600 = vmatmul.mubr.bf16.gmra.mrb[0].mxu0 %v4562
        %v4601 = vpop.f32.mrb[0].mxu0
        %v4602 = vadd.f32 0.0, %v4601
        %v4603 = vpop.f32.mrb[0].mxu0
        %v4604 = vpop.f32.mrb[0].mxu0
        %v4605 = vadd.f32 0.0, %v4604
        %v4606 = vpop.f32.mrb[0].mxu0
        %4607 = vdwg.mxu0
        %v4609 = vsel %vm1852, %v3966, 0
        %v4612 = vsel %vm1852, %v4262, 0
        %4614 = vmatprep.subr.bf16.mxu0 0
        %4615 = vmatpush1.bf16.xpose.msra.mxu0 %v4612
        %4616 = vmatprep.subr.bf16.mxu0 0
        %4617 = vmatpush1.bf16.xpose.msra.mxu0 0
        %4618 = vmatprep.subr.bf16.mxu0 0
        %4619 = vmatpush1.bf16.xpose.msra.mxu0 0
        %4620 = vmatprep.subr.bf16.mxu0 0
        %4621 = vmatpush1.bf16.xpose.msra.mxu0 0
        %4622 = vmatprep.subr.bf16.mxu0 0
        %4623 = vmatpush1.bf16.xpose.msra.mxu0 0
        %4624 = vmatprep.subr.bf16.mxu0 0
        %4625 = vmatpush1.bf16.xpose.msra.mxu0 0
        %4626 = vmatprep.subr.bf16.mxu0 0
        %4627 = vmatpush1.bf16.xpose.msra.mxu0 0
        %4628 = vmatprep.subr.bf16.mxu0 0
        %4629 = vmatpush1.bf16.xpose.msra.mxu0 0
        %4630 = vmatprep.subr.bf16.mxu0 0
        %4631 = vmatpush1.bf16.xpose.msra.mxu0 0
        %4632 = vmatprep.subr.bf16.mxu0 0
        %4633 = vmatpush1.bf16.xpose.msra.mxu0 0
        %4634 = vmatprep.subr.bf16.mxu0 0
        %4635 = vmatpush1.bf16.xpose.msra.mxu0 0
        %4636 = vmatprep.subr.bf16.mxu0 0
        %4637 = vmatpush1.bf16.xpose.msra.mxu0 0
        %4638 = vmatprep.subr.bf16.mxu0 0
        %4639 = vmatpush1.bf16.xpose.msra.mxu0 0
        %4640 = vmatprep.subr.bf16.mxu0 0
        %4641 = vmatpush1.bf16.xpose.msra.mxu0 0
        %4642 = vmatprep.subr.bf16.mxu0 0
        %4643 = vmatpush1.bf16.xpose.msra.mxu0 0
        %4644 = vmatprep.subr.bf16.mxu0 0
        %4645 = vmatpush1.bf16.xpose.msra.mxu0 0
        %4646 = vmatprep.mubr.bf16.mxu0 0
        %4647 = vmatmul.mubr.bf16.gmra.mrb[0].mxu0 %v4609
        %v4648 = vpop.f32.mrb[0].mxu0
        %v4649 = vadd.f32 0.0, %v4648
        %v4650 = vpop.f32.mrb[0].mxu0
        %v4651 = vpop.f32.mrb[0].mxu0
        %v4652 = vadd.f32 0.0, %v4651
        %v4653 = vpop.f32.mrb[0].mxu0
        %4654 = vdwg.mxu0
        %v4656 = vsel %vm1852, %v3967, 0
        %v4659 = vsel %vm1852, %v4263, 0
        %4661 = vmatprep.subr.bf16.mxu0 0
        %4662 = vmatpush1.bf16.xpose.msra.mxu0 %v4659
        %4663 = vmatprep.subr.bf16.mxu0 0
        %4664 = vmatpush1.bf16.xpose.msra.mxu0 0
        %4665 = vmatprep.subr.bf16.mxu0 0
        %4666 = vmatpush1.bf16.xpose.msra.mxu0 0
        %4667 = vmatprep.subr.bf16.mxu0 0
        %4668 = vmatpush1.bf16.xpose.msra.mxu0 0
        %4669 = vmatprep.subr.bf16.mxu0 0
        %4670 = vmatpush1.bf16.xpose.msra.mxu0 0
        %4671 = vmatprep.subr.bf16.mxu0 0
        %4672 = vmatpush1.bf16.xpose.msra.mxu0 0
        %4673 = vmatprep.subr.bf16.mxu0 0
        %4674 = vmatpush1.bf16.xpose.msra.mxu0 0
        %4675 = vmatprep.subr.bf16.mxu0 0
        %4676 = vmatpush1.bf16.xpose.msra.mxu0 0
        %4677 = vmatprep.subr.bf16.mxu0 0
        %4678 = vmatpush1.bf16.xpose.msra.mxu0 0
        %4679 = vmatprep.subr.bf16.mxu0 0
        %4680 = vmatpush1.bf16.xpose.msra.mxu0 0
        %4681 = vmatprep.subr.bf16.mxu0 0
        %4682 = vmatpush1.bf16.xpose.msra.mxu0 0
        %4683 = vmatprep.subr.bf16.mxu0 0
        %4684 = vmatpush1.bf16.xpose.msra.mxu0 0
        %4685 = vmatprep.subr.bf16.mxu0 0
        %4686 = vmatpush1.bf16.xpose.msra.mxu0 0
        %4687 = vmatprep.subr.bf16.mxu0 0
        %4688 = vmatpush1.bf16.xpose.msra.mxu0 0
        %4689 = vmatprep.subr.bf16.mxu0 0
        %4690 = vmatpush1.bf16.xpose.msra.mxu0 0
        %4691 = vmatprep.subr.bf16.mxu0 0
        %4692 = vmatpush1.bf16.xpose.msra.mxu0 0
        %4693 = vmatprep.mubr.bf16.mxu0 0
        %4694 = vmatmul.mubr.bf16.gmra.mrb[0].mxu0 %v4656
        %v4695 = vpop.f32.mrb[0].mxu0
        %v4696 = vadd.f32 0.0, %v4695
        %v4697 = vpop.f32.mrb[0].mxu0
        %v4698 = vpop.f32.mrb[0].mxu0
        %v4699 = vadd.f32 0.0, %v4698
        %v4700 = vpop.f32.mrb[0].mxu0
        %4701 = vdwg.mxu0
        %v4703 = vsel %vm1852, %v3968, 0
        %v4706 = vsel %vm1852, %v4264, 0
        %4708 = vmatprep.subr.bf16.mxu0 0
        %4709 = vmatpush1.bf16.xpose.msra.mxu0 %v4706
        %4710 = vmatprep.subr.bf16.mxu0 0
        %4711 = vmatpush1.bf16.xpose.msra.mxu0 0
        %4712 = vmatprep.subr.bf16.mxu0 0
        %4713 = vmatpush1.bf16.xpose.msra.mxu0 0
        %4714 = vmatprep.subr.bf16.mxu0 0
        %4715 = vmatpush1.bf16.xpose.msra.mxu0 0
        %4716 = vmatprep.subr.bf16.mxu0 0
        %4717 = vmatpush1.bf16.xpose.msra.mxu0 0
        %4718 = vmatprep.subr.bf16.mxu0 0
        %4719 = vmatpush1.bf16.xpose.msra.mxu0 0
        %4720 = vmatprep.subr.bf16.mxu0 0
        %4721 = vmatpush1.bf16.xpose.msra.mxu0 0
        %4722 = vmatprep.subr.bf16.mxu0 0
        %4723 = vmatpush1.bf16.xpose.msra.mxu0 0
        %4724 = vmatprep.subr.bf16.mxu0 0
        %4725 = vmatpush1.bf16.xpose.msra.mxu0 0
        %4726 = vmatprep.subr.bf16.mxu0 0
        %4727 = vmatpush1.bf16.xpose.msra.mxu0 0
        %4728 = vmatprep.subr.bf16.mxu0 0
        %4729 = vmatpush1.bf16.xpose.msra.mxu0 0
        %4730 = vmatprep.subr.bf16.mxu0 0
        %4731 = vmatpush1.bf16.xpose.msra.mxu0 0
        %4732 = vmatprep.subr.bf16.mxu0 0
        %4733 = vmatpush1.bf16.xpose.msra.mxu0 0
        %4734 = vmatprep.subr.bf16.mxu0 0
        %4735 = vmatpush1.bf16.xpose.msra.mxu0 0
        %4736 = vmatprep.subr.bf16.mxu0 0
        %4737 = vmatpush1.bf16.xpose.msra.mxu0 0
        %4738 = vmatprep.subr.bf16.mxu0 0
        %4739 = vmatpush1.bf16.xpose.msra.mxu0 0
        %4740 = vmatprep.mubr.bf16.mxu0 0
        %4741 = vmatmul.mubr.bf16.gmra.mrb[0].mxu0 %v4703
        %v4742 = vpop.f32.mrb[0].mxu0
        %v4743 = vadd.f32 0.0, %v4742
        %v4744 = vpop.f32.mrb[0].mxu0
        %v4745 = vpop.f32.mrb[0].mxu0
        %v4746 = vadd.f32 0.0, %v4745
        %v4747 = vpop.f32.mrb[0].mxu0
        %4748 = vdwg.mxu0
        %v4749 = vmul.f32 %v4602, 0.17677669
        %v4750 = vmul.f32 %v4605, 0.17677669
        %v4751 = vmul.f32 %v4649, 0.17677669
        %v4752 = vmul.f32 %v4652, 0.17677669
        %v4753 = vmul.f32 %v4696, 0.17677669
        %v4754 = vmul.f32 %v4699, 0.17677669
        %v4755 = vmul.f32 %v4743, 0.17677669
        %v4756 = vmul.f32 %v4746, 0.17677669
        %v4757 = vsel %vm2051, %v4749, -1e+30
        %v4758 = vsel %vm2052, %v4750, -1e+30
        %v4759 = vsel %vm2051, %v4751, -1e+30
        %v4760 = vsel %vm2052, %v4752, -1e+30
        %v4761 = vsel %vm2051, %v4753, -1e+30
        %v4762 = vsel %vm2052, %v4754, -1e+30
        %v4763 = vsel %vm2051, %v4755, -1e+30
        %v4764 = vsel %vm2052, %v4756, -1e+30
        %v4765 = vsel %vm2061, %v4757, -inf
        %4766 = vmax.xlane.f32.xlu0 %v4765
        %v4767 = vpop.xlane.xlu0 %4766
        %v4768 = vsel %vm2061, %v4758, -inf
        %4769 = vmax.xlane.f32.xlu0 %v4768
        %v4770 = vpop.xlane.xlu0 %4769
        %v4771 = vsel %vm2061, %v4759, -inf
        %4772 = vmax.xlane.f32.xlu0 %v4771
        %v4773 = vpop.xlane.xlu0 %4772
        %v4774 = vsel %vm2061, %v4760, -inf
        %4775 = vmax.xlane.f32.xlu0 %v4774
        %v4776 = vpop.xlane.xlu0 %4775
        %v4777 = vsel %vm2061, %v4761, -inf
        %4778 = vmax.xlane.f32.xlu0 %v4777
        %v4779 = vpop.xlane.xlu0 %4778
        %v4780 = vsel %vm2061, %v4762, -inf
        %4781 = vmax.xlane.f32.xlu0 %v4780
        %v4782 = vpop.xlane.xlu0 %4781
        %v4783 = vsel %vm2061, %v4763, -inf
        %4784 = vmax.xlane.f32.xlu0 %v4783
        %v4785 = vpop.xlane.xlu0 %4784
        %v4786 = vsel %vm2061, %v4764, -inf
        %4787 = vmax.xlane.f32.xlu0 %v4786
        %v4788 = vpop.xlane.xlu0 %4787
        %v4789 = vsub.f32 %v4757, %v4767
        %v4790 = vsub.f32 %v4758, %v4770
        %v4791 = vsub.f32 %v4759, %v4773
        %v4792 = vsub.f32 %v4760, %v4776
        %v4793 = vsub.f32 %v4761, %v4779
        %v4794 = vsub.f32 %v4762, %v4782
        %v4795 = vsub.f32 %v4763, %v4785
        %v4796 = vsub.f32 %v4764, %v4788
        %v4797 = vmul.f32 %v4789, 1.442695
        %v4798 = vpow.pop %v4797
        %v4799 = vmul.f32 %v4790, 1.442695
        %v4800 = vpow.pop %v4799
        %v4801 = vmul.f32 %v4791, 1.442695
        %v4802 = vpow.pop %v4801
        %v4803 = vmul.f32 %v4792, 1.442695
        %v4804 = vpow.pop %v4803
        %v4805 = vmul.f32 %v4793, 1.442695
        %v4806 = vpow.pop %v4805
        %v4807 = vmul.f32 %v4794, 1.442695
        %v4808 = vpow.pop %v4807
        %v4809 = vmul.f32 %v4795, 1.442695
        %v4810 = vpow.pop %v4809
        %v4811 = vmul.f32 %v4796, 1.442695
        %v4812 = vpow.pop %v4811
        %v4813 = vsel %vm2061, %v4798, 0.0
        %4814 = vadd.xlane.f32.xlu0 %v4813
        %v4815 = vpop.xlane.xlu0 %4814
        %v4816 = vsel %vm2061, %v4800, 0.0
        %4817 = vadd.xlane.f32.xlu0 %v4816
        %v4818 = vpop.xlane.xlu0 %4817
        %v4819 = vsel %vm2061, %v4802, 0.0
        %4820 = vadd.xlane.f32.xlu0 %v4819
        %v4821 = vpop.xlane.xlu0 %4820
        %v4822 = vsel %vm2061, %v4804, 0.0
        %4823 = vadd.xlane.f32.xlu0 %v4822
        %v4824 = vpop.xlane.xlu0 %4823
        %v4825 = vsel %vm2061, %v4806, 0.0
        %4826 = vadd.xlane.f32.xlu0 %v4825
        %v4827 = vpop.xlane.xlu0 %4826
        %v4828 = vsel %vm2061, %v4808, 0.0
        %4829 = vadd.xlane.f32.xlu0 %v4828
        %v4830 = vpop.xlane.xlu0 %4829
        %v4831 = vsel %vm2061, %v4810, 0.0
        %4832 = vadd.xlane.f32.xlu0 %v4831
        %v4833 = vpop.xlane.xlu0 %4832
        %v4834 = vsel %vm2061, %v4812, 0.0
        %4835 = vadd.xlane.f32.xlu0 %v4834
        %v4836 = vpop.xlane.xlu0 %4835
        %v4837 = vrcp.pop %v4815
        %v4838 = vmul.f32 %v4798, %v4837
        %v4839 = vrcp.pop %v4818
        %v4840 = vmul.f32 %v4800, %v4839
        %v4841 = vrcp.pop %v4821
        %v4842 = vmul.f32 %v4802, %v4841
        %v4843 = vrcp.pop %v4824
        %v4844 = vmul.f32 %v4804, %v4843
        %v4845 = vrcp.pop %v4827
        %v4846 = vmul.f32 %v4806, %v4845
        %v4847 = vrcp.pop %v4830
        %v4848 = vmul.f32 %v4808, %v4847
        %v4849 = vrcp.pop %v4833
        %v4850 = vmul.f32 %v4810, %v4849
        %v4851 = vrcp.pop %v4836
        %v4852 = vmul.f32 %v4812, %v4851
        %v4853 = vpack.c.bf16 %v4840, %v4838
        %v4854 = vpack.c.bf16 %v4844, %v4842
        %v4855 = vpack.c.bf16 %v4848, %v4846
        %v4856 = vpack.c.bf16 %v4852, %v4850
        %v4858 = vsel %vm2061, %v4853, 0
        %4860 = vmatprep.subr.bf16.mxu0 0
        %4861 = vmatpush1.bf16.msra.mxu0 %v4557
        %4862 = vmatprep.subr.bf16.mxu0 0
        %4863 = vmatpush1.bf16.msra.mxu0 0
        %4864 = vmatprep.subr.bf16.mxu0 0
        %4865 = vmatpush1.bf16.msra.mxu0 0
        %4866 = vmatprep.subr.bf16.mxu0 0
        %4867 = vmatpush1.bf16.msra.mxu0 0
        %4868 = vmatprep.subr.bf16.mxu0 0
        %4869 = vmatpush1.bf16.msra.mxu0 0
        %4870 = vmatprep.subr.bf16.mxu0 0
        %4871 = vmatpush1.bf16.msra.mxu0 0
        %4872 = vmatprep.subr.bf16.mxu0 0
        %4873 = vmatpush1.bf16.msra.mxu0 0
        %4874 = vmatprep.subr.bf16.mxu0 0
        %4875 = vmatpush1.bf16.msra.mxu0 0
        %4876 = vmatprep.subr.bf16.mxu0 0
        %4877 = vmatpush1.bf16.msra.mxu0 0
        %4878 = vmatprep.subr.bf16.mxu0 0
        %4879 = vmatpush1.bf16.msra.mxu0 0
        %4880 = vmatprep.subr.bf16.mxu0 0
        %4881 = vmatpush1.bf16.msra.mxu0 0
        %4882 = vmatprep.subr.bf16.mxu0 0
        %4883 = vmatpush1.bf16.msra.mxu0 0
        %4884 = vmatprep.subr.bf16.mxu0 0
        %4885 = vmatpush1.bf16.msra.mxu0 0
        %4886 = vmatprep.subr.bf16.mxu0 0
        %4887 = vmatpush1.bf16.msra.mxu0 0
        %4888 = vmatprep.subr.bf16.mxu0 0
        %4889 = vmatpush1.bf16.msra.mxu0 0
        %4890 = vmatprep.subr.bf16.mxu0 0
        %4891 = vmatpush1.bf16.msra.mxu0 0
        %4892 = vmatprep.mubr.bf16.mxu0 0
        %4893 = vmatmul.mubr.bf16.gmra.mrb[0].mxu0 %v4858
        %v4894 = vpop.f32.mrb[0].mxu0
        %v4895 = vadd.f32 0.0, %v4894
        %v4896 = vpop.f32.mrb[0].mxu0
        %v4897 = vpop.f32.mrb[0].mxu0
        %v4898 = vadd.f32 0.0, %v4897
        %v4899 = vpop.f32.mrb[0].mxu0
        %4900 = vdwg.mxu0
        %v4902 = vsel %vm2061, %v4854, 0
        %4904 = vmatprep.subr.bf16.mxu0 0
        %4905 = vmatpush1.bf16.msra.mxu0 %v4558
        %4906 = vmatprep.subr.bf16.mxu0 0
        %4907 = vmatpush1.bf16.msra.mxu0 0
        %4908 = vmatprep.subr.bf16.mxu0 0
        %4909 = vmatpush1.bf16.msra.mxu0 0
        %4910 = vmatprep.subr.bf16.mxu0 0
        %4911 = vmatpush1.bf16.msra.mxu0 0
        %4912 = vmatprep.subr.bf16.mxu0 0
        %4913 = vmatpush1.bf16.msra.mxu0 0
        %4914 = vmatprep.subr.bf16.mxu0 0
        %4915 = vmatpush1.bf16.msra.mxu0 0
        %4916 = vmatprep.subr.bf16.mxu0 0
        %4917 = vmatpush1.bf16.msra.mxu0 0
        %4918 = vmatprep.subr.bf16.mxu0 0
        %4919 = vmatpush1.bf16.msra.mxu0 0
        %4920 = vmatprep.subr.bf16.mxu0 0
        %4921 = vmatpush1.bf16.msra.mxu0 0
        %4922 = vmatprep.subr.bf16.mxu0 0
        %4923 = vmatpush1.bf16.msra.mxu0 0
        %4924 = vmatprep.subr.bf16.mxu0 0
        %4925 = vmatpush1.bf16.msra.mxu0 0
        %4926 = vmatprep.subr.bf16.mxu0 0
        %4927 = vmatpush1.bf16.msra.mxu0 0
        %4928 = vmatprep.subr.bf16.mxu0 0
        %4929 = vmatpush1.bf16.msra.mxu0 0
        %4930 = vmatprep.subr.bf16.mxu0 0
        %4931 = vmatpush1.bf16.msra.mxu0 0
        %4932 = vmatprep.subr.bf16.mxu0 0
        %4933 = vmatpush1.bf16.msra.mxu0 0
        %4934 = vmatprep.subr.bf16.mxu0 0
        %4935 = vmatpush1.bf16.msra.mxu0 0
        %4936 = vmatprep.mubr.bf16.mxu0 0
        %4937 = vmatmul.mubr.bf16.gmra.mrb[0].mxu0 %v4902
        %v4938 = vpop.f32.mrb[0].mxu0
        %v4939 = vadd.f32 0.0, %v4938
        %v4940 = vpop.f32.mrb[0].mxu0
        %v4941 = vpop.f32.mrb[0].mxu0
        %v4942 = vadd.f32 0.0, %v4941
        %v4943 = vpop.f32.mrb[0].mxu0
        %4944 = vdwg.mxu0
        %v4946 = vsel %vm2061, %v4855, 0
        %4948 = vmatprep.subr.bf16.mxu0 0
        %4949 = vmatpush1.bf16.msra.mxu0 %v4559
        %4950 = vmatprep.subr.bf16.mxu0 0
        %4951 = vmatpush1.bf16.msra.mxu0 0
        %4952 = vmatprep.subr.bf16.mxu0 0
        %4953 = vmatpush1.bf16.msra.mxu0 0
        %4954 = vmatprep.subr.bf16.mxu0 0
        %4955 = vmatpush1.bf16.msra.mxu0 0
        %4956 = vmatprep.subr.bf16.mxu0 0
        %4957 = vmatpush1.bf16.msra.mxu0 0
        %4958 = vmatprep.subr.bf16.mxu0 0
        %4959 = vmatpush1.bf16.msra.mxu0 0
        %4960 = vmatprep.subr.bf16.mxu0 0
        %4961 = vmatpush1.bf16.msra.mxu0 0
        %4962 = vmatprep.subr.bf16.mxu0 0
        %4963 = vmatpush1.bf16.msra.mxu0 0
        %4964 = vmatprep.subr.bf16.mxu0 0
        %4965 = vmatpush1.bf16.msra.mxu0 0
        %4966 = vmatprep.subr.bf16.mxu0 0
        %4967 = vmatpush1.bf16.msra.mxu0 0
        %4968 = vmatprep.subr.bf16.mxu0 0
        %4969 = vmatpush1.bf16.msra.mxu0 0
        %4970 = vmatprep.subr.bf16.mxu0 0
        %4971 = vmatpush1.bf16.msra.mxu0 0
        %4972 = vmatprep.subr.bf16.mxu0 0
        %4973 = vmatpush1.bf16.msra.mxu0 0
        %4974 = vmatprep.subr.bf16.mxu0 0
        %4975 = vmatpush1.bf16.msra.mxu0 0
        %4976 = vmatprep.subr.bf16.mxu0 0
        %4977 = vmatpush1.bf16.msra.mxu0 0
        %4978 = vmatprep.subr.bf16.mxu0 0
        %4979 = vmatpush1.bf16.msra.mxu0 0
        %4980 = vmatprep.mubr.bf16.mxu0 0
        %4981 = vmatmul.mubr.bf16.gmra.mrb[0].mxu0 %v4946
        %v4982 = vpop.f32.mrb[0].mxu0
        %v4983 = vadd.f32 0.0, %v4982
        %v4984 = vpop.f32.mrb[0].mxu0
        %v4985 = vpop.f32.mrb[0].mxu0
        %v4986 = vadd.f32 0.0, %v4985
        %v4987 = vpop.f32.mrb[0].mxu0
        %4988 = vdwg.mxu0
        %v4990 = vsel %vm2061, %v4856, 0
        %4992 = vmatprep.subr.bf16.mxu0 0
        %4993 = vmatpush1.bf16.msra.mxu0 %v4560
        %4994 = vmatprep.subr.bf16.mxu0 0
        %4995 = vmatpush1.bf16.msra.mxu0 0
        %4996 = vmatprep.subr.bf16.mxu0 0
        %4997 = vmatpush1.bf16.msra.mxu0 0
        %4998 = vmatprep.subr.bf16.mxu0 0
        %4999 = vmatpush1.bf16.msra.mxu0 0
        %5000 = vmatprep.subr.bf16.mxu0 0
        %5001 = vmatpush1.bf16.msra.mxu0 0
        %5002 = vmatprep.subr.bf16.mxu0 0
        %5003 = vmatpush1.bf16.msra.mxu0 0
        %5004 = vmatprep.subr.bf16.mxu0 0
        %5005 = vmatpush1.bf16.msra.mxu0 0
        %5006 = vmatprep.subr.bf16.mxu0 0
        %5007 = vmatpush1.bf16.msra.mxu0 0
        %5008 = vmatprep.subr.bf16.mxu0 0
        %5009 = vmatpush1.bf16.msra.mxu0 0
        %5010 = vmatprep.subr.bf16.mxu0 0
        %5011 = vmatpush1.bf16.msra.mxu0 0
        %5012 = vmatprep.subr.bf16.mxu0 0
        %5013 = vmatpush1.bf16.msra.mxu0 0
        %5014 = vmatprep.subr.bf16.mxu0 0
        %5015 = vmatpush1.bf16.msra.mxu0 0
        %5016 = vmatprep.subr.bf16.mxu0 0
        %5017 = vmatpush1.bf16.msra.mxu0 0
        %5018 = vmatprep.subr.bf16.mxu0 0
        %5019 = vmatpush1.bf16.msra.mxu0 0
        %5020 = vmatprep.subr.bf16.mxu0 0
        %5021 = vmatpush1.bf16.msra.mxu0 0
        %5022 = vmatprep.subr.bf16.mxu0 0
        %5023 = vmatpush1.bf16.msra.mxu0 0
        %5024 = vmatprep.mubr.bf16.mxu0 0
        %5025 = vmatmul.mubr.bf16.gmra.mrb[0].mxu0 %v4990
        %v5026 = vpop.f32.mrb[0].mxu0
        %v5027 = vadd.f32 0.0, %v5026
        %v5028 = vpop.f32.mrb[0].mxu0
        %v5029 = vpop.f32.mrb[0].mxu0
        %v5030 = vadd.f32 0.0, %v5029
        %v5031 = vpop.f32.mrb[0].mxu0
        %5032 = vdwg.mxu0
        %v5033 = vcombine.low %v4895, %v4983
        %v5034 = vcombine.high %v4895, %v4983
        %v5036 = vunpack.c.l.s4 1983009808
        %v5037 = vunpack.c.0.s8 %v5036
        %v5038 = vlaneseq
        %v5039 = vshrl.u32 %v5038, 7
        %v5040 = vsub.s32 %v5037, %v5039
        %v5041 = vrot.slane %v5033, %v5040
        %v5043 = vunpack.c.l.s4 1983009808
        %v5044 = vunpack.c.0.s8 %v5043
        %v5045 = vlaneseq
        %v5046 = vshrl.u32 %v5045, 7
        %v5047 = vsub.s32 %v5044, %v5046
        %v5048 = vrot.slane %v5034, %v5047
        %v5049 = vcombine.low %v4939, %v5027
        %v5050 = vcombine.high %v4939, %v5027
        %v5052 = vunpack.c.l.s4 1983009808
        %v5053 = vunpack.c.0.s8 %v5052
        %v5054 = vlaneseq
        %v5055 = vshrl.u32 %v5054, 7
        %v5056 = vsub.s32 %v5053, %v5055
        %v5057 = vrot.slane %v5049, %v5056
        %v5059 = vunpack.c.l.s4 1983009808
        %v5060 = vunpack.c.0.s8 %v5059
        %v5061 = vlaneseq
        %v5062 = vshrl.u32 %v5061, 7
        %v5063 = vsub.s32 %v5060, %v5062
        %v5064 = vrot.slane %v5050, %v5063
        %v5065 = vcombine.low %v5041, %v5057
        %v5066 = vcombine.high %v5041, %v5057
        %v5068 = vunpack.c.l.s4 1934713408
        %v5069 = vunpack.c.0.s8 %v5068
        %v5070 = vlaneseq
        %v5071 = vshrl.u32 %v5070, 7
        %v5072 = vsub.s32 %v5069, %v5071
        %v5073 = vrot.slane %v5065, %v5072
        %v5075 = vunpack.c.l.s4 1934713408
        %v5076 = vunpack.c.0.s8 %v5075
        %v5077 = vlaneseq
        %v5078 = vshrl.u32 %v5077, 7
        %v5079 = vsub.s32 %v5076, %v5078
        %v5080 = vrot.slane %v5066, %v5079
        %v5081 = vcombine.low %v5048, %v5064
        %v5082 = vcombine.high %v5048, %v5064
        %v5084 = vunpack.c.l.s4 1934713408
        %v5085 = vunpack.c.0.s8 %v5084
        %v5086 = vlaneseq
        %v5087 = vshrl.u32 %v5086, 7
        %v5088 = vsub.s32 %v5085, %v5087
        %v5089 = vrot.slane %v5081, %v5088
        %v5091 = vunpack.c.l.s4 1934713408
        %v5092 = vunpack.c.0.s8 %v5091
        %v5093 = vlaneseq
        %v5094 = vshrl.u32 %v5093, 7
        %v5095 = vsub.s32 %v5092, %v5094
        %v5096 = vrot.slane %v5082, %v5095
        %v5097 = vcombine.high %v5073, 0.0
        %v5098 = vcombine.high %v5080, 0.0
        %v5099 = vcombine.high %v5089, 0.0
        %v5100 = vcombine.high %v5096, 0.0
        %v5101 = vcombine.low %v4898, %v4986
        %v5102 = vcombine.high %v4898, %v4986
        %v5104 = vunpack.c.l.s4 1983009808
        %v5105 = vunpack.c.0.s8 %v5104
        %v5106 = vlaneseq
        %v5107 = vshrl.u32 %v5106, 7
        %v5108 = vsub.s32 %v5105, %v5107
        %v5109 = vrot.slane %v5101, %v5108
        %v5111 = vunpack.c.l.s4 1983009808
        %v5112 = vunpack.c.0.s8 %v5111
        %v5113 = vlaneseq
        %v5114 = vshrl.u32 %v5113, 7
        %v5115 = vsub.s32 %v5112, %v5114
        %v5116 = vrot.slane %v5102, %v5115
        %v5117 = vcombine.low %v4942, %v5030
        %v5118 = vcombine.high %v4942, %v5030
        %v5120 = vunpack.c.l.s4 1983009808
        %v5121 = vunpack.c.0.s8 %v5120
        %v5122 = vlaneseq
        %v5123 = vshrl.u32 %v5122, 7
        %v5124 = vsub.s32 %v5121, %v5123
        %v5125 = vrot.slane %v5117, %v5124
        %v5127 = vunpack.c.l.s4 1983009808
        %v5128 = vunpack.c.0.s8 %v5127
        %v5129 = vlaneseq
        %v5130 = vshrl.u32 %v5129, 7
        %v5131 = vsub.s32 %v5128, %v5130
        %v5132 = vrot.slane %v5118, %v5131
        %v5133 = vcombine.low %v5109, %v5125
        %v5134 = vcombine.high %v5109, %v5125
        %v5136 = vunpack.c.l.s4 1934713408
        %v5137 = vunpack.c.0.s8 %v5136
        %v5138 = vlaneseq
        %v5139 = vshrl.u32 %v5138, 7
        %v5140 = vsub.s32 %v5137, %v5139
        %v5141 = vrot.slane %v5133, %v5140
        %v5143 = vunpack.c.l.s4 1934713408
        %v5144 = vunpack.c.0.s8 %v5143
        %v5145 = vlaneseq
        %v5146 = vshrl.u32 %v5145, 7
        %v5147 = vsub.s32 %v5144, %v5146
        %v5148 = vrot.slane %v5134, %v5147
        %v5149 = vcombine.low %v5116, %v5132
        %v5150 = vcombine.high %v5116, %v5132
        %v5152 = vunpack.c.l.s4 1934713408
        %v5153 = vunpack.c.0.s8 %v5152
        %v5154 = vlaneseq
        %v5155 = vshrl.u32 %v5154, 7
        %v5156 = vsub.s32 %v5153, %v5155
        %v5157 = vrot.slane %v5149, %v5156
        %v5159 = vunpack.c.l.s4 1934713408
        %v5160 = vunpack.c.0.s8 %v5159
        %v5161 = vlaneseq
        %v5162 = vshrl.u32 %v5161, 7
        %v5163 = vsub.s32 %v5160, %v5162
        %v5164 = vrot.slane %v5150, %v5163
        %v5165 = vcombine.high %v5141, 0.0
        %v5166 = vcombine.high %v5148, 0.0
        %v5167 = vcombine.high %v5157, 0.0
        %v5168 = vcombine.high %v5164, 0.0
        %v5169 = vcombine.low %v5073, %v5080
        %v5171 = vunpack.c.l.s4 1983009808
        %v5172 = vunpack.c.0.s8 %v5171
        %v5173 = vlaneseq
        %v5174 = vshrl.u32 %v5173, 7
        %v5175 = vsub.s32 %v5172, %v5174
        %v5176 = vrot.slane %v5169, %v5175
        %v5177 = vcombine.low %v5097, %v5098
        %v5179 = vunpack.c.l.s4 1983009808
        %v5180 = vunpack.c.0.s8 %v5179
        %v5181 = vlaneseq
        %v5182 = vshrl.u32 %v5181, 7
        %v5183 = vsub.s32 %v5180, %v5182
        %v5184 = vrot.slane %v5177, %v5183
        %v5185 = vcombine.low %v5089, %v5096
        %v5187 = vunpack.c.l.s4 1983009808
        %v5188 = vunpack.c.0.s8 %v5187
        %v5189 = vlaneseq
        %v5190 = vshrl.u32 %v5189, 7
        %v5191 = vsub.s32 %v5188, %v5190
        %v5192 = vrot.slane %v5185, %v5191
        %v5193 = vcombine.low %v5099, %v5100
        %v5195 = vunpack.c.l.s4 1983009808
        %v5196 = vunpack.c.0.s8 %v5195
        %v5197 = vlaneseq
        %v5198 = vshrl.u32 %v5197, 7
        %v5199 = vsub.s32 %v5196, %v5198
        %v5200 = vrot.slane %v5193, %v5199
        %v5201 = vcombine.low %v5176, %v5184
        %v5202 = vcombine.high %v5176, %v5184
        %v5204 = vunpack.c.l.s4 1934713408
        %v5205 = vunpack.c.0.s8 %v5204
        %v5206 = vlaneseq
        %v5207 = vshrl.u32 %v5206, 7
        %v5208 = vsub.s32 %v5205, %v5207
        %v5209 = vrot.slane %v5201, %v5208
        %v5211 = vunpack.c.l.s4 1934713408
        %v5212 = vunpack.c.0.s8 %v5211
        %v5213 = vlaneseq
        %v5214 = vshrl.u32 %v5213, 7
        %v5215 = vsub.s32 %v5212, %v5214
        %v5216 = vrot.slane %v5202, %v5215
        %v5217 = vcombine.low %v5192, %v5200
        %v5218 = vcombine.high %v5192, %v5200
        %v5220 = vunpack.c.l.s4 1934713408
        %v5221 = vunpack.c.0.s8 %v5220
        %v5222 = vlaneseq
        %v5223 = vshrl.u32 %v5222, 7
        %v5224 = vsub.s32 %v5221, %v5223
        %v5225 = vrot.slane %v5217, %v5224
        %v5227 = vunpack.c.l.s4 1934713408
        %v5228 = vunpack.c.0.s8 %v5227
        %v5229 = vlaneseq
        %v5230 = vshrl.u32 %v5229, 7
        %v5231 = vsub.s32 %v5228, %v5230
        %v5232 = vrot.slane %v5218, %v5231
        %v5233 = vcombine.low %v5209, %v5225
        %v5234 = vcombine.high %v5209, %v5225
        %v5235 = vcombine.low %v5216, %v5232
        %v5236 = vcombine.high %v5216, %v5232
        %v5237 = vcombine.low %v5141, %v5148
        %v5239 = vunpack.c.l.s4 1983009808
        %v5240 = vunpack.c.0.s8 %v5239
        %v5241 = vlaneseq
        %v5242 = vshrl.u32 %v5241, 7
        %v5243 = vsub.s32 %v5240, %v5242
        %v5244 = vrot.slane %v5237, %v5243
        %v5245 = vcombine.low %v5165, %v5166
        %v5247 = vunpack.c.l.s4 1983009808
        %v5248 = vunpack.c.0.s8 %v5247
        %v5249 = vlaneseq
        %v5250 = vshrl.u32 %v5249, 7
        %v5251 = vsub.s32 %v5248, %v5250
        %v5252 = vrot.slane %v5245, %v5251
        %v5253 = vcombine.low %v5157, %v5164
        %v5255 = vunpack.c.l.s4 1983009808
        %v5256 = vunpack.c.0.s8 %v5255
        %v5257 = vlaneseq
        %v5258 = vshrl.u32 %v5257, 7
        %v5259 = vsub.s32 %v5256, %v5258
        %v5260 = vrot.slane %v5253, %v5259
        %v5261 = vcombine.low %v5167, %v5168
        %v5263 = vunpack.c.l.s4 1983009808
        %v5264 = vunpack.c.0.s8 %v5263
        %v5265 = vlaneseq
        %v5266 = vshrl.u32 %v5265, 7
        %v5267 = vsub.s32 %v5264, %v5266
        %v5268 = vrot.slane %v5261, %v5267
        %v5269 = vcombine.low %v5244, %v5252
        %v5270 = vcombine.high %v5244, %v5252
        %v5272 = vunpack.c.l.s4 1934713408
        %v5273 = vunpack.c.0.s8 %v5272
        %v5274 = vlaneseq
        %v5275 = vshrl.u32 %v5274, 7
        %v5276 = vsub.s32 %v5273, %v5275
        %v5277 = vrot.slane %v5269, %v5276
        %v5279 = vunpack.c.l.s4 1934713408
        %v5280 = vunpack.c.0.s8 %v5279
        %v5281 = vlaneseq
        %v5282 = vshrl.u32 %v5281, 7
        %v5283 = vsub.s32 %v5280, %v5282
        %v5284 = vrot.slane %v5270, %v5283
        %v5285 = vcombine.low %v5260, %v5268
        %v5286 = vcombine.high %v5260, %v5268
        %v5288 = vunpack.c.l.s4 1934713408
        %v5289 = vunpack.c.0.s8 %v5288
        %v5290 = vlaneseq
        %v5291 = vshrl.u32 %v5290, 7
        %v5292 = vsub.s32 %v5289, %v5291
        %v5293 = vrot.slane %v5285, %v5292
        %v5295 = vunpack.c.l.s4 1934713408
        %v5296 = vunpack.c.0.s8 %v5295
        %v5297 = vlaneseq
        %v5298 = vshrl.u32 %v5297, 7
        %v5299 = vsub.s32 %v5296, %v5298
        %v5300 = vrot.slane %v5286, %v5299
        %v5301 = vcombine.low %v5277, %v5293
        %v5302 = vcombine.high %v5277, %v5293
        %v5303 = vcombine.low %v5284, %v5300
        %v5304 = vcombine.high %v5284, %v5300
        %5307 = vrot.lane.b32.xlu0 %v5234, 32
        %v5308 = vpop.permute.xlu0 %5307
        %5309 = vrot.lane.b32.xlu0 %v5302, 32
        %v5310 = vpop.permute.xlu0 %5309
        %5315 = vrot.lane.b32.xlu0 %v5235, 64
        %v5316 = vpop.permute.xlu0 %5315
        %5317 = vrot.lane.b32.xlu0 %v5303, 64
        %v5318 = vpop.permute.xlu0 %5317
        %5323 = vrot.lane.b32.xlu0 %v5236, 96
        %v5324 = vpop.permute.xlu0 %5323
        %5325 = vrot.lane.b32.xlu0 %v5304, 96
        %v5326 = vpop.permute.xlu0 %5325
        %v5329 = vsel %vm1852, %v5233, %v5308
        %v5330 = vsel %vm1852, %v5301, %v5310
        %v5331 = vsel %vm2628, %v5329, %v5316
        %v5332 = vsel %vm2628, %v5330, %v5318
        %v5333 = vsel %vm2631, %v5331, %v5324
        %v5334 = vsel %vm2631, %v5332, %v5326
        %v5335 = vpack.c.bf16 %v5334, %v5333
        %s5336 = scalar_lea.vmem [#allocation8], 64
        %v5337 = vld [vmem:[%s5336] sm:$0xf]
        %v5338 = vld [vmem:[%s5336 + $0x4] sm:$0xf]
        %v5339 = vld [vmem:[%s5336 + $0x8] sm:$0xf]
        %v5340 = vld [vmem:[%s5336 + $0xc] sm:$0xf]
        %v5341 = vld [vmem:[%s5336 + $0x10] sm:$0xf]
        %v5342 = vld [vmem:[%s5336 + $0x14] sm:$0xf]
        %v5343 = vld [vmem:[%s5336 + $0x18] sm:$0xf]
        %v5344 = vld [vmem:[%s5336 + $0x1c] sm:$0xf]
        %v5345 = vld [vmem:[%s5336 + $0x20] sm:$0xf]
        %v5346 = vld [vmem:[%s5336 + $0x24] sm:$0xf]
        %v5347 = vld [vmem:[%s5336 + $0x28] sm:$0xf]
        %v5348 = vld [vmem:[%s5336 + $0x2c] sm:$0xf]
        %v5349 = vld [vmem:[%s5336 + $0x30] sm:$0xf]
        %v5350 = vld [vmem:[%s5336 + $0x34] sm:$0xf]
        %v5351 = vld [vmem:[%s5336 + $0x38] sm:$0xf]
        %v5352 = vld [vmem:[%s5336 + $0x3c] sm:$0xf]
        %v5369 = vunpack.c.l.b16 %v5337
        %v5370 = vunpack.c.l.b16 %v5338
        %v5371 = vunpack.c.l.b16 %v5339
        %v5372 = vunpack.c.l.b16 %v5340
        %v5373 = vunpack.c.l.b16 %v5341
        %v5374 = vunpack.c.l.b16 %v5342
        %v5375 = vunpack.c.l.b16 %v5343
        %v5376 = vunpack.c.l.b16 %v5344
        %v5377 = vunpack.c.l.b16 %v5345
        %v5378 = vunpack.c.l.b16 %v5346
        %v5379 = vunpack.c.l.b16 %v5347
        %v5380 = vunpack.c.l.b16 %v5348
        %v5381 = vunpack.c.l.b16 %v5349
        %v5382 = vunpack.c.l.b16 %v5350
        %v5383 = vunpack.c.l.b16 %v5351
        %v5384 = vunpack.c.l.b16 %v5352
        %v5385 = vpack.c.b16 %v5370, %v5369
        %v5386 = vpack.c.b16 %v5372, %v5371
        %v5387 = vpack.c.b16 %v5374, %v5373
        %v5388 = vpack.c.b16 %v5376, %v5375
        %v5389 = vpack.c.b16 %v5378, %v5377
        %v5390 = vpack.c.b16 %v5380, %v5379
        %v5391 = vpack.c.b16 %v5382, %v5381
        %v5392 = vpack.c.b16 %v5384, %v5383
        %5401 = vmatprep.subr.bf16.mxu0 0
        %5402 = vmatpush1.bf16.msra.mxu0 %v5385
        %5403 = vmatprep.subr.bf16.mxu0 0
        %5404 = vmatpush1.bf16.msra.mxu0 %v5386
        %5405 = vmatprep.subr.bf16.mxu0 0
        %5406 = vmatpush1.bf16.msra.mxu0 %v5387
        %5407 = vmatprep.subr.bf16.mxu0 0
        %5408 = vmatpush1.bf16.msra.mxu0 %v5388
        %5409 = vmatprep.subr.bf16.mxu0 0
        %5410 = vmatpush1.bf16.msra.mxu0 %v5389
        %5411 = vmatprep.subr.bf16.mxu0 0
        %5412 = vmatpush1.bf16.msra.mxu0 %v5390
        %5413 = vmatprep.subr.bf16.mxu0 0
        %5414 = vmatpush1.bf16.msra.mxu0 %v5391
        %5415 = vmatprep.subr.bf16.mxu0 0
        %5416 = vmatpush1.bf16.msra.mxu0 %v5392
        %5417 = vmatprep.subr.bf16.mxu0 0
        %5418 = vmatpush1.bf16.msra.mxu0 0
        %5419 = vmatprep.subr.bf16.mxu0 0
        %5420 = vmatpush1.bf16.msra.mxu0 0
        %5421 = vmatprep.subr.bf16.mxu0 0
        %5422 = vmatpush1.bf16.msra.mxu0 0
        %5423 = vmatprep.subr.bf16.mxu0 0
        %5424 = vmatpush1.bf16.msra.mxu0 0
        %5425 = vmatprep.subr.bf16.mxu0 0
        %5426 = vmatpush1.bf16.msra.mxu0 0
        %5427 = vmatprep.subr.bf16.mxu0 0
        %5428 = vmatpush1.bf16.msra.mxu0 0
        %5429 = vmatprep.subr.bf16.mxu0 0
        %5430 = vmatpush1.bf16.msra.mxu0 0
        %5431 = vmatprep.subr.bf16.mxu0 0
        %5432 = vmatpush1.bf16.msra.mxu0 0
        %5433 = vmatprep.mubr.bf16.mxu0 0
        %5434 = vmatmul.mubr.bf16.gmra.mrb[0].mxu0 %v5335
        %v5435 = vpop.f32.mrb[0].mxu0
        %v5436 = vadd.f32 0.0, %v5435
        %v5437 = vpop.f32.mrb[0].mxu0
        %v5438 = vpop.f32.mrb[0].mxu0
        %v5439 = vadd.f32 0.0, %v5438
        %v5440 = vpop.f32.mrb[0].mxu0
        %5441 = vdwg.mxu0
        %v5442 = vadd.f32 %v3247, %v5436
        %v5443 = vadd.f32 %v3248, %v5439
        %s5444 = scalar_lea.vmem [#allocation10], 1
        %v5445 = vld [vmem:[%s5444] sm:$0x1]
        %v5446 = vmul.f32 %v5442, %v5442
        %v5447 = vmul.f32 %v5443, %v5443
        %5448 = vadd.xlane.f32.xlu0 %v5446
        %v5449 = vpop.xlane.xlu0 %5448
        %5450 = vadd.xlane.f32.xlu0 %v5447
        %v5451 = vpop.xlane.xlu0 %5450
        %v5452 = vmul.f32 %v5449, %v551
        %v5453 = vmul.f32 %v5451, %v551
        %v5454 = vadd.f32 %v5452, 1e-05
        %v5455 = vadd.f32 %v5453, 1e-05
        %v5456 = vrsqrt.pop %v5454
        %v5457 = vrsqrt.pop %v5455
        %v5458 = vmul.f32 %v5442, %v5456
        %v5459 = vmul.f32 %v5443, %v5457
        %v5461 = vlaneseq
        %v5462 = vshrl.u32 %v5461, 7
        %v5463 = vsub.s32 0, %v5462
        %v5464 = vrot.slane %v5445, %v5463
        %v5466 = vmul.f32 %v5458, %v5464
        %v5467 = vmul.f32 %v5459, %v5464
        %v5468 = vpack.c.bf16 %v5467, %v5466
        %s5469 = scalar_lea.vmem [#allocation11], 256
        %v5470 = vld [vmem:[%s5469] sm:$0xff]
        %v5471 = vld [vmem:[%s5469 + $0x8] sm:$0xff]
        %v5472 = vld [vmem:[%s5469 + $0x10] sm:$0xff]
        %v5473 = vld [vmem:[%s5469 + $0x18] sm:$0xff]
        %v5474 = vld [vmem:[%s5469 + $0x20] sm:$0xff]
        %v5475 = vld [vmem:[%s5469 + $0x28] sm:$0xff]
        %v5476 = vld [vmem:[%s5469 + $0x30] sm:$0xff]
        %v5477 = vld [vmem:[%s5469 + $0x38] sm:$0xff]
        %v5478 = vld [vmem:[%s5469 + $0x40] sm:$0xff]
        %v5479 = vld [vmem:[%s5469 + $0x48] sm:$0xff]
        %v5480 = vld [vmem:[%s5469 + $0x50] sm:$0xff]
        %v5481 = vld [vmem:[%s5469 + $0x58] sm:$0xff]
        %v5482 = vld [vmem:[%s5469 + $0x60] sm:$0xff]
        %v5483 = vld [vmem:[%s5469 + $0x68] sm:$0xff]
        %v5484 = vld [vmem:[%s5469 + $0x70] sm:$0xff]
        %v5485 = vld [vmem:[%s5469 + $0x78] sm:$0xff]
        %v5486 = vld [vmem:[%s5469 + $0x80] sm:$0xff]
        %v5487 = vld [vmem:[%s5469 + $0x88] sm:$0xff]
        %v5488 = vld [vmem:[%s5469 + $0x90] sm:$0xff]
        %v5489 = vld [vmem:[%s5469 + $0x98] sm:$0xff]
        %v5490 = vld [vmem:[%s5469 + $0xa0] sm:$0xff]
        %v5491 = vld [vmem:[%s5469 + $0xa8] sm:$0xff]
        %v5492 = vld [vmem:[%s5469 + $0xb0] sm:$0xff]
        %v5493 = vld [vmem:[%s5469 + $0xb8] sm:$0xff]
        %v5494 = vld [vmem:[%s5469 + $0xc0] sm:$0xff]
        %v5495 = vld [vmem:[%s5469 + $0xc8] sm:$0xff]
        %v5496 = vld [vmem:[%s5469 + $0xd0] sm:$0xff]
        %v5497 = vld [vmem:[%s5469 + $0xd8] sm:$0xff]
        %v5498 = vld [vmem:[%s5469 + $0xe0] sm:$0xff]
        %v5499 = vld [vmem:[%s5469 + $0xe8] sm:$0xff]
        %v5500 = vld [vmem:[%s5469 + $0xf0] sm:$0xff]
        %v5501 = vld [vmem:[%s5469 + $0xf8] sm:$0xff]
        %v5534 = vunpack.c.l.b16 %v5470
        %v5535 = vunpack.c.h.b16 %v5470
        %v5536 = vunpack.c.l.b16 %v5471
        %v5537 = vunpack.c.h.b16 %v5471
        %v5538 = vunpack.c.l.b16 %v5472
        %v5539 = vunpack.c.h.b16 %v5472
        %v5540 = vunpack.c.l.b16 %v5473
        %v5541 = vunpack.c.h.b16 %v5473
        %v5542 = vunpack.c.l.b16 %v5474
        %v5543 = vunpack.c.h.b16 %v5474
        %v5544 = vunpack.c.l.b16 %v5475
        %v5545 = vunpack.c.h.b16 %v5475
        %v5546 = vunpack.c.l.b16 %v5476
        %v5547 = vunpack.c.h.b16 %v5476
        %v5548 = vunpack.c.l.b16 %v5477
        %v5549 = vunpack.c.h.b16 %v5477
        %v5550 = vunpack.c.l.b16 %v5478
        %v5551 = vunpack.c.h.b16 %v5478
        %v5552 = vunpack.c.l.b16 %v5479
        %v5553 = vunpack.c.h.b16 %v5479
        %v5554 = vunpack.c.l.b16 %v5480
        %v5555 = vunpack.c.h.b16 %v5480
        %v5556 = vunpack.c.l.b16 %v5481
        %v5557 = vunpack.c.h.b16 %v5481
        %v5558 = vunpack.c.l.b16 %v5482
        %v5559 = vunpack.c.h.b16 %v5482
        %v5560 = vunpack.c.l.b16 %v5483
        %v5561 = vunpack.c.h.b16 %v5483
        %v5562 = vunpack.c.l.b16 %v5484
        %v5563 = vunpack.c.h.b16 %v5484
        %v5564 = vunpack.c.l.b16 %v5485
        %v5565 = vunpack.c.h.b16 %v5485
        %v5566 = vunpack.c.l.b16 %v5486
        %v5567 = vunpack.c.h.b16 %v5486
        %v5568 = vunpack.c.l.b16 %v5487
        %v5569 = vunpack.c.h.b16 %v5487
        %v5570 = vunpack.c.l.b16 %v5488
        %v5571 = vunpack.c.h.b16 %v5488
        %v5572 = vunpack.c.l.b16 %v5489
        %v5573 = vunpack.c.h.b16 %v5489
        %v5574 = vunpack.c.l.b16 %v5490
        %v5575 = vunpack.c.h.b16 %v5490
        %v5576 = vunpack.c.l.b16 %v5491
        %v5577 = vunpack.c.h.b16 %v5491
        %v5578 = vunpack.c.l.b16 %v5492
        %v5579 = vunpack.c.h.b16 %v5492
        %v5580 = vunpack.c.l.b16 %v5493
        %v5581 = vunpack.c.h.b16 %v5493
        %v5582 = vunpack.c.l.b16 %v5494
        %v5583 = vunpack.c.h.b16 %v5494
        %v5584 = vunpack.c.l.b16 %v5495
        %v5585 = vunpack.c.h.b16 %v5495
        %v5586 = vunpack.c.l.b16 %v5496
        %v5587 = vunpack.c.h.b16 %v5496
        %v5588 = vunpack.c.l.b16 %v5497
        %v5589 = vunpack.c.h.b16 %v5497
        %v5590 = vunpack.c.l.b16 %v5498
        %v5591 = vunpack.c.h.b16 %v5498
        %v5592 = vunpack.c.l.b16 %v5499
        %v5593 = vunpack.c.h.b16 %v5499
        %v5594 = vunpack.c.l.b16 %v5500
        %v5595 = vunpack.c.h.b16 %v5500
        %v5596 = vunpack.c.l.b16 %v5501
        %v5597 = vunpack.c.h.b16 %v5501
        %v5598 = vpack.c.b16 %v5538, %v5534
        %v5599 = vpack.c.b16 %v5539, %v5535
        %v5600 = vpack.c.b16 %v5540, %v5536
        %v5601 = vpack.c.b16 %v5541, %v5537
        %v5602 = vpack.c.b16 %v5546, %v5542
        %v5603 = vpack.c.b16 %v5547, %v5543
        %v5604 = vpack.c.b16 %v5548, %v5544
        %v5605 = vpack.c.b16 %v5549, %v5545
        %v5606 = vpack.c.b16 %v5554, %v5550
        %v5607 = vpack.c.b16 %v5555, %v5551
        %v5608 = vpack.c.b16 %v5556, %v5552
        %v5609 = vpack.c.b16 %v5557, %v5553
        %v5610 = vpack.c.b16 %v5562, %v5558
        %v5611 = vpack.c.b16 %v5563, %v5559
        %v5612 = vpack.c.b16 %v5564, %v5560
        %v5613 = vpack.c.b16 %v5565, %v5561
        %v5614 = vpack.c.b16 %v5570, %v5566
        %v5615 = vpack.c.b16 %v5571, %v5567
        %v5616 = vpack.c.b16 %v5572, %v5568
        %v5617 = vpack.c.b16 %v5573, %v5569
        %v5618 = vpack.c.b16 %v5578, %v5574
        %v5619 = vpack.c.b16 %v5579, %v5575
        %v5620 = vpack.c.b16 %v5580, %v5576
        %v5621 = vpack.c.b16 %v5581, %v5577
        %v5622 = vpack.c.b16 %v5586, %v5582
        %v5623 = vpack.c.b16 %v5587, %v5583
        %v5624 = vpack.c.b16 %v5588, %v5584
        %v5625 = vpack.c.b16 %v5589, %v5585
        %v5626 = vpack.c.b16 %v5594, %v5590
        %v5627 = vpack.c.b16 %v5595, %v5591
        %v5628 = vpack.c.b16 %v5596, %v5592
        %v5629 = vpack.c.b16 %v5597, %v5593
        %5662 = vmatprep.subr.bf16.mxu0 %v5599
        %5663 = vmatpush1.bf16.msra.mxu0 %v5598
        %5664 = vmatprep.subr.bf16.mxu0 %v5603
        %5665 = vmatpush1.bf16.msra.mxu0 %v5602
        %5666 = vmatprep.subr.bf16.mxu0 %v5607
        %5667 = vmatpush1.bf16.msra.mxu0 %v5606
        %5668 = vmatprep.subr.bf16.mxu0 %v5611
        %5669 = vmatpush1.bf16.msra.mxu0 %v5610
        %5670 = vmatprep.subr.bf16.mxu0 %v5615
        %5671 = vmatpush1.bf16.msra.mxu0 %v5614
        %5672 = vmatprep.subr.bf16.mxu0 %v5619
        %5673 = vmatpush1.bf16.msra.mxu0 %v5618
        %5674 = vmatprep.subr.bf16.mxu0 %v5623
        %5675 = vmatpush1.bf16.msra.mxu0 %v5622
        %5676 = vmatprep.subr.bf16.mxu0 %v5627
        %5677 = vmatpush1.bf16.msra.mxu0 %v5626
        %5678 = vmatprep.subr.bf16.mxu0 0
        %5679 = vmatpush1.bf16.msra.mxu0 0
        %5680 = vmatprep.subr.bf16.mxu0 0
        %5681 = vmatpush1.bf16.msra.mxu0 0
        %5682 = vmatprep.subr.bf16.mxu0 0
        %5683 = vmatpush1.bf16.msra.mxu0 0
        %5684 = vmatprep.subr.bf16.mxu0 0
        %5685 = vmatpush1.bf16.msra.mxu0 0
        %5686 = vmatprep.subr.bf16.mxu0 0
        %5687 = vmatpush1.bf16.msra.mxu0 0
        %5688 = vmatprep.subr.bf16.mxu0 0
        %5689 = vmatpush1.bf16.msra.mxu0 0
        %5690 = vmatprep.subr.bf16.mxu0 0
        %5691 = vmatpush1.bf16.msra.mxu0 0
        %5692 = vmatprep.subr.bf16.mxu0 0
        %5693 = vmatpush1.bf16.msra.mxu0 0
        %5694 = vmatprep.mubr.bf16.mxu0 0
        %5695 = vmatmul.mubr.bf16.gmra.mrb[0].mxu0 %v5468
        %v5696 = vpop.f32.mrb[0].mxu0
        %v5697 = vadd.f32 0.0, %v5696
        %v5698 = vpop.f32.mrb[0].mxu0
        %v5699 = vadd.f32 0.0, %v5698
        %v5700 = vpop.f32.mrb[0].mxu0
        %v5701 = vadd.f32 0.0, %v5700
        %v5702 = vpop.f32.mrb[0].mxu0
        %v5703 = vadd.f32 0.0, %v5702
        %5704 = vdwg.mxu0
        %5705 = vmatprep.subr.bf16.mxu0 %v5601
        %5706 = vmatpush1.bf16.msra.mxu0 %v5600
        %5707 = vmatprep.subr.bf16.mxu0 %v5605
        %5708 = vmatpush1.bf16.msra.mxu0 %v5604
        %5709 = vmatprep.subr.bf16.mxu0 %v5609
        %5710 = vmatpush1.bf16.msra.mxu0 %v5608
        %5711 = vmatprep.subr.bf16.mxu0 %v5613
        %5712 = vmatpush1.bf16.msra.mxu0 %v5612
        %5713 = vmatprep.subr.bf16.mxu0 %v5617
        %5714 = vmatpush1.bf16.msra.mxu0 %v5616
        %5715 = vmatprep.subr.bf16.mxu0 %v5621
        %5716 = vmatpush1.bf16.msra.mxu0 %v5620
        %5717 = vmatprep.subr.bf16.mxu0 %v5625
        %5718 = vmatpush1.bf16.msra.mxu0 %v5624
        %5719 = vmatprep.subr.bf16.mxu0 %v5629
        %5720 = vmatpush1.bf16.msra.mxu0 %v5628
        %5721 = vmatprep.subr.bf16.mxu0 0
        %5722 = vmatpush1.bf16.msra.mxu0 0
        %5723 = vmatprep.subr.bf16.mxu0 0
        %5724 = vmatpush1.bf16.msra.mxu0 0
        %5725 = vmatprep.subr.bf16.mxu0 0
        %5726 = vmatpush1.bf16.msra.mxu0 0
        %5727 = vmatprep.subr.bf16.mxu0 0
        %5728 = vmatpush1.bf16.msra.mxu0 0
        %5729 = vmatprep.subr.bf16.mxu0 0
        %5730 = vmatpush1.bf16.msra.mxu0 0
        %5731 = vmatprep.subr.bf16.mxu0 0
        %5732 = vmatpush1.bf16.msra.mxu0 0
        %5733 = vmatprep.subr.bf16.mxu0 0
        %5734 = vmatpush1.bf16.msra.mxu0 0
        %5735 = vmatprep.subr.bf16.mxu0 0
        %5736 = vmatpush1.bf16.msra.mxu0 0
        %5737 = vmatprep.mubr.bf16.mxu0 0
        %5738 = vmatmul.mubr.bf16.gmra.mrb[0].mxu0 %v5468
        %v5739 = vpop.f32.mrb[0].mxu0
        %v5740 = vadd.f32 0.0, %v5739
        %v5741 = vpop.f32.mrb[0].mxu0
        %v5742 = vadd.f32 0.0, %v5741
        %v5743 = vpop.f32.mrb[0].mxu0
        %v5744 = vadd.f32 0.0, %v5743
        %v5745 = vpop.f32.mrb[0].mxu0
        %v5746 = vadd.f32 0.0, %v5745
        %5747 = vdwg.mxu0
        %v5748 = vxor.u32 %v5697, 2147483648
        %v5749 = vxor.u32 %v5699, 2147483648
        %v5750 = vxor.u32 %v5701, 2147483648
        %v5751 = vxor.u32 %v5703, 2147483648
        %v5752 = vmul.f32 %v5748, 1.442695
        %v5753 = vpow.pop %v5752
        %v5754 = vmul.f32 %v5749, 1.442695
        %v5755 = vpow.pop %v5754
        %v5756 = vmul.f32 %v5750, 1.442695
        %v5757 = vpow.pop %v5756
        %v5758 = vmul.f32 %v5751, 1.442695
        %v5759 = vpow.pop %v5758
        %v5760 = vadd.f32 %v5753, 1.0
        %v5761 = vadd.f32 %v5755, 1.0
        %v5762 = vadd.f32 %v5757, 1.0
        %v5763 = vadd.f32 %v5759, 1.0
        %v5764 = vrcp.pop %v5760
        %v5765 = vmul.f32 1.0, %v5764
        %v5766 = vrcp.pop %v5761
        %v5767 = vmul.f32 1.0, %v5766
        %v5768 = vrcp.pop %v5762
        %v5769 = vmul.f32 1.0, %v5768
        %v5770 = vrcp.pop %v5763
        %v5771 = vmul.f32 1.0, %v5770
        %v5772 = vmul.f32 %v5697, %v5765
        %v5773 = vmul.f32 %v5699, %v5767
        %v5774 = vmul.f32 %v5701, %v5769
        %v5775 = vmul.f32 %v5703, %v5771
        %v5776 = vmul.f32 %v5772, %v5740
        %v5777 = vmul.f32 %v5773, %v5742
        %v5778 = vmul.f32 %v5774, %v5744
        %v5779 = vmul.f32 %v5775, %v5746
        %v5780 = vpack.c.bf16 %v5778, %v5776
        %v5781 = vpack.c.bf16 %v5779, %v5777
        %s5782 = scalar_lea.vmem [#allocation13], 128
        %v5783 = vld [vmem:[%s5782] sm:$0xf]
        %v5784 = vld [vmem:[%s5782 + $0x4] sm:$0xf]
        %v5785 = vld [vmem:[%s5782 + $0x8] sm:$0xf]
        %v5786 = vld [vmem:[%s5782 + $0xc] sm:$0xf]
        %v5787 = vld [vmem:[%s5782 + $0x10] sm:$0xf]
        %v5788 = vld [vmem:[%s5782 + $0x14] sm:$0xf]
        %v5789 = vld [vmem:[%s5782 + $0x18] sm:$0xf]
        %v5790 = vld [vmem:[%s5782 + $0x1c] sm:$0xf]
        %v5791 = vld [vmem:[%s5782 + $0x20] sm:$0xf]
        %v5792 = vld [vmem:[%s5782 + $0x24] sm:$0xf]
        %v5793 = vld [vmem:[%s5782 + $0x28] sm:$0xf]
        %v5794 = vld [vmem:[%s5782 + $0x2c] sm:$0xf]
        %v5795 = vld [vmem:[%s5782 + $0x30] sm:$0xf]
        %v5796 = vld [vmem:[%s5782 + $0x34] sm:$0xf]
        %v5797 = vld [vmem:[%s5782 + $0x38] sm:$0xf]
        %v5798 = vld [vmem:[%s5782 + $0x3c] sm:$0xf]
        %v5799 = vld [vmem:[%s5782 + $0x40] sm:$0xf]
        %v5800 = vld [vmem:[%s5782 + $0x44] sm:$0xf]
        %v5801 = vld [vmem:[%s5782 + $0x48] sm:$0xf]
        %v5802 = vld [vmem:[%s5782 + $0x4c] sm:$0xf]
        %v5803 = vld [vmem:[%s5782 + $0x50] sm:$0xf]
        %v5804 = vld [vmem:[%s5782 + $0x54] sm:$0xf]
        %v5805 = vld [vmem:[%s5782 + $0x58] sm:$0xf]
        %v5806 = vld [vmem:[%s5782 + $0x5c] sm:$0xf]
        %v5807 = vld [vmem:[%s5782 + $0x60] sm:$0xf]
        %v5808 = vld [vmem:[%s5782 + $0x64] sm:$0xf]
        %v5809 = vld [vmem:[%s5782 + $0x68] sm:$0xf]
        %v5810 = vld [vmem:[%s5782 + $0x6c] sm:$0xf]
        %v5811 = vld [vmem:[%s5782 + $0x70] sm:$0xf]
        %v5812 = vld [vmem:[%s5782 + $0x74] sm:$0xf]
        %v5813 = vld [vmem:[%s5782 + $0x78] sm:$0xf]
        %v5814 = vld [vmem:[%s5782 + $0x7c] sm:$0xf]
        %v5847 = vunpack.c.l.b16 %v5783
        %v5848 = vunpack.c.l.b16 %v5784
        %v5849 = vunpack.c.l.b16 %v5785
        %v5850 = vunpack.c.l.b16 %v5786
        %v5851 = vunpack.c.l.b16 %v5787
        %v5852 = vunpack.c.l.b16 %v5788
        %v5853 = vunpack.c.l.b16 %v5789
        %v5854 = vunpack.c.l.b16 %v5790
        %v5855 = vunpack.c.l.b16 %v5791
        %v5856 = vunpack.c.l.b16 %v5792
        %v5857 = vunpack.c.l.b16 %v5793
        %v5858 = vunpack.c.l.b16 %v5794
        %v5859 = vunpack.c.l.b16 %v5795
        %v5860 = vunpack.c.l.b16 %v5796
        %v5861 = vunpack.c.l.b16 %v5797
        %v5862 = vunpack.c.l.b16 %v5798
        %v5863 = vunpack.c.l.b16 %v5799
        %v5864 = vunpack.c.l.b16 %v5800
        %v5865 = vunpack.c.l.b16 %v5801
        %v5866 = vunpack.c.l.b16 %v5802
        %v5867 = vunpack.c.l.b16 %v5803
        %v5868 = vunpack.c.l.b16 %v5804
        %v5869 = vunpack.c.l.b16 %v5805
        %v5870 = vunpack.c.l.b16 %v5806
        %v5871 = vunpack.c.l.b16 %v5807
        %v5872 = vunpack.c.l.b16 %v5808
        %v5873 = vunpack.c.l.b16 %v5809
        %v5874 = vunpack.c.l.b16 %v5810
        %v5875 = vunpack.c.l.b16 %v5811
        %v5876 = vunpack.c.l.b16 %v5812
        %v5877 = vunpack.c.l.b16 %v5813
        %v5878 = vunpack.c.l.b16 %v5814
        %v5879 = vpack.c.b16 %v5848, %v5847
        %v5880 = vpack.c.b16 %v5850, %v5849
        %v5881 = vpack.c.b16 %v5852, %v5851
        %v5882 = vpack.c.b16 %v5854, %v5853
        %v5883 = vpack.c.b16 %v5856, %v5855
        %v5884 = vpack.c.b16 %v5858, %v5857
        %v5885 = vpack.c.b16 %v5860, %v5859
        %v5886 = vpack.c.b16 %v5862, %v5861
        %v5887 = vpack.c.b16 %v5864, %v5863
        %v5888 = vpack.c.b16 %v5866, %v5865
        %v5889 = vpack.c.b16 %v5868, %v5867
        %v5890 = vpack.c.b16 %v5870, %v5869
        %v5891 = vpack.c.b16 %v5872, %v5871
        %v5892 = vpack.c.b16 %v5874, %v5873
        %v5893 = vpack.c.b16 %v5876, %v5875
        %v5894 = vpack.c.b16 %v5878, %v5877
        %5911 = vmatprep.subr.bf16.mxu0 0
        %5912 = vmatpush1.bf16.msra.mxu0 %v5879
        %5913 = vmatprep.subr.bf16.mxu0 0
        %5914 = vmatpush1.bf16.msra.mxu0 %v5880
        %5915 = vmatprep.subr.bf16.mxu0 0
        %5916 = vmatpush1.bf16.msra.mxu0 %v5881
        %5917 = vmatprep.subr.bf16.mxu0 0
        %5918 = vmatpush1.bf16.msra.mxu0 %v5882
        %5919 = vmatprep.subr.bf16.mxu0 0
        %5920 = vmatpush1.bf16.msra.mxu0 %v5883
        %5921 = vmatprep.subr.bf16.mxu0 0
        %5922 = vmatpush1.bf16.msra.mxu0 %v5884
        %5923 = vmatprep.subr.bf16.mxu0 0
        %5924 = vmatpush1.bf16.msra.mxu0 %v5885
        %5925 = vmatprep.subr.bf16.mxu0 0
        %5926 = vmatpush1.bf16.msra.mxu0 %v5886
        %5927 = vmatprep.subr.bf16.mxu0 0
        %5928 = vmatpush1.bf16.msra.mxu0 %v5887
        %5929 = vmatprep.subr.bf16.mxu0 0
        %5930 = vmatpush1.bf16.msra.mxu0 %v5888
        %5931 = vmatprep.subr.bf16.mxu0 0
        %5932 = vmatpush1.bf16.msra.mxu0 %v5889
        %5933 = vmatprep.subr.bf16.mxu0 0
        %5934 = vmatpush1.bf16.msra.mxu0 %v5890
        %5935 = vmatprep.subr.bf16.mxu0 0
        %5936 = vmatpush1.bf16.msra.mxu0 %v5891
        %5937 = vmatprep.subr.bf16.mxu0 0
        %5938 = vmatpush1.bf16.msra.mxu0 %v5892
        %5939 = vmatprep.subr.bf16.mxu0 0
        %5940 = vmatpush1.bf16.msra.mxu0 %v5893
        %5941 = vmatprep.subr.bf16.mxu0 0
        %5942 = vmatpush1.bf16.msra.mxu0 %v5894
        %5943 = vmatprep.mubr.bf16.mxu0 %v5781
        %5944 = vmatmul.mubr.bf16.gmra.mrb[0].mxu0 %v5780
        %v5945 = vpop.f32.mrb[0].mxu0
        %v5946 = vadd.f32 0.0, %v5945
        %v5947 = vpop.f32.mrb[0].mxu0
        %v5948 = vpop.f32.mrb[0].mxu0
        %v5949 = vadd.f32 0.0, %v5948
        %v5950 = vpop.f32.mrb[0].mxu0
        %5951 = vdwg.mxu0
        %v5952 = vadd.f32 %v5442, %v5946
        %v5953 = vadd.f32 %v5443, %v5949
        %s5954 = scalar_lea.vmem %s529, 16 [#allocation15]
        %5955 = vst [vmem:[%s5954] sm:$0xff] %v5952
        %5956 = vst [vmem:[%s5954 + $0x8] sm:$0xff] %v5953
        %v5957 = vld [vmem:[%s10] sm:$0x1]
        %v5958 = vmul.f32 %v5952, %v5952
        %v5959 = vmul.f32 %v5953, %v5953
        %5960 = vadd.xlane.f32.xlu0 %v5958
        %v5961 = vpop.xlane.xlu0 %5960
        %5962 = vadd.xlane.f32.xlu0 %v5959
        %v5963 = vpop.xlane.xlu0 %5962
        %v5964 = vmul.f32 %v5961, %v551
        %v5965 = vmul.f32 %v5963, %v551
        %v5966 = vadd.f32 %v5964, 1e-05
        %v5967 = vadd.f32 %v5965, 1e-05
        %v5968 = vrsqrt.pop %v5966
        %v5969 = vrsqrt.pop %v5967
        %v5970 = vmul.f32 %v5952, %v5968
        %v5971 = vmul.f32 %v5953, %v5969
        %v5973 = vlaneseq
        %v5974 = vshrl.u32 %v5973, 7
        %v5975 = vsub.s32 0, %v5974
        %v5976 = vrot.slane %v5957, %v5975
        %v5978 = vmul.f32 %v5970, %v5976
        %v5979 = vmul.f32 %v5971, %v5976
        %5980 = vst [vmem:[%s522] sm:$0xff] %v5978
        %5981 = vst [vmem:[%s522 + $0x8] sm:$0xff] %v5979
        %s5982 = sand.u32 %s280, 1
        %s5983 = scalar_lea.sflag [#allocation4], %s5982
        %s5984 = sand.u32 %s280, 1
        %s5985 = smul.addr %s5984, 16
        %s5986 = scalar_lea.vmem [#allocation14], %s5985
        %s5987 = sand.u32 %s306, 1
        %s5988 = scalar_lea.sflag [#allocation16], %s5987
        %s5989 = sand.u32 %s306, 1
        %s5990 = smul.addr %s5989, 32
        %s5991 = scalar_lea.vmem [#allocation15], %s5990
        // Predicated region
        $region93: #{tpu_custom_call.1} parent=63 // pred_check
          %p5992 = pneg %p290
        $region94: #{tpu_custom_call.1} parent=63 // pred_check_branch
          %5994 = sbr.rel (%p5992) target = $region96
        $region95: #{tpu_custom_call.1} parent=63 // pred_region
          %s5996 = ssub.s32 256, 256
          %5997 = vsyncadd %s5983, %s5996
          %s5998 = smul.addr %s36, 2
          %s5999 = smul.addr %s5998, 128
          %s6000 = scalar_lea.hbm %s11, %s5999
          %s6001 = sshll.u32 %s5986, 4
          %s6002 = int_to_ptr.vmem [resolvable:$true] %s6001
          %6007 = dma.vmem_to_hbm [thread:$0]  %s6002, 256, %s6000, %s5983, 128, 128, 8
        $region96: #{tpu_custom_call.1} parent=63 // pred_fallthru
          _
        // Predicated region
        $region97: #{tpu_custom_call.1} parent=63 // pred_check
          %p6008 = pneg %p316
        $region98: #{tpu_custom_call.1} parent=63 // pred_check_branch
          %6010 = sbr.rel (%p6008) target = $region100
        $region99: #{tpu_custom_call.1} parent=63 // pred_region
          #allocation18 [shape = 'u32[6]{0}', space=smem, size = 0x18, scoped, tag = 'DMA stride descriptor']
          %s6012 = ssub.s32 512, 512
          %6013 = vsyncadd %s5988, %s6012
          %s6014 = smul.addr %s36, 2
          %s6015 = smul.addr %s6014, 128
          %s6016 = scalar_lea.hbm %s12, %s6015
          %s6018 = sshll.u32 1, 14
          %s6019 = sxor.u32 4294967295, %s6018
          %s6022 = sshll.u32 7, 18
          %s6023 = sxor.u32 4294967295, %s6022
          %s6024 = sand.u32 0, %s6023
          %s6026 = sor.u32 %s6024, 0
          %s6028 = sshll.u32 3, 24
          %s6029 = sxor.u32 4294967295, %s6028
          %s6030 = sand.u32 %s6026, %s6029
          %s6032 = sor.u32 %s6030, 0
          %s6033 = sshll.u32 %s5991, 4
          %s6034 = int_to_ptr.vmem [resolvable:$true] %s6033
          %6040 = sst [smem:[#allocation18]] 256
          %s6041 = scalar_lea.smem [#allocation18], 1
          %6042 = sst [smem:[%s6041]] 512
          %s6043 = scalar_lea.smem [#allocation18], 2
          %6044 = sst [smem:[%s6043]] 2
          %s6045 = scalar_lea.smem [#allocation18], 3
          %6046 = sst [smem:[%s6045]] 128
          %s6047 = scalar_lea.smem [#allocation18], 4
          %6048 = sst [smem:[%s6047]] 128
          %s6049 = scalar_lea.smem [#allocation18], 5
          %6050 = sst [smem:[%s6049]] 8
          %6052 = dma.general %s6034, 512, %s6016, %s5988, [#allocation17], [#allocation18], %s6032, 0
        $region100: #{tpu_custom_call.1} parent=63 // pred_fallthru
          _
      $region64: #{tpu_custom_call.1} parent=5 // pred_fallthru
        _
      %p6053 = scmp.le.s32.totalorder 2, %s31
      // Predicated region
      $region101: #{tpu_custom_call.1} parent=5 // pred_check
        %p6054 = pneg %p6053
      $region102: #{tpu_custom_call.1} parent=5 // pred_check_branch
        %6056 = sbr.rel (%p6054) target = $region104
      $region103: #{tpu_custom_call.1} parent=5 // pred_region
        %s6057 = ssub.s32 %s31, 2
        // Predicated region
        $region105: #{tpu_custom_call.1} parent=103 // pred_check
          %p6058 = pneg %p296
        $region106: #{tpu_custom_call.1} parent=103 // pred_check_branch
          %6060 = sbr.rel (%p6058) target = $region108
        $region107: #{tpu_custom_call.1} parent=103 // pred_region
          %s6061 = sand.u32 %s281, 1
          %s6062 = scalar_lea.sflag [#allocation4], %s6061
          %s6063 = sand.u32 %s281, 1
          %s6064 = smul.addr %s6063, 16
          %s6065 = scalar_lea.vmem [#allocation14], %s6064
          %6066 = dma.done %s6062, 256
        $region108: #{tpu_custom_call.1} parent=103 // pred_fallthru
          _
        // Predicated region
        $region109: #{tpu_custom_call.1} parent=103 // pred_check
          %p6067 = pneg %p322
        $region110: #{tpu_custom_call.1} parent=103 // pred_check_branch
          %6069 = sbr.rel (%p6067) target = $region112
        $region111: #{tpu_custom_call.1} parent=103 // pred_region
          %s6070 = sand.u32 %s307, 1
          %s6071 = scalar_lea.sflag [#allocation16], %s6070
          %s6072 = sand.u32 %s307, 1
          %s6073 = smul.addr %s6072, 32
          %s6074 = scalar_lea.vmem [#allocation15], %s6073
          %6075 = dma.done %s6071, 512
        $region112: #{tpu_custom_call.1} parent=103 // pred_fallthru
          _
      $region104: #{tpu_custom_call.1} parent=5 // pred_fallthru
        _
    $region6: #{tpu_custom_call.1} parent=1 // loop_footer
      %s35 = sadd.s32 1, %s31
    $region7: #{tpu_custom_call.1} parent=1 // loop_footer_branch
      %30 = sbr.rel target = $region3
    $region8: #{tpu_custom_call.1} parent=1 // loop_exit
      _
    %6076 = vsyncpa [#allocation3], 1
    %s6077 = scalar_lea.sflag [#allocation3], 1
    %6078 = vsyncpa %s6077, 1
    %6079 = vsyncpa [#allocation6], 1
    %6080 = vsyncpa [#allocation9], 1
    %6081 = vsyncpa [#allocation12], 1
    %6082 = vsyncpa [#allocation4], 1
    %s6083 = scalar_lea.sflag [#allocation4], 1
    %6084 = vsyncpa %s6083, 1
    %6085 = vsyncpa [#allocation16], 1
    %s6086 = scalar_lea.sflag [#allocation16], 1
    %6087 = vsyncpa %s6086, 1

</llo_original>
